<compile_context>
chip_gen: v6e
topology: v6e:2x2x1
jax: 0.10.0
libtpu: 0.0.40
codegen_flags: <defaults>
</compile_context>

<pallas_src>
import functools
import math

import jax
import jax.numpy as jnp
from jax import lax
from jax.experimental import pallas as pl
from jax.experimental.pallas import tpu as pltpu


# ----------------------------------------------------------------------------
# tiling helpers
# ----------------------------------------------------------------------------
def _row_tile(m, cap):
    """Largest legal row-tile: divides m and (multiple of 8 or == m)."""
    if m <= cap:
        return m
    for d in range(min(m, cap), 0, -1):
        if m % d == 0 and d % 8 == 0:
            return d
    return m                       # full extent is always legal


def _k_tile(k, cap):
    """Largest legal K-tile: divides k and (multiple of 128 or == k)."""
    if k <= cap:
        return k
    for d in range(min(k, cap), 0, -1):
        if k % d == 0 and d % 128 == 0:
            return d
    return k


def _largest_divisor(n, cap):
    cap = max(1, min(n, cap))
    for d in range(cap, 0, -1):
        if n % d == 0:
            return d
    return 1


# ----------------------------------------------------------------------------
# Kernel 1: fused backbone stand-in + ReLU + temporal avg-pool + x-side GRU
# projections.
#   input x_patches : (N, L_out, B*P, K)  bf16
#   output xp       : (N, B*P, 3F)        f32   xp = pool_l(relu(x@We)) @ Wx3 + b3
# Grid (n, bp_tile, l, k); K innermost finishes the matmul per (n,bp,l) tile,
# ReLU + temporal pool accumulate in VMEM across l, x-projection runs on the
# last l step.  The f32 `feat` intermediate of the previous revision is gone.
# ----------------------------------------------------------------------------
def _embed_pool_xproj_kernel(x_ref, w_ref, wx_ref, b_ref, o_ref,
                             mm_acc, pool_acc, *, l_out):
    l = pl.program_id(2)
    k = pl.program_id(3)

    @pl.when((l == 0) & (k == 0))
    def _():
        pool_acc[...] = jnp.zeros_like(pool_acc)

    @pl.when(k == 0)
    def _():
        mm_acc[...] = jnp.zeros_like(mm_acc)

    # bf16 x bf16 on the MXU, f32 accumulation
    mm_acc[...] += jnp.dot(x_ref[...], w_ref[...],
                           preferred_element_type=jnp.float32)

    @pl.when(k == pl.num_programs(3) - 1)
    def _():
        pool_acc[...] += jnp.maximum(mm_acc[...], 0.0)    # ReLU + temporal sum

        @pl.when(l == l_out - 1)
        def _():
            pooled = (pool_acc[...] * (1.0 / l_out)).astype(jnp.bfloat16)
            o_ref[...] = (jnp.dot(pooled, wx_ref[...],
                                  preferred_element_type=jnp.float32)
                          + b_ref[...])


def embed_pool_xproj(x_patches, w_embed, wx3, b3, *, rows_cap=512, tk_cap=2048):
    N, L_out, BP, K = x_patches.shape
    F = w_embed.shape[1]
    F3 = wx3.shape[1]
    rows = _row_tile(BP, rows_cap)
    tk = _k_tile(K, tk_cap)
    kernel = functools.partial(_embed_pool_xproj_kernel, l_out=L_out)
    return pl.pallas_call(
        kernel,
        out_shape=jax.ShapeDtypeStruct((N, BP, F3), jnp.float32),
        grid=(N, BP // rows, L_out, K // tk),
        in_specs=[
            # (N, L_out, BP, K) -> kernel sees (rows, tk)
            pl.BlockSpec((None, None, rows, tk),
                         lambda n, b, l, k: (n, l, b, k)),
            pl.BlockSpec((tk, F), lambda n, b, l, k: (k, 0)),
            pl.BlockSpec((F, F3), lambda n, b, l, k: (0, 0)),
            pl.BlockSpec((1, F3), lambda n, b, l, k: (0, 0)),
        ],
        # (N, BP, 3F) -> kernel sees (rows, 3F); constant across (l, k) so it
        # stays VMEM-resident and is written back once per (n, bp_tile).
        out_specs=pl.BlockSpec((None, rows, F3), lambda n, b, l, k: (n, b, 0)),
        scratch_shapes=[pltpu.VMEM((rows, F), jnp.float32),   # matmul acc
                        pltpu.VMEM((rows, F), jnp.float32)],  # temporal pool acc
        compiler_params=pltpu.CompilerParams(
            dimension_semantics=("parallel", "parallel",
                                 "arbitrary", "arbitrary")),
    )(x_patches, w_embed, wx3, b3)


# ----------------------------------------------------------------------------
# Kernel 2: ConvGRU over N (x-projections pre-computed by kernel 1) with the
# head (spatial avg-pool + BatchNorm1d(eval) + Linear) fused into the final
# step.  Each grid step processes `chunk` timesteps with lax.fori_loop (the
# whole sequence when it fits VMEM); hidden state lives in a VMEM scratch.
# All matmul operands are bf16 (f32 state / accumulation).
# ----------------------------------------------------------------------------
def _convgru_head_kernel(xp_ref, whrz_ref, woh_ref,
                         gamma_ref, beta_ref, mean_ref, var_ref,
                         fcw_ref, fcb_ref,
                         out_ref, ctx_ref, h_ref,
                         *, feature_size, spatial, chunk, unroll):
    F = feature_size
    P = spatial
    t = pl.program_id(0)

    @pl.when(t == 0)
    def _():
        h_ref[...] = jnp.zeros_like(h_ref)

    whrz = whrz_ref[...]           # (F, 2F) bf16, loaded once per grid step
    woh = woh_ref[...]             # (F, F)  bf16

    def step(i, h):
        xp = xp_ref[i]             # (BP, 3F) f32 : x @ [Wrx|Wzx|Wox] + bias
        g = jnp.dot(h.astype(jnp.bfloat16), whrz,
                    preferred_element_type=jnp.float32)
        r = jax.nn.sigmoid(xp[:, 0 * F:1 * F] + g[:, 0 * F:1 * F])
        z = jax.nn.sigmoid(xp[:, 1 * F:2 * F] + g[:, 1 * F:2 * F])
        o = jnp.tanh(xp[:, 2 * F:3 * F]
                     + jnp.dot((h * r).astype(jnp.bfloat16), woh,
                               preferred_element_type=jnp.float32))
        # DPC-style ConvGRU update: h' = h*(1-z) + o*z
        # TODO(synk): inter-step ConvGRU dropout omitted (inference mode).
        return h * (1.0 - z) + o * z

    h = lax.fori_loop(0, chunk, step, h_ref[...], unroll=unroll)
    h_ref[...] = h

    @pl.when(t == pl.num_programs(0) - 1)
    def _():
        B = out_ref.shape[0]
        # context_avg_pool: spatial mean over P (single XLU reduce)
        ctx = jnp.sum(h.reshape(B, P, F), axis=1) * (1.0 / P)
        inv = lax.rsqrt(var_ref[...] + 1e-5)
        ctx_bn = (ctx - mean_ref[...]) * inv * gamma_ref[...] + beta_ref[...]
        ctx_ref[...] = ctx_bn
        # final_fc: Dropout (identity, eval) + Linear (classes padded to 128)
        out_ref[...] = (jnp.dot(ctx_bn.astype(jnp.bfloat16), fcw_ref[...],
                                preferred_element_type=jnp.float32)
                        + fcb_ref[...])


def convgru_head(xp, whrz, woh, bn_params, fc_w, fc_b,
                 *, batch_size, feature_size, spatial,
                 xp_vmem_budget=8 * 1024 * 1024):
    N, BP, F3 = xp.shape
    B = batch_size
    F = feature_size
    P = spatial
    nc_pad = fc_w.shape[1]
    gamma, beta, mean, var = bn_params

    # largest chunk of timesteps whose double-buffered xp block fits the budget
    per_step = BP * F3 * 4
    chunk = _largest_divisor(N, max(1, xp_vmem_budget // (2 * per_step)))
    unroll = chunk <= 8
    kernel = functools.partial(_convgru_head_kernel,
                               feature_size=F, spatial=P,
                               chunk=chunk, unroll=unroll)

    def wspec(shape):
        return pl.BlockSpec(shape, lambda t: (0,) * len(shape))

    out, ctx = pl.pallas_call(
        kernel,
        out_shape=(jax.ShapeDtypeStruct((B, nc_pad), jnp.float32),
                   jax.ShapeDtypeStruct((B, F), jnp.float32)),
        grid=(N // chunk,),
        in_specs=[pl.BlockSpec((chunk, BP, F3), lambda t: (t, 0, 0)),
                  wspec((F, 2 * F)), wspec((F, F)),
                  wspec((1, F)), wspec((1, F)), wspec((1, F)), wspec((1, F)),
                  wspec((F, nc_pad)), wspec((1, nc_pad))],
        out_specs=(pl.BlockSpec((B, nc_pad), lambda t: (0, 0)),
                   pl.BlockSpec((B, F), lambda t: (0, 0))),
        scratch_shapes=[pltpu.VMEM((BP, F), jnp.float32)],   # hidden state
        compiler_params=pltpu.CompilerParams(
            dimension_semantics=("arbitrary",)),
    )(xp, whrz, woh, gamma, beta, mean, var, fc_w, fc_b)
    return out, ctx


# ----------------------------------------------------------------------------
# Parameter init (deterministic, mirrors shapes implied by __init__).
# Matmul weights are stored bf16 (MXU operands); biases / BN params stay f32.
# ----------------------------------------------------------------------------
def init_params(key, *, in_channels, feature_size, num_classes):
    F = feature_size
    patch_dim = in_channels * 4 * 32 * 32
    nc_pad = ((num_classes + 127) // 128) * 128     # lane-dense fc output
    keys = jax.random.split(key, 8)
    orth = jax.nn.initializers.orthogonal()

    def gate(k):
        # torch: Conv2d(2F -> F, 1x1) weight (F, 2F), orthogonal; bias 0.
        w = orth(k, (F, 2 * F), jnp.float32).T      # (2F, F) for x @ W
        return w[:F], w[F:]                          # x-half, h-half

    wrx, wrh = gate(keys[1])
    wzx, wzh = gate(keys[2])
    wox, woh = gate(keys[3])

    fc_w = orth(keys[4], (num_classes, F), jnp.float32).T       # (F, NC)
    fc_w_p = jnp.zeros((F, nc_pad), jnp.float32).at[:, :num_classes].set(fc_w)

    params = dict(
        # backbone stand-in (not part of the module's orthogonal init)
        w_embed=(0.02 * jax.random.normal(keys[0], (patch_dim, F),
                                          jnp.float32)).astype(jnp.bfloat16),
        # fused ConvGRU gate weights / biases
        wx3=jnp.concatenate([wrx, wzx, wox], axis=1).astype(jnp.bfloat16),
        whrz=jnp.concatenate([wrh, wzh], axis=1).astype(jnp.bfloat16),
        woh=woh.astype(jnp.bfloat16),
        b3=jnp.zeros((1, 3 * F), jnp.float32),          # [br|bz|bo]
        # final_bn (fresh running stats, weight=1, bias=0)
        bn_gamma=jnp.ones((1, F), jnp.float32),
        bn_beta=jnp.zeros((1, F), jnp.float32),
        bn_mean=jnp.zeros((1, F), jnp.float32),
        bn_var=jnp.ones((1, F), jnp.float32),
        # final_fc Linear(F -> num_classes), orthogonal weight, zero bias,
        # padded to nc_pad lanes (sliced back after the kernel)
        fc_w=fc_w_p.astype(jnp.bfloat16),
        fc_b=jnp.zeros((1, nc_pad), jnp.float32),
    )
    return params


# ----------------------------------------------------------------------------
# Forward (glue in JAX, hot paths in the Pallas kernels above)
# ----------------------------------------------------------------------------
def lc_rnn_forward(batch, params, *, feature_size, num_classes):
    B, N, C, L, D, _ = batch.shape
    L_out = int(math.ceil(L / 4))
    D_out = int(math.ceil(D / 32))
    # TODO(synk): no padding path for L % 4 != 0 or D % 32 != 0.
    assert L % 4 == 0 and D % 32 == 0
    P = D_out * D_out
    K = C * 4 * 32 * 32
    F = feature_size
    # TODO(synk): feature_size not a multiple of 128 would need lane padding.
    assert F % 128 == 0

    # --- backbone stand-in: non-overlapping (4,32,32) patches, laid out as
    # (N, L_out, B*P, K) so both Pallas kernels see lane-dense 2D slabs.
    # The bf16 cast is fused into the transpose copy by XLA (one read of the
    # f32 input, one half-width write); this is the only host-side reorg left.
    x = batch.astype(jnp.bfloat16).reshape(
        B, N, C, L_out, 4, D_out, 32, D_out, 32)
    x = x.transpose(1, 3, 0, 5, 7, 2, 4, 6, 8)   # (N,L_out,B,i,j,C,4,32,32)
    x_patches = x.reshape(N, L_out, B * P, K)

    # --- fused: patch embed + ReLU + AvgPool3d((L_out,1,1)) + x-side gates
    xp = embed_pool_xproj(x_patches, params["w_embed"],
                          params["wx3"], params["b3"])       # (N, B*P, 3F)

    # --- ConvGRU over the num_seq (N) axis + fused head (pool + BN + Linear)
    bn = (params["bn_gamma"], params["bn_beta"],
          params["bn_mean"], params["bn_var"])
    out_p, ctx = convgru_head(xp, params["whrz"], params["woh"], bn,
                              params["fc_w"], params["fc_b"],
                              batch_size=B, feature_size=F, spatial=P)

    output = out_p[:, :num_classes].reshape(B, 1, num_classes)  # B x 1 x classes
    context = ctx.reshape(B, 1, F)                              # B x 1 x F
    return output, context


if __name__ == "__main__":
    # small shapes: input_size=64 -> D_out=2, seq_len=8 -> L_out=2, num_seq=4
    B, N, C, L, D = 2, 4, 3, 8, 64
    feature_size = 128         # synthetic, lane-dense (real ResNet18-2d3d: 256)
    num_classes = 101

    key = jax.random.PRNGKey(0)
    k_data, k_param = jax.random.split(key)
    batch = jax.random.normal(k_data, (B, N, C, L, D, D), jnp.float32)
    params = init_params(k_param, in_channels=C,
                         feature_size=feature_size, num_classes=num_classes)

    fwd = jax.jit(functools.partial(lc_rnn_forward,
                                    feature_size=feature_size,
                                    num_classes=num_classes))
    output, context = fwd(batch, params)
    jax.block_until_ready((output, context))

    assert output.shape == (B, 1, num_classes), output.shape
    assert context.shape == (B, 1, feature_size), context.shape
    assert bool(jnp.all(jnp.isfinite(output))) and bool(jnp.all(jnp.isfinite(context)))
    print("KERNEL_OK")
</pallas_src>

<mosaic_0001>
module attributes {stable_mosaic.version = 11 : i64} {
  func.func @_embed_pool_xproj_kernel(%arg0: i32, %arg1: i32, %arg2: i32, %arg3: i32, %arg4: memref<1x1x8x2048xbf16, #tpu.memory_space<vmem>>, %arg5: memref<2048x128xbf16, #tpu.memory_space<vmem>>, %arg6: memref<128x384xbf16, #tpu.memory_space<vmem>>, %arg7: memref<1x384xf32, #tpu.memory_space<vmem>>, %arg8: memref<1x8x384xf32, #tpu.memory_space<vmem>>, %arg9: memref<8x128xf32, #tpu.memory_space<vmem>>, %arg10: memref<8x128xf32, #tpu.memory_space<vmem>>) attributes {dimension_semantics = [#tpu.dimension_semantics<parallel>, #tpu.dimension_semantics<parallel>, #tpu.dimension_semantics<arbitrary>, #tpu.dimension_semantics<arbitrary>], iteration_bounds = array<i64: 4, 1, 2, 6>, scalar_prefetch = 0 : i64, scratch_operands = 2 : i64, tpu.core_type = #tpu.core_type<tc>, window_params = [{transform_indices = @transform_0, window_bounds = array<i64: 1, 1, 8, 2048>}, {transform_indices = @transform_1, window_bounds = array<i64: 2048, 128>}, {pipeline_mode = #tpu.pipeline_mode<synchronous>, transform_indices = @transform_2, window_bounds = array<i64: 128, 384>}, {pipeline_mode = #tpu.pipeline_mode<synchronous>, transform_indices = @transform_3, window_bounds = array<i64: 1, 384>}, {transform_indices = @transform_4, window_bounds = array<i64: 1, 8, 384>}]} {
    %c0_i32 = arith.constant 0 : i32
    %0 = arith.cmpi eq, %arg2, %c0_i32 : i32
    %c0_i32_0 = arith.constant 0 : i32
    %1 = arith.cmpi eq, %arg3, %c0_i32_0 : i32
    %2 = arith.andi %0, %1 : i1
    %3 = arith.extui %2 : i1 to i32
    %c0_i32_1 = arith.constant 0 : i32
    %4 = arith.cmpi ne, %3, %c0_i32_1 : i32
    scf.if %4 {
      %cst_14 = arith.constant 0.000000e+00 : f32
      %18 = vector.broadcast %cst_14 : f32 to vector<8x128xf32>
      %c0_15 = arith.constant 0 : index
      %c0_16 = arith.constant 0 : index
      %19 = vector.load %arg10[%c0_15, %c0_16] : memref<8x128xf32, #tpu.memory_space<vmem>>, vector<8x128xf32>
      tpu.vector_store %arg10[%c0_15, %c0_16], %18 {strides = array<i32>} : memref<8x128xf32, #tpu.memory_space<vmem>>, vector<8x128xf32>,
    } else {
    }
    %c0_i32_2 = arith.constant 0 : i32
    %5 = arith.cmpi eq, %arg3, %c0_i32_2 : i32
    %6 = arith.extui %5 : i1 to i32
    %c0_i32_3 = arith.constant 0 : i32
    %7 = arith.cmpi ne, %6, %c0_i32_3 : i32
    scf.if %7 {
      %cst_14 = arith.constant 0.000000e+00 : f32
      %18 = vector.broadcast %cst_14 : f32 to vector<8x128xf32>
      %c0_15 = arith.constant 0 : index
      %c0_16 = arith.constant 0 : index
      %19 = vector.load %arg9[%c0_15, %c0_16] : memref<8x128xf32, #tpu.memory_space<vmem>>, vector<8x128xf32>
      tpu.vector_store %arg9[%c0_15, %c0_16], %18 {strides = array<i32>} : memref<8x128xf32, #tpu.memory_space<vmem>>, vector<8x128xf32>,
    } else {
    }
    %c0 = arith.constant 0 : index
    %c0_4 = arith.constant 0 : index
    %8 = vector.load %arg9[%c0, %c0_4] : memref<8x128xf32, #tpu.memory_space<vmem>>, vector<8x128xf32>
    %c0_5 = arith.constant 0 : index
    %c0_6 = arith.constant 0 : index
    %c0_7 = arith.constant 0 : index
    %c0_8 = arith.constant 0 : index
    %9 = vector.load %arg4[%c0_5, %c0_6, %c0_7, %c0_8] : memref<1x1x8x2048xbf16, #tpu.memory_space<vmem>>, vector<1x1x8x2048xbf16>
    %10 = vector.shape_cast %9 : vector<1x1x8x2048xbf16> to vector<8x2048xbf16>
    %c0_9 = arith.constant 0 : index
    %c0_10 = arith.constant 0 : index
    %11 = vector.load %arg5[%c0_9, %c0_10] : memref<2048x128xbf16, #tpu.memory_space<vmem>>, vector<2048x128xbf16>
    %cst = arith.constant dense<0.000000e+00> : vector<8x128xf32>
    %12 = tpu.matmul %10, %11, %cst {dimension_numbers = #tpu.dot_dimension_numbers<[1], [0], [0], [1], [0, 0, 1, 1], [], []>} : vector<8x2048xbf16>, vector<2048x128xbf16>, vector<8x128xf32> -> vector<8x128xf32>
    %13 = arith.addf %8, %12 : vector<8x128xf32>
    %c0_11 = arith.constant 0 : index
    %c0_12 = arith.constant 0 : index
    %14 = vector.load %arg9[%c0_11, %c0_12] : memref<8x128xf32, #tpu.memory_space<vmem>>, vector<8x128xf32>
    tpu.vector_store %arg9[%c0_11, %c0_12], %13 {strides = array<i32>} : memref<8x128xf32, #tpu.memory_space<vmem>>, vector<8x128xf32>,
    %c5_i32 = arith.constant 5 : i32
    %15 = arith.cmpi eq, %arg3, %c5_i32 : i32
    %16 = arith.extui %15 : i1 to i32
    %c0_i32_13 = arith.constant 0 : i32
    %17 = arith.cmpi ne, %16, %c0_i32_13 : i32
    scf.if %17 {
      %c0_14 = arith.constant 0 : index
      %c0_15 = arith.constant 0 : index
      %18 = vector.load %arg10[%c0_14, %c0_15] : memref<8x128xf32, #tpu.memory_space<vmem>>, vector<8x128xf32>
      %c0_16 = arith.constant 0 : index
      %c0_17 = arith.constant 0 : index
      %19 = vector.load %arg9[%c0_16, %c0_17] : memref<8x128xf32, #tpu.memory_space<vmem>>, vector<8x128xf32>
      %cst_18 = arith.constant 0.000000e+00 : f32
      %20 = vector.broadcast %cst_18 : f32 to vector<8x128xf32>
      %21 = arith.maximumf %19, %20 : vector<8x128xf32>
      %22 = arith.addf %18, %21 : vector<8x128xf32>
      %c0_19 = arith.constant 0 : index
      %c0_20 = arith.constant 0 : index
      %23 = vector.load %arg10[%c0_19, %c0_20] : memref<8x128xf32, #tpu.memory_space<vmem>>, vector<8x128xf32>
      tpu.vector_store %arg10[%c0_19, %c0_20], %22 {strides = array<i32>} : memref<8x128xf32, #tpu.memory_space<vmem>>, vector<8x128xf32>,
      %c1_i32 = arith.constant 1 : i32
      %24 = arith.cmpi eq, %arg2, %c1_i32 : i32
      %25 = arith.extui %24 : i1 to i32
      %c0_i32_21 = arith.constant 0 : i32
      %26 = arith.cmpi ne, %25, %c0_i32_21 : i32
      scf.if %26 {
        %c0_22 = arith.constant 0 : index
        %c0_23 = arith.constant 0 : index
        %27 = vector.load %arg10[%c0_22, %c0_23] : memref<8x128xf32, #tpu.memory_space<vmem>>, vector<8x128xf32>
        %cst_24 = arith.constant 5.000000e-01 : f32
        %28 = vector.broadcast %cst_24 : f32 to vector<8x128xf32>
        %29 = arith.mulf %27, %28 : vector<8x128xf32>
        %30 = arith.truncf %29 : vector<8x128xf32> to vector<8x128xbf16>
        %c0_25 = arith.constant 0 : index
        %c0_26 = arith.constant 0 : index
        %31 = vector.load %arg6[%c0_25, %c0_26] : memref<128x384xbf16, #tpu.memory_space<vmem>>, vector<128x384xbf16>
        %cst_27 = arith.constant dense<0.000000e+00> : vector<8x384xf32>
        %32 = tpu.matmul %30, %31, %cst_27 {dimension_numbers = #tpu.dot_dimension_numbers<[1], [0], [0], [1], [0, 0, 1, 1], [], []>} : vector<8x128xbf16>, vector<128x384xbf16>, vector<8x384xf32> -> vector<8x384xf32>
        %c0_28 = arith.constant 0 : index
        %c0_29 = arith.constant 0 : index
        %33 = vector.load %arg7[%c0_28, %c0_29] : memref<1x384xf32, #tpu.memory_space<vmem>>, vector<1x384xf32>
        %34 = vector.broadcast %33 : vector<1x384xf32> to vector<8x384xf32>
        %35 = arith.addf %32, %34 : vector<8x384xf32>
        %c0_30 = arith.constant 0 : index
        %c0_31 = arith.constant 0 : index
        %c0_32 = arith.constant 0 : index
        %36 = vector.load %arg8[%c0_30, %c0_31, %c0_32] : memref<1x8x384xf32, #tpu.memory_space<vmem>>, vector<1x8x384xf32>
        %37 = vector.shape_cast %36 : vector<1x8x384xf32> to vector<8x384xf32>
        %38 = vector.shape_cast %35 : vector<8x384xf32> to vector<1x8x384xf32>
        tpu.vector_store %arg8[%c0_30, %c0_31, %c0_32], %38 {strides = array<i32>} : memref<1x8x384xf32, #tpu.memory_space<vmem>>, vector<1x8x384xf32>,
      } else {
      }
    } else {
    }
    return
  }
  func.func @transform_0(%arg0: i32, %arg1: i32, %arg2: i32, %arg3: i32) -> (i32, i32, i32, i32) {
    %c0_i32 = arith.constant 0 : i32
    return %arg0, %arg2, %arg1, %arg3 : i32, i32, i32, i32
  }
  func.func @transform_1(%arg0: i32, %arg1: i32, %arg2: i32, %arg3: i32) -> (i32, i32) {
    %c0_i32 = arith.constant 0 : i32
    %c0_i32_0 = arith.constant 0 : i32
    return %arg3, %c0_i32 : i32, i32
  }
  func.func @transform_2(%arg0: i32, %arg1: i32, %arg2: i32, %arg3: i32) -> (i32, i32) {
    %c0_i32 = arith.constant 0 : i32
    %c0_i32_0 = arith.constant 0 : i32
    %c0_i32_1 = arith.constant 0 : i32
    return %c0_i32, %c0_i32_0 : i32, i32
  }
  func.func @transform_3(%arg0: i32, %arg1: i32, %arg2: i32, %arg3: i32) -> (i32, i32) {
    %c0_i32 = arith.constant 0 : i32
    %c0_i32_0 = arith.constant 0 : i32
    %c0_i32_1 = arith.constant 0 : i32
    return %c0_i32, %c0_i32_0 : i32, i32
  }
  func.func @transform_4(%arg0: i32, %arg1: i32, %arg2: i32, %arg3: i32) -> (i32, i32, i32) {
    %c0_i32 = arith.constant 0 : i32
    %c0_i32_0 = arith.constant 0 : i32
    return %arg0, %arg1, %c0_i32 : i32, i32, i32
  }
}

module attributes {stable_mosaic.version = 11 : i64} {
  func.func @_convgru_head_kernel(%arg0: i32, %arg1: memref<4x8x384xf32, #tpu.memory_space<vmem>>, %arg2: memref<128x256xbf16, #tpu.memory_space<vmem>>, %arg3: memref<128x128xbf16, #tpu.memory_space<vmem>>, %arg4: memref<1x128xf32, #tpu.memory_space<vmem>>, %arg5: memref<1x128xf32, #tpu.memory_space<vmem>>, %arg6: memref<1x128xf32, #tpu.memory_space<vmem>>, %arg7: memref<1x128xf32, #tpu.memory_space<vmem>>, %arg8: memref<128x128xbf16, #tpu.memory_space<vmem>>, %arg9: memref<1x128xf32, #tpu.memory_space<vmem>>, %arg10: memref<2x128xf32, #tpu.memory_space<vmem>>, %arg11: memref<2x128xf32, #tpu.memory_space<vmem>>, %arg12: memref<8x128xf32, #tpu.memory_space<vmem>>) attributes {dimension_semantics = [#tpu.dimension_semantics<arbitrary>], iteration_bounds = array<i64: 1>, scalar_prefetch = 0 : i64, scratch_operands = 1 : i64, tpu.core_type = #tpu.core_type<tc>, window_params = [{transform_indices = @transform_0, window_bounds = array<i64: 4, 8, 384>}, {pipeline_mode = #tpu.pipeline_mode<synchronous>, transform_indices = @transform_1, window_bounds = array<i64: 128, 256>}, {pipeline_mode = #tpu.pipeline_mode<synchronous>, transform_indices = @transform_2, window_bounds = array<i64: 128, 128>}, {pipeline_mode = #tpu.pipeline_mode<synchronous>, transform_indices = @transform_3, window_bounds = array<i64: 1, 128>}, {pipeline_mode = #tpu.pipeline_mode<synchronous>, transform_indices = @transform_4, window_bounds = array<i64: 1, 128>}, {pipeline_mode = #tpu.pipeline_mode<synchronous>, transform_indices = @transform_5, window_bounds = array<i64: 1, 128>}, {pipeline_mode = #tpu.pipeline_mode<synchronous>, transform_indices = @transform_6, window_bounds = array<i64: 1, 128>}, {pipeline_mode = #tpu.pipeline_mode<synchronous>, transform_indices = @transform_7, window_bounds = array<i64: 128, 128>}, {pipeline_mode = #tpu.pipeline_mode<synchronous>, transform_indices = @transform_8, window_bounds = array<i64: 1, 128>}, {pipeline_mode = #tpu.pipeline_mode<synchronous>, transform_indices = @transform_9, window_bounds = array<i64: 2, 128>}, {pipeline_mode = #tpu.pipeline_mode<synchronous>, transform_indices = @transform_10, window_bounds = array<i64: 2, 128>}]} {
    %c0_i32 = arith.constant 0 : i32
    %0 = arith.cmpi eq, %arg0, %c0_i32 : i32
    %1 = arith.extui %0 : i1 to i32
    %c0_i32_0 = arith.constant 0 : i32
    %2 = arith.cmpi ne, %1, %c0_i32_0 : i32
    scf.if %2 {
      %cst_38 = arith.constant 0.000000e+00 : f32
      %138 = vector.broadcast %cst_38 : f32 to vector<8x128xf32>
      %c0_39 = arith.constant 0 : index
      %c0_40 = arith.constant 0 : index
      %139 = vector.load %arg12[%c0_39, %c0_40] : memref<8x128xf32, #tpu.memory_space<vmem>>, vector<8x128xf32>
      tpu.vector_store %arg12[%c0_39, %c0_40], %138 {strides = array<i32>} : memref<8x128xf32, #tpu.memory_space<vmem>>, vector<8x128xf32>,
    } else {
    }
    %c0 = arith.constant 0 : index
    %c0_1 = arith.constant 0 : index
    %3 = vector.load %arg2[%c0, %c0_1] : memref<128x256xbf16, #tpu.memory_space<vmem>>, vector<128x256xbf16>
    %c0_2 = arith.constant 0 : index
    %c0_3 = arith.constant 0 : index
    %4 = vector.load %arg3[%c0_2, %c0_3] : memref<128x128xbf16, #tpu.memory_space<vmem>>, vector<128x128xbf16>
    %c0_4 = arith.constant 0 : index
    %c0_5 = arith.constant 0 : index
    %5 = vector.load %arg12[%c0_4, %c0_5] : memref<8x128xf32, #tpu.memory_space<vmem>>, vector<8x128xf32>
    %c0_i32_6 = arith.constant 0 : i32
    %6 = arith.index_cast %c0_i32_6 : i32 to index
    %c0_7 = arith.constant 0 : index
    %c0_8 = arith.constant 0 : index
    %7 = vector.load %arg1[%6, %c0_7, %c0_8] : memref<4x8x384xf32, #tpu.memory_space<vmem>>, vector<1x8x384xf32>
    %8 = vector.shape_cast %7 : vector<1x8x384xf32> to vector<8x384xf32>
    %9 = arith.truncf %5 : vector<8x128xf32> to vector<8x128xbf16>
    %cst = arith.constant dense<0.000000e+00> : vector<8x256xf32>
    %10 = tpu.matmul %9, %3, %cst {dimension_numbers = #tpu.dot_dimension_numbers<[1], [0], [0], [1], [0, 0, 1, 1], [], []>} : vector<8x128xbf16>, vector<128x256xbf16>, vector<8x256xf32> -> vector<8x256xf32>
    %11 = vector.extract_strided_slice %8 {offsets = [0, 0], sizes = [8, 128], strides = [1, 1]} : vector<8x384xf32> to vector<8x128xf32>
    %12 = vector.extract_strided_slice %10 {offsets = [0, 0], sizes = [8, 128], strides = [1, 1]} : vector<8x256xf32> to vector<8x128xf32>
    %13 = arith.addf %11, %12 : vector<8x128xf32>
    %14 = arith.negf %13 : vector<8x128xf32>
    %15 = math.exp %14 : vector<8x128xf32>
    %cst_9 = arith.constant 1.000000e+00 : f32
    %16 = vector.broadcast %cst_9 : f32 to vector<8x128xf32>
    %17 = arith.addf %16, %15 : vector<8x128xf32>
    %18 = arith.divf %16, %17 : vector<8x128xf32>
    %19 = vector.extract_strided_slice %8 {offsets = [0, 128], sizes = [8, 128], strides = [1, 1]} : vector<8x384xf32> to vector<8x128xf32>
    %20 = vector.extract_strided_slice %10 {offsets = [0, 128], sizes = [8, 128], strides = [1, 1]} : vector<8x256xf32> to vector<8x128xf32>
    %21 = arith.addf %19, %20 : vector<8x128xf32>
    %22 = arith.negf %21 : vector<8x128xf32>
    %23 = math.exp %22 : vector<8x128xf32>
    %cst_10 = arith.constant 1.000000e+00 : f32
    %24 = vector.broadcast %cst_10 : f32 to vector<8x128xf32>
    %25 = arith.addf %24, %23 : vector<8x128xf32>
    %26 = arith.divf %24, %25 : vector<8x128xf32>
    %27 = vector.extract_strided_slice %8 {offsets = [0, 256], sizes = [8, 128], strides = [1, 1]} : vector<8x384xf32> to vector<8x128xf32>
    %28 = arith.mulf %5, %18 : vector<8x128xf32>
    %29 = arith.truncf %28 : vector<8x128xf32> to vector<8x128xbf16>
    %cst_11 = arith.constant dense<0.000000e+00> : vector<8x128xf32>
    %30 = tpu.matmul %29, %4, %cst_11 {dimension_numbers = #tpu.dot_dimension_numbers<[1], [0], [0], [1], [0, 0, 1, 1], [], []>} : vector<8x128xbf16>, vector<128x128xbf16>, vector<8x128xf32> -> vector<8x128xf32>
    %31 = arith.addf %27, %30 : vector<8x128xf32>
    %32 = math.tanh %31 : vector<8x128xf32>
    %cst_12 = arith.constant 1.000000e+00 : f32
    %33 = vector.broadcast %cst_12 : f32 to vector<8x128xf32>
    %34 = arith.subf %33, %26 : vector<8x128xf32>
    %35 = arith.mulf %5, %34 : vector<8x128xf32>
    %36 = arith.mulf %32, %26 : vector<8x128xf32>
    %37 = arith.addf %35, %36 : vector<8x128xf32>
    %c1_i32 = arith.constant 1 : i32
    %38 = arith.index_cast %c1_i32 : i32 to index
    %c0_13 = arith.constant 0 : index
    %c0_14 = arith.constant 0 : index
    %39 = vector.load %arg1[%38, %c0_13, %c0_14] : memref<4x8x384xf32, #tpu.memory_space<vmem>>, vector<1x8x384xf32>
    %40 = vector.shape_cast %39 : vector<1x8x384xf32> to vector<8x384xf32>
    %41 = arith.truncf %37 : vector<8x128xf32> to vector<8x128xbf16>
    %cst_15 = arith.constant dense<0.000000e+00> : vector<8x256xf32>
    %42 = tpu.matmul %41, %3, %cst_15 {dimension_numbers = #tpu.dot_dimension_numbers<[1], [0], [0], [1], [0, 0, 1, 1], [], []>} : vector<8x128xbf16>, vector<128x256xbf16>, vector<8x256xf32> -> vector<8x256xf32>
    %43 = vector.extract_strided_slice %40 {offsets = [0, 0], sizes = [8, 128], strides = [1, 1]} : vector<8x384xf32> to vector<8x128xf32>
    %44 = vector.extract_strided_slice %42 {offsets = [0, 0], sizes = [8, 128], strides = [1, 1]} : vector<8x256xf32> to vector<8x128xf32>
    %45 = arith.addf %43, %44 : vector<8x128xf32>
    %46 = arith.negf %45 : vector<8x128xf32>
    %47 = math.exp %46 : vector<8x128xf32>
    %cst_16 = arith.constant 1.000000e+00 : f32
    %48 = vector.broadcast %cst_16 : f32 to vector<8x128xf32>
    %49 = arith.addf %48, %47 : vector<8x128xf32>
    %50 = arith.divf %48, %49 : vector<8x128xf32>
    %51 = vector.extract_strided_slice %40 {offsets = [0, 128], sizes = [8, 128], strides = [1, 1]} : vector<8x384xf32> to vector<8x128xf32>
    %52 = vector.extract_strided_slice %42 {offsets = [0, 128], sizes = [8, 128], strides = [1, 1]} : vector<8x256xf32> to vector<8x128xf32>
    %53 = arith.addf %51, %52 : vector<8x128xf32>
    %54 = arith.negf %53 : vector<8x128xf32>
    %55 = math.exp %54 : vector<8x128xf32>
    %cst_17 = arith.constant 1.000000e+00 : f32
    %56 = vector.broadcast %cst_17 : f32 to vector<8x128xf32>
    %57 = arith.addf %56, %55 : vector<8x128xf32>
    %58 = arith.divf %56, %57 : vector<8x128xf32>
    %59 = vector.extract_strided_slice %40 {offsets = [0, 256], sizes = [8, 128], strides = [1, 1]} : vector<8x384xf32> to vector<8x128xf32>
    %60 = arith.mulf %37, %50 : vector<8x128xf32>
    %61 = arith.truncf %60 : vector<8x128xf32> to vector<8x128xbf16>
    %cst_18 = arith.constant dense<0.000000e+00> : vector<8x128xf32>
    %62 = tpu.matmul %61, %4, %cst_18 {dimension_numbers = #tpu.dot_dimension_numbers<[1], [0], [0], [1], [0, 0, 1, 1], [], []>} : vector<8x128xbf16>, vector<128x128xbf16>, vector<8x128xf32> -> vector<8x128xf32>
    %63 = arith.addf %59, %62 : vector<8x128xf32>
    %64 = math.tanh %63 : vector<8x128xf32>
    %cst_19 = arith.constant 1.000000e+00 : f32
    %65 = vector.broadcast %cst_19 : f32 to vector<8x128xf32>
    %66 = arith.subf %65, %58 : vector<8x128xf32>
    %67 = arith.mulf %37, %66 : vector<8x128xf32>
    %68 = arith.mulf %64, %58 : vector<8x128xf32>
    %69 = arith.addf %67, %68 : vector<8x128xf32>
    %c2_i32 = arith.constant 2 : i32
    %70 = arith.index_cast %c2_i32 : i32 to index
    %c0_20 = arith.constant 0 : index
    %c0_21 = arith.constant 0 : index
    %71 = vector.load %arg1[%70, %c0_20, %c0_21] : memref<4x8x384xf32, #tpu.memory_space<vmem>>, vector<1x8x384xf32>
    %72 = vector.shape_cast %71 : vector<1x8x384xf32> to vector<8x384xf32>
    %73 = arith.truncf %69 : vector<8x128xf32> to vector<8x128xbf16>
    %cst_22 = arith.constant dense<0.000000e+00> : vector<8x256xf32>
    %74 = tpu.matmul %73, %3, %cst_22 {dimension_numbers = #tpu.dot_dimension_numbers<[1], [0], [0], [1], [0, 0, 1, 1], [], []>} : vector<8x128xbf16>, vector<128x256xbf16>, vector<8x256xf32> -> vector<8x256xf32>
    %75 = vector.extract_strided_slice %72 {offsets = [0, 0], sizes = [8, 128], strides = [1, 1]} : vector<8x384xf32> to vector<8x128xf32>
    %76 = vector.extract_strided_slice %74 {offsets = [0, 0], sizes = [8, 128], strides = [1, 1]} : vector<8x256xf32> to vector<8x128xf32>
    %77 = arith.addf %75, %76 : vector<8x128xf32>
    %78 = arith.negf %77 : vector<8x128xf32>
    %79 = math.exp %78 : vector<8x128xf32>
    %cst_23 = arith.constant 1.000000e+00 : f32
    %80 = vector.broadcast %cst_23 : f32 to vector<8x128xf32>
    %81 = arith.addf %80, %79 : vector<8x128xf32>
    %82 = arith.divf %80, %81 : vector<8x128xf32>
    %83 = vector.extract_strided_slice %72 {offsets = [0, 128], sizes = [8, 128], strides = [1, 1]} : vector<8x384xf32> to vector<8x128xf32>
    %84 = vector.extract_strided_slice %74 {offsets = [0, 128], sizes = [8, 128], strides = [1, 1]} : vector<8x256xf32> to vector<8x128xf32>
    %85 = arith.addf %83, %84 : vector<8x128xf32>
    %86 = arith.negf %85 : vector<8x128xf32>
    %87 = math.exp %86 : vector<8x128xf32>
    %cst_24 = arith.constant 1.000000e+00 : f32
    %88 = vector.broadcast %cst_24 : f32 to vector<8x128xf32>
    %89 = arith.addf %88, %87 : vector<8x128xf32>
    %90 = arith.divf %88, %89 : vector<8x128xf32>
    %91 = vector.extract_strided_slice %72 {offsets = [0, 256], sizes = [8, 128], strides = [1, 1]} : vector<8x384xf32> to vector<8x128xf32>
    %92 = arith.mulf %69, %82 : vector<8x128xf32>
    %93 = arith.truncf %92 : vector<8x128xf32> to vector<8x128xbf16>
    %cst_25 = arith.constant dense<0.000000e+00> : vector<8x128xf32>
    %94 = tpu.matmul %93, %4, %cst_25 {dimension_numbers = #tpu.dot_dimension_numbers<[1], [0], [0], [1], [0, 0, 1, 1], [], []>} : vector<8x128xbf16>, vector<128x128xbf16>, vector<8x128xf32> -> vector<8x128xf32>
    %95 = arith.addf %91, %94 : vector<8x128xf32>
    %96 = math.tanh %95 : vector<8x128xf32>
    %cst_26 = arith.constant 1.000000e+00 : f32
    %97 = vector.broadcast %cst_26 : f32 to vector<8x128xf32>
    %98 = arith.subf %97, %90 : vector<8x128xf32>
    %99 = arith.mulf %69, %98 : vector<8x128xf32>
    %100 = arith.mulf %96, %90 : vector<8x128xf32>
    %101 = arith.addf %99, %100 : vector<8x128xf32>
    %c3_i32 = arith.constant 3 : i32
    %102 = arith.index_cast %c3_i32 : i32 to index
    %c0_27 = arith.constant 0 : index
    %c0_28 = arith.constant 0 : index
    %103 = vector.load %arg1[%102, %c0_27, %c0_28] : memref<4x8x384xf32, #tpu.memory_space<vmem>>, vector<1x8x384xf32>
    %104 = vector.shape_cast %103 : vector<1x8x384xf32> to vector<8x384xf32>
    %105 = arith.truncf %101 : vector<8x128xf32> to vector<8x128xbf16>
    %cst_29 = arith.constant dense<0.000000e+00> : vector<8x256xf32>
    %106 = tpu.matmul %105, %3, %cst_29 {dimension_numbers = #tpu.dot_dimension_numbers<[1], [0], [0], [1], [0, 0, 1, 1], [], []>} : vector<8x128xbf16>, vector<128x256xbf16>, vector<8x256xf32> -> vector<8x256xf32>
    %107 = vector.extract_strided_slice %104 {offsets = [0, 0], sizes = [8, 128], strides = [1, 1]} : vector<8x384xf32> to vector<8x128xf32>
    %108 = vector.extract_strided_slice %106 {offsets = [0, 0], sizes = [8, 128], strides = [1, 1]} : vector<8x256xf32> to vector<8x128xf32>
    %109 = arith.addf %107, %108 : vector<8x128xf32>
    %110 = arith.negf %109 : vector<8x128xf32>
    %111 = math.exp %110 : vector<8x128xf32>
    %cst_30 = arith.constant 1.000000e+00 : f32
    %112 = vector.broadcast %cst_30 : f32 to vector<8x128xf32>
    %113 = arith.addf %112, %111 : vector<8x128xf32>
    %114 = arith.divf %112, %113 : vector<8x128xf32>
    %115 = vector.extract_strided_slice %104 {offsets = [0, 128], sizes = [8, 128], strides = [1, 1]} : vector<8x384xf32> to vector<8x128xf32>
    %116 = vector.extract_strided_slice %106 {offsets = [0, 128], sizes = [8, 128], strides = [1, 1]} : vector<8x256xf32> to vector<8x128xf32>
    %117 = arith.addf %115, %116 : vector<8x128xf32>
    %118 = arith.negf %117 : vector<8x128xf32>
    %119 = math.exp %118 : vector<8x128xf32>
    %cst_31 = arith.constant 1.000000e+00 : f32
    %120 = vector.broadcast %cst_31 : f32 to vector<8x128xf32>
    %121 = arith.addf %120, %119 : vector<8x128xf32>
    %122 = arith.divf %120, %121 : vector<8x128xf32>
    %123 = vector.extract_strided_slice %104 {offsets = [0, 256], sizes = [8, 128], strides = [1, 1]} : vector<8x384xf32> to vector<8x128xf32>
    %124 = arith.mulf %101, %114 : vector<8x128xf32>
    %125 = arith.truncf %124 : vector<8x128xf32> to vector<8x128xbf16>
    %cst_32 = arith.constant dense<0.000000e+00> : vector<8x128xf32>
    %126 = tpu.matmul %125, %4, %cst_32 {dimension_numbers = #tpu.dot_dimension_numbers<[1], [0], [0], [1], [0, 0, 1, 1], [], []>} : vector<8x128xbf16>, vector<128x128xbf16>, vector<8x128xf32> -> vector<8x128xf32>
    %127 = arith.addf %123, %126 : vector<8x128xf32>
    %128 = math.tanh %127 : vector<8x128xf32>
    %cst_33 = arith.constant 1.000000e+00 : f32
    %129 = vector.broadcast %cst_33 : f32 to vector<8x128xf32>
    %130 = arith.subf %129, %122 : vector<8x128xf32>
    %131 = arith.mulf %101, %130 : vector<8x128xf32>
    %132 = arith.mulf %128, %122 : vector<8x128xf32>
    %133 = arith.addf %131, %132 : vector<8x128xf32>
    %c4_i32 = arith.constant 4 : i32
    %c0_34 = arith.constant 0 : index
    %c0_35 = arith.constant 0 : index
    %134 = vector.load %arg12[%c0_34, %c0_35] : memref<8x128xf32, #tpu.memory_space<vmem>>, vector<8x128xf32>
    tpu.vector_store %arg12[%c0_34, %c0_35], %133 {strides = array<i32>} : memref<8x128xf32, #tpu.memory_space<vmem>>, vector<8x128xf32>,
    %c0_i32_36 = arith.constant 0 : i32
    %135 = arith.cmpi eq, %arg0, %c0_i32_36 : i32
    %136 = arith.extui %135 : i1 to i32
    %c0_i32_37 = arith.constant 0 : i32
    %137 = arith.cmpi ne, %136, %c0_i32_37 : i32
    scf.if %137 {
      %138 = vector.shape_cast %133 : vector<8x128xf32> to vector<2x4x128xf32>
      %cst_38 = arith.constant dense<0.000000e+00> : vector<2x128xf32>
      %139 = vector.multi_reduction <add>, %138, %cst_38 [1] : vector<2x4x128xf32> to vector<2x128xf32>
      %cst_39 = arith.constant 2.500000e-01 : f32
      %140 = vector.broadcast %cst_39 : f32 to vector<2x128xf32>
      %141 = arith.mulf %139, %140 : vector<2x128xf32>
      %c0_40 = arith.constant 0 : index
      %c0_41 = arith.constant 0 : index
      %142 = vector.load %arg7[%c0_40, %c0_41] : memref<1x128xf32, #tpu.memory_space<vmem>>, vector<1x128xf32>
      %cst_42 = arith.constant 9.99999974E-6 : f32
      %143 = vector.broadcast %cst_42 : f32 to vector<1x128xf32>
      %144 = arith.addf %142, %143 : vector<1x128xf32>
      %145 = math.rsqrt %144 : vector<1x128xf32>
      %c0_43 = arith.constant 0 : index
      %c0_44 = arith.constant 0 : index
      %146 = vector.load %arg6[%c0_43, %c0_44] : memref<1x128xf32, #tpu.memory_space<vmem>>, vector<1x128xf32>
      %147 = vector.broadcast %146 : vector<1x128xf32> to vector<2x128xf32>
      %148 = arith.subf %141, %147 : vector<2x128xf32>
      %149 = vector.broadcast %145 : vector<1x128xf32> to vector<2x128xf32>
      %150 = arith.mulf %148, %149 : vector<2x128xf32>
      %c0_45 = arith.constant 0 : index
      %c0_46 = arith.constant 0 : index
      %151 = vector.load %arg4[%c0_45, %c0_46] : memref<1x128xf32, #tpu.memory_space<vmem>>, vector<1x128xf32>
      %152 = vector.broadcast %151 : vector<1x128xf32> to vector<2x128xf32>
      %153 = arith.mulf %150, %152 : vector<2x128xf32>
      %c0_47 = arith.constant 0 : index
      %c0_48 = arith.constant 0 : index
      %154 = vector.load %arg5[%c0_47, %c0_48] : memref<1x128xf32, #tpu.memory_space<vmem>>, vector<1x128xf32>
      %155 = vector.broadcast %154 : vector<1x128xf32> to vector<2x128xf32>
      %156 = arith.addf %153, %155 : vector<2x128xf32>
      %c0_49 = arith.constant 0 : index
      %c0_50 = arith.constant 0 : index
      %157 = vector.load %arg11[%c0_49, %c0_50] : memref<2x128xf32, #tpu.memory_space<vmem>>, vector<2x128xf32>
      tpu.vector_store %arg11[%c0_49, %c0_50], %156 {strides = array<i32>} : memref<2x128xf32, #tpu.memory_space<vmem>>, vector<2x128xf32>,
      %158 = arith.truncf %156 : vector<2x128xf32> to vector<2x128xbf16>
      %c0_51 = arith.constant 0 : index
      %c0_52 = arith.constant 0 : index
      %159 = vector.load %arg8[%c0_51, %c0_52] : memref<128x128xbf16, #tpu.memory_space<vmem>>, vector<128x128xbf16>
      %cst_53 = arith.constant dense<0.000000e+00> : vector<2x128xf32>
      %160 = tpu.matmul %158, %159, %cst_53 {dimension_numbers = #tpu.dot_dimension_numbers<[1], [0], [0], [1], [0, 0, 1, 1], [], []>} : vector<2x128xbf16>, vector<128x128xbf16>, vector<2x128xf32> -> vector<2x128xf32>
      %c0_54 = arith.constant 0 : index
      %c0_55 = arith.constant 0 : index
      %161 = vector.load %arg9[%c0_54, %c0_55] : memref<1x128xf32, #tpu.memory_space<vmem>>, vector<1x128xf32>
      %162 = vector.broadcast %161 : vector<1x128xf32> to vector<2x128xf32>
      %163 = arith.addf %160, %162 : vector<2x128xf32>
      %c0_56 = arith.constant 0 : index
      %c0_57 = arith.constant 0 : index
      %164 = vector.load %arg10[%c0_56, %c0_57] : memref<2x128xf32, #tpu.memory_space<vmem>>, vector<2x128xf32>
      tpu.vector_store %arg10[%c0_56, %c0_57], %163 {strides = array<i32>} : memref<2x128xf32, #tpu.memory_space<vmem>>, vector<2x128xf32>,
    } else {
    }
    return
  }
  func.func @transform_0(%arg0: i32) -> (i32, i32, i32) {
    %c0_i32 = arith.constant 0 : i32
    %c0_i32_0 = arith.constant 0 : i32
    %c0_i32_1 = arith.constant 0 : i32
    return %arg0, %c0_i32, %c0_i32_0 : i32, i32, i32
  }
  func.func @transform_1(%arg0: i32) -> (i32, i32) {
    %c0_i32 = arith.constant 0 : i32
    %c0_i32_0 = arith.constant 0 : i32
    %c0_i32_1 = arith.constant 0 : i32
    return %c0_i32, %c0_i32_0 : i32, i32
  }
  func.func @transform_2(%arg0: i32) -> (i32, i32) {
    %c0_i32 = arith.constant 0 : i32
    %c0_i32_0 = arith.constant 0 : i32
    %c0_i32_1 = arith.constant 0 : i32
    return %c0_i32, %c0_i32_0 : i32, i32
  }
  func.func @transform_3(%arg0: i32) -> (i32, i32) {
    %c0_i32 = arith.constant 0 : i32
    %c0_i32_0 = arith.constant 0 : i32
    %c0_i32_1 = arith.constant 0 : i32
    return %c0_i32, %c0_i32_0 : i32, i32
  }
  func.func @transform_4(%arg0: i32) -> (i32, i32) {
    %c0_i32 = arith.constant 0 : i32
    %c0_i32_0 = arith.constant 0 : i32
    %c0_i32_1 = arith.constant 0 : i32
    return %c0_i32, %c0_i32_0 : i32, i32
  }
  func.func @transform_5(%arg0: i32) -> (i32, i32) {
    %c0_i32 = arith.constant 0 : i32
    %c0_i32_0 = arith.constant 0 : i32
    %c0_i32_1 = arith.constant 0 : i32
    return %c0_i32, %c0_i32_0 : i32, i32
  }
  func.func @transform_6(%arg0: i32) -> (i32, i32) {
    %c0_i32 = arith.constant 0 : i32
    %c0_i32_0 = arith.constant 0 : i32
    %c0_i32_1 = arith.constant 0 : i32
    return %c0_i32, %c0_i32_0 : i32, i32
  }
  func.func @transform_7(%arg0: i32) -> (i32, i32) {
    %c0_i32 = arith.constant 0 : i32
    %c0_i32_0 = arith.constant 0 : i32
    %c0_i32_1 = arith.constant 0 : i32
    return %c0_i32, %c0_i32_0 : i32, i32
  }
  func.func @transform_8(%arg0: i32) -> (i32, i32) {
    %c0_i32 = arith.constant 0 : i32
    %c0_i32_0 = arith.constant 0 : i32
    %c0_i32_1 = arith.constant 0 : i32
    return %c0_i32, %c0_i32_0 : i32, i32
  }
  func.func @transform_9(%arg0: i32) -> (i32, i32) {
    %c0_i32 = arith.constant 0 : i32
    %c0_i32_0 = arith.constant 0 : i32
    %c0_i32_1 = arith.constant 0 : i32
    return %c0_i32, %c0_i32_0 : i32, i32
  }
  func.func @transform_10(%arg0: i32) -> (i32, i32) {
    %c0_i32 = arith.constant 0 : i32
    %c0_i32_0 = arith.constant 0 : i32
    %c0_i32_1 = arith.constant 0 : i32
    return %c0_i32, %c0_i32_0 : i32, i32
  }
}

</mosaic_0001>

<llo_original>
// kernel: lc_rnn_forward.2
$region0: #{lc_rnn_forward.2}
  #allocation0 [shape = 'u32[]', space=smem, size = 0x4, offset = 0x4, fixed_abs, tag = 'smem constant byte address 0x4 - core index']
  #allocation1 [shape = 'u32[144,128]{1,0:T(1,128)}', space=vmem, size = 0x12000, scoped, tag = 'internal scratch']
  #allocation2 [shape = 'f32[8,128]{1,0:T(8,128)}', space=vmem, size = 0x1000, scoped, tag = 'scratch operand']
  #allocation3 [shape = 'f32[8,128]{1,0:T(8,128)}', space=vmem, size = 0x1000, scoped, tag = 'scratch operand']
  %s0 = inlined_call_operand.vmem [shape: bf16[4,2,8,12288], index: 0, kind: input, shape index: {}]
  %s1 = inlined_call_operand.vmem [shape: bf16[12288,128], index: 1, kind: input, shape index: {}]
  %s2 = inlined_call_operand.vmem [shape: bf16[128,384], index: 2, kind: input, shape index: {}]
  %s3 = inlined_call_operand.vmem [shape: f32[1,384], index: 3, kind: input, shape index: {}]
  %s4 = inlined_call_operand.vmem [shape: f32[4,8,384], index: 4, kind: output, shape index: {}]
  %s5 = sld [smem:[#allocation0]]
  $region65: #{lc_rnn_forward.2} parent=0
    _
  %s7 = ssub.s32 1, %s5
  %s8 = scalar_select 0, %s7, %s5
  loop: start=0, step=1, limit=50
  $region2: #{lc_rnn_forward.2} parent=0 // loop_pre_header
    _
  $region3: #{lc_rnn_forward.2} parent=0 // loop_header
    %s10 = sphi 0, %s14
    %p11 = scmp.ge.s32.totalorder %s10, 50
    %s17 = sphi 0, %s43
    %s18 = sphi 0, %s39
    %s19 = sphi 0, %s35
    %s20 = sphi 0, %s31
    %s21 = sphi 0, %s17
    %s22 = sphi 0, %s18
    %s23 = sphi 0, %s19
    %s24 = sphi 0, %s20
    %s25 = sphi 0, %s21
    %s26 = sphi 0, %s22
    %s27 = sphi 0, %s23
    %s28 = sphi 0, %s24
    %s52 = sphi 0, %s54
    %s55 = sphi 0, %s52
    %s56 = sphi 0, %s55
    %s72 = sphi 0, %s56
    %s78 = sphi 0, %s80
    %s81 = sphi 0, %s78
    %s82 = sphi 0, %s81
    %s98 = sphi 0, %s82
    %s102 = sphi 0, %s102
    %s104 = sphi 0, %s102
    %s105 = sphi 0, %s104
    %s119 = sphi 0, %s105
    %s123 = sphi 0, %s123
    %s125 = sphi 0, %s123
    %s126 = sphi 0, %s125
    %s140 = sphi 0, %s126
    %s148 = sphi 0, %s150
    %s151 = sphi 0, %s148
    %s152 = sphi 0, %s151
    %s168 = sphi 0, %s152
  $region4: #{lc_rnn_forward.2} parent=0 // loop_header_branch
    %13 = sbr.rel (%p11) target = $region8
  $region5: #{lc_rnn_forward.2} parent=0 // loop_body
    %s15 = ssub.s32 %s10, 1
    %s16 = ssub.s32 %s10, 2
    %s29 = sadd.s32 1, %s20
    %p30 = scmp.ge.s32.totalorder %s29, 6
    %s31 = scalar_select %p30, 0, %s29
    %s32 = sadd.s32 1, %s19
    %s33 = scalar_select %p30, %s32, %s19
    %p34 = scmp.ge.s32.totalorder %s33, 2
    %s35 = scalar_select %p34, 0, %s33
    %s36 = sadd.s32 1, %s18
    %s37 = scalar_select %p34, %s36, %s18
    %p38 = scmp.ge.s32.totalorder %s37, 1
    %s39 = scalar_select %p38, 0, %s37
    %s40 = sadd.s32 1, %s17
    %s41 = scalar_select %p38, %s40, %s17
    %p42 = scmp.ge.s32.totalorder %s41, 4
    %s43 = scalar_select %p42, 0, %s41
    %s44 = ssub.s32 %s17, %s43
    %s45 = ssub.s32 %s19, %s35
    %s46 = sor.u32 %s44, %s45
    %s47 = ssub.s32 %s18, %s39
    %s48 = sor.u32 %s46, %s47
    %s49 = ssub.s32 %s20, %s31
    %s50 = sor.u32 %s48, %s49
    %p51 = scmp.eq.s32.totalorder %s50, 0
    %s53 = sadd.s32 %s52, 1
    %s54 = scalar_select %p51, %s52, %s53
    %p57 = pneg %p51
    %p58 = scmp.eq.s32.totalorder %s10, 47
    %p59 = por %p57, %p58
    %p60 = scmp.ne.s32.totalorder %s52, %s55
    %p61 = scmp.eq.s32.totalorder %s10, 0
    %p62 = por %p60, %p61
    %p63 = scmp.ne.s32.totalorder %s52, %s55
    %p64 = scmp.eq.s32.totalorder %s15, 47
    %p65 = por %p63, %p64
    %p66 = scmp.ne.s32.totalorder %s55, %s56
    %p67 = scmp.eq.s32.totalorder %s15, 0
    %p68 = por %p66, %p67
    %p69 = scmp.ne.s32.totalorder %s55, %s56
    %p70 = scmp.eq.s32.totalorder %s16, 47
    %p71 = por %p69, %p70
    %p73 = scmp.ne.s32.totalorder %s56, %s72
    %p74 = scmp.eq.s32.totalorder %s16, 0
    %p75 = por %p73, %p74
    %s76 = ssub.s32 %s20, %s31
    %p77 = scmp.eq.s32.totalorder %s76, 0
    %s79 = sadd.s32 %s78, 1
    %s80 = scalar_select %p77, %s78, %s79
    %p83 = pneg %p77
    %p84 = scmp.eq.s32.totalorder %s10, 47
    %p85 = por %p83, %p84
    %p86 = scmp.ne.s32.totalorder %s78, %s81
    %p87 = scmp.eq.s32.totalorder %s10, 0
    %p88 = por %p86, %p87
    %p89 = scmp.ne.s32.totalorder %s78, %s81
    %p90 = scmp.eq.s32.totalorder %s15, 47
    %p91 = por %p89, %p90
    %p92 = scmp.ne.s32.totalorder %s81, %s82
    %p93 = scmp.eq.s32.totalorder %s15, 0
    %p94 = por %p92, %p93
    %p95 = scmp.ne.s32.totalorder %s81, %s82
    %p96 = scmp.eq.s32.totalorder %s16, 47
    %p97 = por %p95, %p96
    %p99 = scmp.ne.s32.totalorder %s82, %s98
    %p100 = scmp.eq.s32.totalorder %s16, 0
    %p101 = por %p99, %p100
    %s103 = sadd.s32 %s102, 1
    %p106 = scmp.eq.s32.totalorder %s10, 47
    %p107 = scmp.ne.s32.totalorder %s102, %s104
    %p108 = scmp.eq.s32.totalorder %s10, 0
    %p109 = por %p107, %p108
    %p110 = scmp.ne.s32.totalorder %s102, %s104
    %p111 = scmp.eq.s32.totalorder %s15, 47
    %p112 = por %p110, %p111
    %p113 = scmp.ne.s32.totalorder %s104, %s105
    %p114 = scmp.eq.s32.totalorder %s15, 0
    %p115 = por %p113, %p114
    %p116 = scmp.ne.s32.totalorder %s104, %s105
    %p117 = scmp.eq.s32.totalorder %s16, 47
    %p118 = por %p116, %p117
    %p120 = scmp.ne.s32.totalorder %s105, %s119
    %p121 = scmp.eq.s32.totalorder %s16, 0
    %p122 = por %p120, %p121
    %s124 = sadd.s32 %s123, 1
    %p127 = scmp.eq.s32.totalorder %s10, 47
    %p128 = scmp.ne.s32.totalorder %s123, %s125
    %p129 = scmp.eq.s32.totalorder %s10, 0
    %p130 = por %p128, %p129
    %p131 = scmp.ne.s32.totalorder %s123, %s125
    %p132 = scmp.eq.s32.totalorder %s15, 47
    %p133 = por %p131, %p132
    %p134 = scmp.ne.s32.totalorder %s125, %s126
    %p135 = scmp.eq.s32.totalorder %s15, 0
    %p136 = por %p134, %p135
    %p137 = scmp.ne.s32.totalorder %s125, %s126
    %p138 = scmp.eq.s32.totalorder %s16, 47
    %p139 = por %p137, %p138
    %p141 = scmp.ne.s32.totalorder %s126, %s140
    %p142 = scmp.eq.s32.totalorder %s16, 0
    %p143 = por %p141, %p142
    %s144 = ssub.s32 %s17, %s43
    %s145 = ssub.s32 %s18, %s39
    %s146 = sor.u32 %s144, %s145
    %p147 = scmp.eq.s32.totalorder %s146, 0
    %s149 = sadd.s32 %s148, 1
    %s150 = scalar_select %p147, %s148, %s149
    %p153 = pneg %p147
    %p154 = scmp.eq.s32.totalorder %s10, 47
    %p155 = por %p153, %p154
    %p156 = scmp.ne.s32.totalorder %s148, %s151
    %p157 = scmp.eq.s32.totalorder %s10, 0
    %p158 = por %p156, %p157
    %p159 = scmp.ne.s32.totalorder %s148, %s151
    %p160 = scmp.eq.s32.totalorder %s15, 47
    %p161 = por %p159, %p160
    %p162 = scmp.ne.s32.totalorder %s151, %s152
    %p163 = scmp.eq.s32.totalorder %s15, 0
    %p164 = por %p162, %p163
    %p165 = scmp.ne.s32.totalorder %s151, %s152
    %p166 = scmp.eq.s32.totalorder %s16, 47
    %p167 = por %p165, %p166
    %p169 = scmp.ne.s32.totalorder %s152, %s168
    %p170 = scmp.eq.s32.totalorder %s16, 0
    %p171 = por %p169, %p170
    %p172 = scmp.le.s32.totalorder 1, %s10
    %p173 = scmp.lt.s32.totalorder %s10, 49
    %p174 = pnand %p172, %p173
    %p175 = pneg %p174
    // Predicated region
    $region9: #{lc_rnn_forward.2} parent=5 // pred_check
      _
    $region10: #{lc_rnn_forward.2} parent=5 // pred_check_branch
      %177 = sbr.rel (%p174) target = $region12
    $region11: #{lc_rnn_forward.2} parent=5 // pred_region
      %s178 = ssub.s32 %s10, 1
      // Predicated region
      $region13: #{lc_rnn_forward.2} parent=11 // pred_check
        %p179 = pneg %p115
      $region14: #{lc_rnn_forward.2} parent=11 // pred_check_branch
        %181 = sbr.rel (%p179) target = $region16
      $region15: #{lc_rnn_forward.2} parent=11 // pred_region
        _
      $region16: #{lc_rnn_forward.2} parent=11 // pred_fallthru
        _
      // Predicated region
      $region17: #{lc_rnn_forward.2} parent=11 // pred_check
        %p182 = pneg %p136
      $region18: #{lc_rnn_forward.2} parent=11 // pred_check_branch
        %184 = sbr.rel (%p182) target = $region20
      $region19: #{lc_rnn_forward.2} parent=11 // pred_region
        _
      $region20: #{lc_rnn_forward.2} parent=11 // pred_fallthru
        _
    $region12: #{lc_rnn_forward.2} parent=5 // pred_fallthru
      _
    %p185 = scmp.lt.s32.totalorder %s10, 48
    // Predicated region
    $region21: #{lc_rnn_forward.2} parent=5 // pred_check
      %p186 = pneg %p185
    $region22: #{lc_rnn_forward.2} parent=5 // pred_check_branch
      %188 = sbr.rel (%p186) target = $region24
    $region23: #{lc_rnn_forward.2} parent=5 // pred_region
      // Predicated region
      $region25: #{lc_rnn_forward.2} parent=23 // pred_check
        %p189 = pneg %p62
      $region26: #{lc_rnn_forward.2} parent=23 // pred_check_branch
        %191 = sbr.rel (%p189) target = $region28
      $region27: #{lc_rnn_forward.2} parent=23 // pred_region
        %s192 = smul.u32 16, %s20
        %p193 = scmp.lt.s32.totalorder %s17, 3
        %s194 = scalar_select %p193, %s17, 3
        %p195 = scmp.lt.s32.totalorder %s19, 1
        %s196 = scalar_select %p195, %s19, 1
        %p197 = scmp.lt.s32.totalorder %s18, 0
        %s198 = scalar_select %p197, %s18, 0
        %p199 = scmp.lt.s32.totalorder %s192, 95
        %s200 = scalar_select %p199, %s192, 95
        %s201 = smul.addr %s198, 96
        %s202 = sadd.s32 %s200, %s201
        %s203 = smul.addr %s196, 96
        %s204 = sadd.s32 %s202, %s203
        %s205 = smul.addr %s194, 192
        %s206 = sadd.s32 %s204, %s205
        %s207 = smul.addr %s206, 4
        %s208 = scalar_lea.vmem %s0, %s207
        %s209 = smul.u32 16, %s20
      $region28: #{lc_rnn_forward.2} parent=23 // pred_fallthru
        _
      // Predicated region
      $region29: #{lc_rnn_forward.2} parent=23 // pred_check
        %p210 = pneg %p88
      $region30: #{lc_rnn_forward.2} parent=23 // pred_check_branch
        %212 = sbr.rel (%p210) target = $region32
      $region31: #{lc_rnn_forward.2} parent=23 // pred_region
        %s213 = smul.u32 256, %s20
        %p214 = scmp.lt.s32.totalorder %s213, 1535
        %s215 = scalar_select %p214, %s213, 1535
        %s216 = smul.addr %s215, 4
        %s217 = scalar_lea.vmem %s1, %s216
        %s218 = smul.u32 256, %s20
      $region32: #{lc_rnn_forward.2} parent=23 // pred_fallthru
        _
    $region24: #{lc_rnn_forward.2} parent=5 // pred_fallthru
      _
    %p219 = scmp.le.s32.totalorder 1, %s10
    %p220 = scmp.lt.s32.totalorder %s10, 49
    %p221 = pnand %p219, %p220
    %p222 = pneg %p221
    // Predicated region
    $region33: #{lc_rnn_forward.2} parent=5 // pred_check
      _
    $region34: #{lc_rnn_forward.2} parent=5 // pred_check_branch
      %224 = sbr.rel (%p221) target = $region36
    $region35: #{lc_rnn_forward.2} parent=5 // pred_region
      %s225 = ssub.s32 %s10, 1
      %s226 = smul.u32 16, %s24
      %p227 = scmp.lt.s32.totalorder %s21, 3
      %s228 = scalar_select %p227, %s21, 3
      %p229 = scmp.lt.s32.totalorder %s23, 1
      %s230 = scalar_select %p229, %s23, 1
      %p231 = scmp.lt.s32.totalorder %s22, 0
      %s232 = scalar_select %p231, %s22, 0
      %p233 = scmp.lt.s32.totalorder %s226, 95
      %s234 = scalar_select %p233, %s226, 95
      %s235 = smul.addr %s232, 96
      %s236 = sadd.s32 %s234, %s235
      %s237 = smul.addr %s230, 96
      %s238 = sadd.s32 %s236, %s237
      %s239 = smul.addr %s228, 192
      %s240 = sadd.s32 %s238, %s239
      %s241 = smul.addr %s240, 4
      %s242 = scalar_lea.vmem %s0, %s241
      %p243 = pneg %p68
      %p244 = pneg %p65
      %s245 = smul.u32 256, %s24
      %p246 = scmp.lt.s32.totalorder %s245, 1535
      %s247 = scalar_select %p246, %s245, 1535
      %s248 = smul.addr %s247, 4
      %s249 = scalar_lea.vmem %s1, %s248
      %p250 = pneg %p94
      %p251 = pneg %p91
      %p252 = pneg %p115
      %p253 = pneg %p112
      %p254 = pneg %p136
      %p255 = pneg %p133
      %p256 = pneg %p164
      %p257 = pneg %p161
      %p258 = scmp.lt.s32.totalorder %s21, 3
      %s259 = scalar_select %p258, %s21, 3
      %p260 = scmp.lt.s32.totalorder %s22, 0
      %s261 = scalar_select %p260, %s22, 0
      %s262 = smul.addr %s261, 3
      %s263 = smul.addr %s259, 3
      %s264 = sadd.s32 %s262, %s263
      %s265 = smul.addr %s264, 8
      %s266 = scalar_lea.vmem %s4, %s265
      %s267 = smul.u32 16, %s24
      %p268 = scmp.lt.s32.totalorder %s21, 3
      %s269 = scalar_select %p268, %s21, 3
      %p270 = scmp.lt.s32.totalorder %s23, 1
      %s271 = scalar_select %p270, %s23, 1
      %p272 = scmp.lt.s32.totalorder %s22, 0
      %s273 = scalar_select %p272, %s22, 0
      %p274 = scmp.lt.s32.totalorder %s267, 95
      %s275 = scalar_select %p274, %s267, 95
      %s276 = smul.addr %s273, 96
      %s277 = sadd.s32 %s275, %s276
      %s278 = smul.addr %s271, 96
      %s279 = sadd.s32 %s277, %s278
      %s280 = smul.addr %s269, 192
      %s281 = sadd.s32 %s279, %s280
      %s282 = smul.addr %s281, 4
      %s283 = scalar_lea.vmem %s0, %s282
      %s284 = smul.u32 16, %s24
      %s285 = smul.u32 256, %s24
      %p286 = scmp.lt.s32.totalorder %s285, 1535
      %s287 = scalar_select %p286, %s285, 1535
      %s288 = smul.addr %s287, 4
      %s289 = scalar_lea.vmem %s1, %s288
      %s290 = smul.u32 256, %s24
      %p291 = scmp.lt.s32.totalorder %s21, 3
      %s292 = scalar_select %p291, %s21, 3
      %p293 = scmp.lt.s32.totalorder %s22, 0
      %s294 = scalar_select %p293, %s22, 0
      %s295 = smul.addr %s294, 3
      %s296 = smul.addr %s292, 3
      %s297 = sadd.s32 %s295, %s296
      %s298 = smul.addr %s297, 8
      %s299 = scalar_lea.vmem %s4, %s298
      %p301 = scmp.eq.s32.totalorder %s23, 0
      %p302 = scmp.eq.s32.totalorder %s24, 0
      %p303 = pnand %p301, %p302
      %p304 = pneg %p303
      // Predicated region
      $region37: #{lc_rnn_forward.2} parent=35 // pred_check
        _
      $region38: #{lc_rnn_forward.2} parent=35 // pred_check_branch
        %306 = sbr.rel (%p303) target = $region40
      $region39: #{lc_rnn_forward.2} parent=35 // pred_region
        %307 = vst [vmem:[#allocation3] sm:$0xff] 0.0
      $region40: #{lc_rnn_forward.2} parent=35 // pred_fallthru
        _
      // Predicated region
      $region41: #{lc_rnn_forward.2} parent=35 // pred_check
        %p308 = pneg %p302
      $region42: #{lc_rnn_forward.2} parent=35 // pred_check_branch
        %310 = sbr.rel (%p308) target = $region44
      $region43: #{lc_rnn_forward.2} parent=35 // pred_region
        %311 = vst [vmem:[#allocation2] sm:$0xff] 0.0
      $region44: #{lc_rnn_forward.2} parent=35 // pred_fallthru
        _
      %v312 = vld [vmem:[#allocation2] sm:$0xff]
      %v313 = vld [vmem:[%s283] sm:$0xff]
      %v314 = vld [vmem:[%s283 + $0x8] sm:$0xff]
      %v315 = vld [vmem:[%s283 + $0x10] sm:$0xff]
      %v316 = vld [vmem:[%s283 + $0x18] sm:$0xff]
      %v317 = vld [vmem:[%s283 + $0x20] sm:$0xff]
      %v318 = vld [vmem:[%s283 + $0x28] sm:$0xff]
      %v319 = vld [vmem:[%s283 + $0x30] sm:$0xff]
      %v320 = vld [vmem:[%s283 + $0x38] sm:$0xff]
      %v321 = vld [vmem:[%s289] sm:$0xf]
      %v322 = vld [vmem:[%s289 + $0x4] sm:$0xf]
      %v323 = vld [vmem:[%s289 + $0x8] sm:$0xf]
      %v324 = vld [vmem:[%s289 + $0xc] sm:$0xf]
      %v325 = vld [vmem:[%s289 + $0x10] sm:$0xf]
      %v326 = vld [vmem:[%s289 + $0x14] sm:$0xf]
      %v327 = vld [vmem:[%s289 + $0x18] sm:$0xf]
      %v328 = vld [vmem:[%s289 + $0x1c] sm:$0xf]
      %v329 = vld [vmem:[%s289 + $0x20] sm:$0xf]
      %v330 = vld [vmem:[%s289 + $0x24] sm:$0xf]
      %v331 = vld [vmem:[%s289 + $0x28] sm:$0xf]
      %v332 = vld [vmem:[%s289 + $0x2c] sm:$0xf]
      %v333 = vld [vmem:[%s289 + $0x30] sm:$0xf]
      %v334 = vld [vmem:[%s289 + $0x34] sm:$0xf]
      %v335 = vld [vmem:[%s289 + $0x38] sm:$0xf]
      %v336 = vld [vmem:[%s289 + $0x3c] sm:$0xf]
      %v337 = vld [vmem:[%s289 + $0x40] sm:$0xf]
      %v338 = vld [vmem:[%s289 + $0x44] sm:$0xf]
      %v339 = vld [vmem:[%s289 + $0x48] sm:$0xf]
      %v340 = vld [vmem:[%s289 + $0x4c] sm:$0xf]
      %v341 = vld [vmem:[%s289 + $0x50] sm:$0xf]
      %v342 = vld [vmem:[%s289 + $0x54] sm:$0xf]
      %v343 = vld [vmem:[%s289 + $0x58] sm:$0xf]
      %v344 = vld [vmem:[%s289 + $0x5c] sm:$0xf]
      %v345 = vld [vmem:[%s289 + $0x60] sm:$0xf]
      %v346 = vld [vmem:[%s289 + $0x64] sm:$0xf]
      %v347 = vld [vmem:[%s289 + $0x68] sm:$0xf]
      %v348 = vld [vmem:[%s289 + $0x6c] sm:$0xf]
      %v349 = vld [vmem:[%s289 + $0x70] sm:$0xf]
      %v350 = vld [vmem:[%s289 + $0x74] sm:$0xf]
      %v351 = vld [vmem:[%s289 + $0x78] sm:$0xf]
      %v352 = vld [vmem:[%s289 + $0x7c] sm:$0xf]
      %v353 = vld [vmem:[%s289 + $0x80] sm:$0xf]
      %v354 = vld [vmem:[%s289 + $0x84] sm:$0xf]
      %v355 = vld [vmem:[%s289 + $0x88] sm:$0xf]
      %v356 = vld [vmem:[%s289 + $0x8c] sm:$0xf]
      %v357 = vld [vmem:[%s289 + $0x90] sm:$0xf]
      %v358 = vld [vmem:[%s289 + $0x94] sm:$0xf]
      %v359 = vld [vmem:[%s289 + $0x98] sm:$0xf]
      %v360 = vld [vmem:[%s289 + $0x9c] sm:$0xf]
      %v361 = vld [vmem:[%s289 + $0xa0] sm:$0xf]
      %v362 = vld [vmem:[%s289 + $0xa4] sm:$0xf]
      %v363 = vld [vmem:[%s289 + $0xa8] sm:$0xf]
      %v364 = vld [vmem:[%s289 + $0xac] sm:$0xf]
      %v365 = vld [vmem:[%s289 + $0xb0] sm:$0xf]
      %v366 = vld [vmem:[%s289 + $0xb4] sm:$0xf]
      %v367 = vld [vmem:[%s289 + $0xb8] sm:$0xf]
      %v368 = vld [vmem:[%s289 + $0xbc] sm:$0xf]
      %v369 = vld [vmem:[%s289 + $0xc0] sm:$0xf]
      %v370 = vld [vmem:[%s289 + $0xc4] sm:$0xf]
      %v371 = vld [vmem:[%s289 + $0xc8] sm:$0xf]
      %v372 = vld [vmem:[%s289 + $0xcc] sm:$0xf]
      %v373 = vld [vmem:[%s289 + $0xd0] sm:$0xf]
      %v374 = vld [vmem:[%s289 + $0xd4] sm:$0xf]
      %v375 = vld [vmem:[%s289 + $0xd8] sm:$0xf]
      %v376 = vld [vmem:[%s289 + $0xdc] sm:$0xf]
      %v377 = vld [vmem:[%s289 + $0xe0] sm:$0xf]
      %v378 = vld [vmem:[%s289 + $0xe4] sm:$0xf]
      %v379 = vld [vmem:[%s289 + $0xe8] sm:$0xf]
      %v380 = vld [vmem:[%s289 + $0xec] sm:$0xf]
      %v381 = vld [vmem:[%s289 + $0xf0] sm:$0xf]
      %v382 = vld [vmem:[%s289 + $0xf4] sm:$0xf]
      %v383 = vld [vmem:[%s289 + $0xf8] sm:$0xf]
      %v384 = vld [vmem:[%s289 + $0xfc] sm:$0xf]
      %v385 = vld [vmem:[%s289 + $0x100] sm:$0xf]
      %v386 = vld [vmem:[%s289 + $0x104] sm:$0xf]
      %v387 = vld [vmem:[%s289 + $0x108] sm:$0xf]
      %v388 = vld [vmem:[%s289 + $0x10c] sm:$0xf]
      %v389 = vld [vmem:[%s289 + $0x110] sm:$0xf]
      %v390 = vld [vmem:[%s289 + $0x114] sm:$0xf]
      %v391 = vld [vmem:[%s289 + $0x118] sm:$0xf]
      %v392 = vld [vmem:[%s289 + $0x11c] sm:$0xf]
      %v393 = vld [vmem:[%s289 + $0x120] sm:$0xf]
      %v394 = vld [vmem:[%s289 + $0x124] sm:$0xf]
      %v395 = vld [vmem:[%s289 + $0x128] sm:$0xf]
      %v396 = vld [vmem:[%s289 + $0x12c] sm:$0xf]
      %v397 = vld [vmem:[%s289 + $0x130] sm:$0xf]
      %v398 = vld [vmem:[%s289 + $0x134] sm:$0xf]
      %v399 = vld [vmem:[%s289 + $0x138] sm:$0xf]
      %v400 = vld [vmem:[%s289 + $0x13c] sm:$0xf]
      %v401 = vld [vmem:[%s289 + $0x140] sm:$0xf]
      %v402 = vld [vmem:[%s289 + $0x144] sm:$0xf]
      %v403 = vld [vmem:[%s289 + $0x148] sm:$0xf]
      %v404 = vld [vmem:[%s289 + $0x14c] sm:$0xf]
      %v405 = vld [vmem:[%s289 + $0x150] sm:$0xf]
      %v406 = vld [vmem:[%s289 + $0x154] sm:$0xf]
      %v407 = vld [vmem:[%s289 + $0x158] sm:$0xf]
      %v408 = vld [vmem:[%s289 + $0x15c] sm:$0xf]
      %v409 = vld [vmem:[%s289 + $0x160] sm:$0xf]
      %v410 = vld [vmem:[%s289 + $0x164] sm:$0xf]
      %v411 = vld [vmem:[%s289 + $0x168] sm:$0xf]
      %v412 = vld [vmem:[%s289 + $0x16c] sm:$0xf]
      %v413 = vld [vmem:[%s289 + $0x170] sm:$0xf]
      %v414 = vld [vmem:[%s289 + $0x174] sm:$0xf]
      %v415 = vld [vmem:[%s289 + $0x178] sm:$0xf]
      %v416 = vld [vmem:[%s289 + $0x17c] sm:$0xf]
      %v417 = vld [vmem:[%s289 + $0x180] sm:$0xf]
      %v418 = vld [vmem:[%s289 + $0x184] sm:$0xf]
      %v419 = vld [vmem:[%s289 + $0x188] sm:$0xf]
      %v420 = vld [vmem:[%s289 + $0x18c] sm:$0xf]
      %v421 = vld [vmem:[%s289 + $0x190] sm:$0xf]
      %v422 = vld [vmem:[%s289 + $0x194] sm:$0xf]
      %v423 = vld [vmem:[%s289 + $0x198] sm:$0xf]
      %v424 = vld [vmem:[%s289 + $0x19c] sm:$0xf]
      %v425 = vld [vmem:[%s289 + $0x1a0] sm:$0xf]
      %v426 = vld [vmem:[%s289 + $0x1a4] sm:$0xf]
      %v427 = vld [vmem:[%s289 + $0x1a8] sm:$0xf]
      %v428 = vld [vmem:[%s289 + $0x1ac] sm:$0xf]
      %v429 = vld [vmem:[%s289 + $0x1b0] sm:$0xf]
      %v430 = vld [vmem:[%s289 + $0x1b4] sm:$0xf]
      %v431 = vld [vmem:[%s289 + $0x1b8] sm:$0xf]
      %v432 = vld [vmem:[%s289 + $0x1bc] sm:$0xf]
      %v433 = vld [vmem:[%s289 + $0x1c0] sm:$0xf]
      %v434 = vld [vmem:[%s289 + $0x1c4] sm:$0xf]
      %v435 = vld [vmem:[%s289 + $0x1c8] sm:$0xf]
      %v436 = vld [vmem:[%s289 + $0x1cc] sm:$0xf]
      %v437 = vld [vmem:[%s289 + $0x1d0] sm:$0xf]
      %v438 = vld [vmem:[%s289 + $0x1d4] sm:$0xf]
      %v439 = vld [vmem:[%s289 + $0x1d8] sm:$0xf]
      %v440 = vld [vmem:[%s289 + $0x1dc] sm:$0xf]
      %v441 = vld [vmem:[%s289 + $0x1e0] sm:$0xf]
      %v442 = vld [vmem:[%s289 + $0x1e4] sm:$0xf]
      %v443 = vld [vmem:[%s289 + $0x1e8] sm:$0xf]
      %v444 = vld [vmem:[%s289 + $0x1ec] sm:$0xf]
      %v445 = vld [vmem:[%s289 + $0x1f0] sm:$0xf]
      %v446 = vld [vmem:[%s289 + $0x1f4] sm:$0xf]
      %v447 = vld [vmem:[%s289 + $0x1f8] sm:$0xf]
      %v448 = vld [vmem:[%s289 + $0x1fc] sm:$0xf]
      %v449 = vld [vmem:[%s289 + $0x200] sm:$0xf]
      %v450 = vld [vmem:[%s289 + $0x204] sm:$0xf]
      %v451 = vld [vmem:[%s289 + $0x208] sm:$0xf]
      %v452 = vld [vmem:[%s289 + $0x20c] sm:$0xf]
      %v453 = vld [vmem:[%s289 + $0x210] sm:$0xf]
      %v454 = vld [vmem:[%s289 + $0x214] sm:$0xf]
      %v455 = vld [vmem:[%s289 + $0x218] sm:$0xf]
      %v456 = vld [vmem:[%s289 + $0x21c] sm:$0xf]
      %v457 = vld [vmem:[%s289 + $0x220] sm:$0xf]
      %v458 = vld [vmem:[%s289 + $0x224] sm:$0xf]
      %v459 = vld [vmem:[%s289 + $0x228] sm:$0xf]
      %v460 = vld [vmem:[%s289 + $0x22c] sm:$0xf]
      %v461 = vld [vmem:[%s289 + $0x230] sm:$0xf]
      %v462 = vld [vmem:[%s289 + $0x234] sm:$0xf]
      %v463 = vld [vmem:[%s289 + $0x238] sm:$0xf]
      %v464 = vld [vmem:[%s289 + $0x23c] sm:$0xf]
      %v465 = vld [vmem:[%s289 + $0x240] sm:$0xf]
      %v466 = vld [vmem:[%s289 + $0x244] sm:$0xf]
      %v467 = vld [vmem:[%s289 + $0x248] sm:$0xf]
      %v468 = vld [vmem:[%s289 + $0x24c] sm:$0xf]
      %v469 = vld [vmem:[%s289 + $0x250] sm:$0xf]
      %v470 = vld [vmem:[%s289 + $0x254] sm:$0xf]
      %v471 = vld [vmem:[%s289 + $0x258] sm:$0xf]
      %v472 = vld [vmem:[%s289 + $0x25c] sm:$0xf]
      %v473 = vld [vmem:[%s289 + $0x260] sm:$0xf]
      %v474 = vld [vmem:[%s289 + $0x264] sm:$0xf]
      %v475 = vld [vmem:[%s289 + $0x268] sm:$0xf]
      %v476 = vld [vmem:[%s289 + $0x26c] sm:$0xf]
      %v477 = vld [vmem:[%s289 + $0x270] sm:$0xf]
      %v478 = vld [vmem:[%s289 + $0x274] sm:$0xf]
      %v479 = vld [vmem:[%s289 + $0x278] sm:$0xf]
      %v480 = vld [vmem:[%s289 + $0x27c] sm:$0xf]
      %v481 = vld [vmem:[%s289 + $0x280] sm:$0xf]
      %v482 = vld [vmem:[%s289 + $0x284] sm:$0xf]
      %v483 = vld [vmem:[%s289 + $0x288] sm:$0xf]
      %v484 = vld [vmem:[%s289 + $0x28c] sm:$0xf]
      %v485 = vld [vmem:[%s289 + $0x290] sm:$0xf]
      %v486 = vld [vmem:[%s289 + $0x294] sm:$0xf]
      %v487 = vld [vmem:[%s289 + $0x298] sm:$0xf]
      %v488 = vld [vmem:[%s289 + $0x29c] sm:$0xf]
      %v489 = vld [vmem:[%s289 + $0x2a0] sm:$0xf]
      %v490 = vld [vmem:[%s289 + $0x2a4] sm:$0xf]
      %v491 = vld [vmem:[%s289 + $0x2a8] sm:$0xf]
      %v492 = vld [vmem:[%s289 + $0x2ac] sm:$0xf]
      %v493 = vld [vmem:[%s289 + $0x2b0] sm:$0xf]
      %v494 = vld [vmem:[%s289 + $0x2b4] sm:$0xf]
      %v495 = vld [vmem:[%s289 + $0x2b8] sm:$0xf]
      %v496 = vld [vmem:[%s289 + $0x2bc] sm:$0xf]
      %v497 = vld [vmem:[%s289 + $0x2c0] sm:$0xf]
      %v498 = vld [vmem:[%s289 + $0x2c4] sm:$0xf]
      %v499 = vld [vmem:[%s289 + $0x2c8] sm:$0xf]
      %v500 = vld [vmem:[%s289 + $0x2cc] sm:$0xf]
      %v501 = vld [vmem:[%s289 + $0x2d0] sm:$0xf]
      %v502 = vld [vmem:[%s289 + $0x2d4] sm:$0xf]
      %v503 = vld [vmem:[%s289 + $0x2d8] sm:$0xf]
      %v504 = vld [vmem:[%s289 + $0x2dc] sm:$0xf]
      %v505 = vld [vmem:[%s289 + $0x2e0] sm:$0xf]
      %v506 = vld [vmem:[%s289 + $0x2e4] sm:$0xf]
      %v507 = vld [vmem:[%s289 + $0x2e8] sm:$0xf]
      %v508 = vld [vmem:[%s289 + $0x2ec] sm:$0xf]
      %v509 = vld [vmem:[%s289 + $0x2f0] sm:$0xf]
      %v510 = vld [vmem:[%s289 + $0x2f4] sm:$0xf]
      %v511 = vld [vmem:[%s289 + $0x2f8] sm:$0xf]
      %v512 = vld [vmem:[%s289 + $0x2fc] sm:$0xf]
      %v513 = vld [vmem:[%s289 + $0x300] sm:$0xf]
      %v514 = vld [vmem:[%s289 + $0x304] sm:$0xf]
      %v515 = vld [vmem:[%s289 + $0x308] sm:$0xf]
      %v516 = vld [vmem:[%s289 + $0x30c] sm:$0xf]
      %v517 = vld [vmem:[%s289 + $0x310] sm:$0xf]
      %v518 = vld [vmem:[%s289 + $0x314] sm:$0xf]
      %v519 = vld [vmem:[%s289 + $0x318] sm:$0xf]
      %v520 = vld [vmem:[%s289 + $0x31c] sm:$0xf]
      %v521 = vld [vmem:[%s289 + $0x320] sm:$0xf]
      %v522 = vld [vmem:[%s289 + $0x324] sm:$0xf]
      %v523 = vld [vmem:[%s289 + $0x328] sm:$0xf]
      %v524 = vld [vmem:[%s289 + $0x32c] sm:$0xf]
      %v525 = vld [vmem:[%s289 + $0x330] sm:$0xf]
      %v526 = vld [vmem:[%s289 + $0x334] sm:$0xf]
      %v527 = vld [vmem:[%s289 + $0x338] sm:$0xf]
      %v528 = vld [vmem:[%s289 + $0x33c] sm:$0xf]
      %v529 = vld [vmem:[%s289 + $0x340] sm:$0xf]
      %v530 = vld [vmem:[%s289 + $0x344] sm:$0xf]
      %v531 = vld [vmem:[%s289 + $0x348] sm:$0xf]
      %v532 = vld [vmem:[%s289 + $0x34c] sm:$0xf]
      %v533 = vld [vmem:[%s289 + $0x350] sm:$0xf]
      %v534 = vld [vmem:[%s289 + $0x354] sm:$0xf]
      %v535 = vld [vmem:[%s289 + $0x358] sm:$0xf]
      %v536 = vld [vmem:[%s289 + $0x35c] sm:$0xf]
      %v537 = vld [vmem:[%s289 + $0x360] sm:$0xf]
      %v538 = vld [vmem:[%s289 + $0x364] sm:$0xf]
      %v539 = vld [vmem:[%s289 + $0x368] sm:$0xf]
      %v540 = vld [vmem:[%s289 + $0x36c] sm:$0xf]
      %v541 = vld [vmem:[%s289 + $0x370] sm:$0xf]
      %v542 = vld [vmem:[%s289 + $0x374] sm:$0xf]
      %v543 = vld [vmem:[%s289 + $0x378] sm:$0xf]
      %v544 = vld [vmem:[%s289 + $0x37c] sm:$0xf]
      %v545 = vld [vmem:[%s289 + $0x380] sm:$0xf]
      %v546 = vld [vmem:[%s289 + $0x384] sm:$0xf]
      %v547 = vld [vmem:[%s289 + $0x388] sm:$0xf]
      %v548 = vld [vmem:[%s289 + $0x38c] sm:$0xf]
      %v549 = vld [vmem:[%s289 + $0x390] sm:$0xf]
      %v550 = vld [vmem:[%s289 + $0x394] sm:$0xf]
      %v551 = vld [vmem:[%s289 + $0x398] sm:$0xf]
      %v552 = vld [vmem:[%s289 + $0x39c] sm:$0xf]
      %v553 = vld [vmem:[%s289 + $0x3a0] sm:$0xf]
      %v554 = vld [vmem:[%s289 + $0x3a4] sm:$0xf]
      %v555 = vld [vmem:[%s289 + $0x3a8] sm:$0xf]
      %v556 = vld [vmem:[%s289 + $0x3ac] sm:$0xf]
      %v557 = vld [vmem:[%s289 + $0x3b0] sm:$0xf]
      %v558 = vld [vmem:[%s289 + $0x3b4] sm:$0xf]
      %v559 = vld [vmem:[%s289 + $0x3b8] sm:$0xf]
      %v560 = vld [vmem:[%s289 + $0x3bc] sm:$0xf]
      %v561 = vld [vmem:[%s289 + $0x3c0] sm:$0xf]
      %v562 = vld [vmem:[%s289 + $0x3c4] sm:$0xf]
      %v563 = vld [vmem:[%s289 + $0x3c8] sm:$0xf]
      %v564 = vld [vmem:[%s289 + $0x3cc] sm:$0xf]
      %v565 = vld [vmem:[%s289 + $0x3d0] sm:$0xf]
      %v566 = vld [vmem:[%s289 + $0x3d4] sm:$0xf]
      %v567 = vld [vmem:[%s289 + $0x3d8] sm:$0xf]
      %v568 = vld [vmem:[%s289 + $0x3dc] sm:$0xf]
      %v569 = vld [vmem:[%s289 + $0x3e0] sm:$0xf]
      %v570 = vld [vmem:[%s289 + $0x3e4] sm:$0xf]
      %v571 = vld [vmem:[%s289 + $0x3e8] sm:$0xf]
      %v572 = vld [vmem:[%s289 + $0x3ec] sm:$0xf]
      %v573 = vld [vmem:[%s289 + $0x3f0] sm:$0xf]
      %v574 = vld [vmem:[%s289 + $0x3f4] sm:$0xf]
      %v575 = vld [vmem:[%s289 + $0x3f8] sm:$0xf]
      %v576 = vld [vmem:[%s289 + $0x3fc] sm:$0xf]
      %v585 = vunpack.c.l.b16 %v313
      %v586 = vunpack.c.h.b16 %v313
      %v587 = vunpack.c.l.b16 %v314
      %v588 = vunpack.c.h.b16 %v314
      %v589 = vunpack.c.l.b16 %v315
      %v590 = vunpack.c.h.b16 %v315
      %v591 = vunpack.c.l.b16 %v316
      %v592 = vunpack.c.h.b16 %v316
      %v593 = vunpack.c.l.b16 %v317
      %v594 = vunpack.c.h.b16 %v317
      %v595 = vunpack.c.l.b16 %v318
      %v596 = vunpack.c.h.b16 %v318
      %v597 = vunpack.c.l.b16 %v319
      %v598 = vunpack.c.h.b16 %v319
      %v599 = vunpack.c.l.b16 %v320
      %v600 = vunpack.c.h.b16 %v320
      %v601 = vpack.c.b16 %v585, %v585
      %v602 = vpack.c.b16 %v586, %v586
      %v603 = vpack.c.b16 %v587, %v587
      %v604 = vpack.c.b16 %v588, %v588
      %v605 = vpack.c.b16 %v589, %v589
      %v606 = vpack.c.b16 %v590, %v590
      %v607 = vpack.c.b16 %v591, %v591
      %v608 = vpack.c.b16 %v592, %v592
      %v609 = vpack.c.b16 %v593, %v593
      %v610 = vpack.c.b16 %v594, %v594
      %v611 = vpack.c.b16 %v595, %v595
      %v612 = vpack.c.b16 %v596, %v596
      %v613 = vpack.c.b16 %v597, %v597
      %v614 = vpack.c.b16 %v598, %v598
      %v615 = vpack.c.b16 %v599, %v599
      %v616 = vpack.c.b16 %v600, %v600
      %v889 = vunpack.c.l.b16 %v321
      %v890 = vunpack.c.l.b16 %v322
      %v891 = vunpack.c.l.b16 %v323
      %v892 = vunpack.c.l.b16 %v324
      %v893 = vunpack.c.l.b16 %v325
      %v894 = vunpack.c.l.b16 %v326
      %v895 = vunpack.c.l.b16 %v327
      %v896 = vunpack.c.l.b16 %v328
      %v897 = vunpack.c.l.b16 %v329
      %v898 = vunpack.c.l.b16 %v330
      %v899 = vunpack.c.l.b16 %v331
      %v900 = vunpack.c.l.b16 %v332
      %v901 = vunpack.c.l.b16 %v333
      %v902 = vunpack.c.l.b16 %v334
      %v903 = vunpack.c.l.b16 %v335
      %v904 = vunpack.c.l.b16 %v336
      %v905 = vunpack.c.l.b16 %v337
      %v906 = vunpack.c.l.b16 %v338
      %v907 = vunpack.c.l.b16 %v339
      %v908 = vunpack.c.l.b16 %v340
      %v909 = vunpack.c.l.b16 %v341
      %v910 = vunpack.c.l.b16 %v342
      %v911 = vunpack.c.l.b16 %v343
      %v912 = vunpack.c.l.b16 %v344
      %v913 = vunpack.c.l.b16 %v345
      %v914 = vunpack.c.l.b16 %v346
      %v915 = vunpack.c.l.b16 %v347
      %v916 = vunpack.c.l.b16 %v348
      %v917 = vunpack.c.l.b16 %v349
      %v918 = vunpack.c.l.b16 %v350
      %v919 = vunpack.c.l.b16 %v351
      %v920 = vunpack.c.l.b16 %v352
      %v921 = vunpack.c.l.b16 %v353
      %v922 = vunpack.c.l.b16 %v354
      %v923 = vunpack.c.l.b16 %v355
      %v924 = vunpack.c.l.b16 %v356
      %v925 = vunpack.c.l.b16 %v357
      %v926 = vunpack.c.l.b16 %v358
      %v927 = vunpack.c.l.b16 %v359
      %v928 = vunpack.c.l.b16 %v360
      %v929 = vunpack.c.l.b16 %v361
      %v930 = vunpack.c.l.b16 %v362
      %v931 = vunpack.c.l.b16 %v363
      %v932 = vunpack.c.l.b16 %v364
      %v933 = vunpack.c.l.b16 %v365
      %v934 = vunpack.c.l.b16 %v366
      %v935 = vunpack.c.l.b16 %v367
      %v936 = vunpack.c.l.b16 %v368
      %v937 = vunpack.c.l.b16 %v369
      %v938 = vunpack.c.l.b16 %v370
      %v939 = vunpack.c.l.b16 %v371
      %v940 = vunpack.c.l.b16 %v372
      %v941 = vunpack.c.l.b16 %v373
      %v942 = vunpack.c.l.b16 %v374
      %v943 = vunpack.c.l.b16 %v375
      %v944 = vunpack.c.l.b16 %v376
      %v945 = vunpack.c.l.b16 %v377
      %v946 = vunpack.c.l.b16 %v378
      %v947 = vunpack.c.l.b16 %v379
      %v948 = vunpack.c.l.b16 %v380
      %v949 = vunpack.c.l.b16 %v381
      %v950 = vunpack.c.l.b16 %v382
      %v951 = vunpack.c.l.b16 %v383
      %v952 = vunpack.c.l.b16 %v384
      %v953 = vunpack.c.l.b16 %v385
      %v954 = vunpack.c.l.b16 %v386
      %v955 = vunpack.c.l.b16 %v387
      %v956 = vunpack.c.l.b16 %v388
      %v957 = vunpack.c.l.b16 %v389
      %v958 = vunpack.c.l.b16 %v390
      %v959 = vunpack.c.l.b16 %v391
      %v960 = vunpack.c.l.b16 %v392
      %v961 = vunpack.c.l.b16 %v393
      %v962 = vunpack.c.l.b16 %v394
      %v963 = vunpack.c.l.b16 %v395
      %v964 = vunpack.c.l.b16 %v396
      %v965 = vunpack.c.l.b16 %v397
      %v966 = vunpack.c.l.b16 %v398
      %v967 = vunpack.c.l.b16 %v399
      %v968 = vunpack.c.l.b16 %v400
      %v969 = vunpack.c.l.b16 %v401
      %v970 = vunpack.c.l.b16 %v402
      %v971 = vunpack.c.l.b16 %v403
      %v972 = vunpack.c.l.b16 %v404
      %v973 = vunpack.c.l.b16 %v405
      %v974 = vunpack.c.l.b16 %v406
      %v975 = vunpack.c.l.b16 %v407
      %v976 = vunpack.c.l.b16 %v408
      %v977 = vunpack.c.l.b16 %v409
      %v978 = vunpack.c.l.b16 %v410
      %v979 = vunpack.c.l.b16 %v411
      %v980 = vunpack.c.l.b16 %v412
      %v981 = vunpack.c.l.b16 %v413
      %v982 = vunpack.c.l.b16 %v414
      %v983 = vunpack.c.l.b16 %v415
      %v984 = vunpack.c.l.b16 %v416
      %v985 = vunpack.c.l.b16 %v417
      %v986 = vunpack.c.l.b16 %v418
      %v987 = vunpack.c.l.b16 %v419
      %v988 = vunpack.c.l.b16 %v420
      %v989 = vunpack.c.l.b16 %v421
      %v990 = vunpack.c.l.b16 %v422
      %v991 = vunpack.c.l.b16 %v423
      %v992 = vunpack.c.l.b16 %v424
      %v993 = vunpack.c.l.b16 %v425
      %v994 = vunpack.c.l.b16 %v426
      %v995 = vunpack.c.l.b16 %v427
      %v996 = vunpack.c.l.b16 %v428
      %v997 = vunpack.c.l.b16 %v429
      %v998 = vunpack.c.l.b16 %v430
      %v999 = vunpack.c.l.b16 %v431
      %v1000 = vunpack.c.l.b16 %v432
      %v1001 = vunpack.c.l.b16 %v433
      %v1002 = vunpack.c.l.b16 %v434
      %v1003 = vunpack.c.l.b16 %v435
      %v1004 = vunpack.c.l.b16 %v436
      %v1005 = vunpack.c.l.b16 %v437
      %v1006 = vunpack.c.l.b16 %v438
      %v1007 = vunpack.c.l.b16 %v439
      %v1008 = vunpack.c.l.b16 %v440
      %v1009 = vunpack.c.l.b16 %v441
      %v1010 = vunpack.c.l.b16 %v442
      %v1011 = vunpack.c.l.b16 %v443
      %v1012 = vunpack.c.l.b16 %v444
      %v1013 = vunpack.c.l.b16 %v445
      %v1014 = vunpack.c.l.b16 %v446
      %v1015 = vunpack.c.l.b16 %v447
      %v1016 = vunpack.c.l.b16 %v448
      %v1017 = vunpack.c.l.b16 %v449
      %v1018 = vunpack.c.l.b16 %v450
      %v1019 = vunpack.c.l.b16 %v451
      %v1020 = vunpack.c.l.b16 %v452
      %v1021 = vunpack.c.l.b16 %v453
      %v1022 = vunpack.c.l.b16 %v454
      %v1023 = vunpack.c.l.b16 %v455
      %v1024 = vunpack.c.l.b16 %v456
      %v1025 = vunpack.c.l.b16 %v457
      %v1026 = vunpack.c.l.b16 %v458
      %v1027 = vunpack.c.l.b16 %v459
      %v1028 = vunpack.c.l.b16 %v460
      %v1029 = vunpack.c.l.b16 %v461
      %v1030 = vunpack.c.l.b16 %v462
      %v1031 = vunpack.c.l.b16 %v463
      %v1032 = vunpack.c.l.b16 %v464
      %v1033 = vunpack.c.l.b16 %v465
      %v1034 = vunpack.c.l.b16 %v466
      %v1035 = vunpack.c.l.b16 %v467
      %v1036 = vunpack.c.l.b16 %v468
      %v1037 = vunpack.c.l.b16 %v469
      %v1038 = vunpack.c.l.b16 %v470
      %v1039 = vunpack.c.l.b16 %v471
      %v1040 = vunpack.c.l.b16 %v472
      %v1041 = vunpack.c.l.b16 %v473
      %v1042 = vunpack.c.l.b16 %v474
      %v1043 = vunpack.c.l.b16 %v475
      %v1044 = vunpack.c.l.b16 %v476
      %v1045 = vunpack.c.l.b16 %v477
      %v1046 = vunpack.c.l.b16 %v478
      %v1047 = vunpack.c.l.b16 %v479
      %v1048 = vunpack.c.l.b16 %v480
      %v1049 = vunpack.c.l.b16 %v481
      %v1050 = vunpack.c.l.b16 %v482
      %v1051 = vunpack.c.l.b16 %v483
      %v1052 = vunpack.c.l.b16 %v484
      %v1053 = vunpack.c.l.b16 %v485
      %v1054 = vunpack.c.l.b16 %v486
      %v1055 = vunpack.c.l.b16 %v487
      %v1056 = vunpack.c.l.b16 %v488
      %v1057 = vunpack.c.l.b16 %v489
      %v1058 = vunpack.c.l.b16 %v490
      %v1059 = vunpack.c.l.b16 %v491
      %v1060 = vunpack.c.l.b16 %v492
      %v1061 = vunpack.c.l.b16 %v493
      %v1062 = vunpack.c.l.b16 %v494
      %v1063 = vunpack.c.l.b16 %v495
      %v1064 = vunpack.c.l.b16 %v496
      %v1065 = vunpack.c.l.b16 %v497
      %v1066 = vunpack.c.l.b16 %v498
      %v1067 = vunpack.c.l.b16 %v499
      %v1068 = vunpack.c.l.b16 %v500
      %v1069 = vunpack.c.l.b16 %v501
      %v1070 = vunpack.c.l.b16 %v502
      %v1071 = vunpack.c.l.b16 %v503
      %v1072 = vunpack.c.l.b16 %v504
      %v1073 = vunpack.c.l.b16 %v505
      %v1074 = vunpack.c.l.b16 %v506
      %v1075 = vunpack.c.l.b16 %v507
      %v1076 = vunpack.c.l.b16 %v508
      %v1077 = vunpack.c.l.b16 %v509
      %v1078 = vunpack.c.l.b16 %v510
      %v1079 = vunpack.c.l.b16 %v511
      %v1080 = vunpack.c.l.b16 %v512
      %v1081 = vunpack.c.l.b16 %v513
      %v1082 = vunpack.c.l.b16 %v514
      %v1083 = vunpack.c.l.b16 %v515
      %v1084 = vunpack.c.l.b16 %v516
      %v1085 = vunpack.c.l.b16 %v517
      %v1086 = vunpack.c.l.b16 %v518
      %v1087 = vunpack.c.l.b16 %v519
      %v1088 = vunpack.c.l.b16 %v520
      %v1089 = vunpack.c.l.b16 %v521
      %v1090 = vunpack.c.l.b16 %v522
      %v1091 = vunpack.c.l.b16 %v523
      %v1092 = vunpack.c.l.b16 %v524
      %v1093 = vunpack.c.l.b16 %v525
      %v1094 = vunpack.c.l.b16 %v526
      %v1095 = vunpack.c.l.b16 %v527
      %v1096 = vunpack.c.l.b16 %v528
      %v1097 = vunpack.c.l.b16 %v529
      %v1098 = vunpack.c.l.b16 %v530
      %v1099 = vunpack.c.l.b16 %v531
      %v1100 = vunpack.c.l.b16 %v532
      %v1101 = vunpack.c.l.b16 %v533
      %v1102 = vunpack.c.l.b16 %v534
      %v1103 = vunpack.c.l.b16 %v535
      %v1104 = vunpack.c.l.b16 %v536
      %v1105 = vunpack.c.l.b16 %v537
      %v1106 = vunpack.c.l.b16 %v538
      %v1107 = vunpack.c.l.b16 %v539
      %v1108 = vunpack.c.l.b16 %v540
      %v1109 = vunpack.c.l.b16 %v541
      %v1110 = vunpack.c.l.b16 %v542
      %v1111 = vunpack.c.l.b16 %v543
      %v1112 = vunpack.c.l.b16 %v544
      %v1113 = vunpack.c.l.b16 %v545
      %v1114 = vunpack.c.l.b16 %v546
      %v1115 = vunpack.c.l.b16 %v547
      %v1116 = vunpack.c.l.b16 %v548
      %v1117 = vunpack.c.l.b16 %v549
      %v1118 = vunpack.c.l.b16 %v550
      %v1119 = vunpack.c.l.b16 %v551
      %v1120 = vunpack.c.l.b16 %v552
      %v1121 = vunpack.c.l.b16 %v553
      %v1122 = vunpack.c.l.b16 %v554
      %v1123 = vunpack.c.l.b16 %v555
      %v1124 = vunpack.c.l.b16 %v556
      %v1125 = vunpack.c.l.b16 %v557
      %v1126 = vunpack.c.l.b16 %v558
      %v1127 = vunpack.c.l.b16 %v559
      %v1128 = vunpack.c.l.b16 %v560
      %v1129 = vunpack.c.l.b16 %v561
      %v1130 = vunpack.c.l.b16 %v562
      %v1131 = vunpack.c.l.b16 %v563
      %v1132 = vunpack.c.l.b16 %v564
      %v1133 = vunpack.c.l.b16 %v565
      %v1134 = vunpack.c.l.b16 %v566
      %v1135 = vunpack.c.l.b16 %v567
      %v1136 = vunpack.c.l.b16 %v568
      %v1137 = vunpack.c.l.b16 %v569
      %v1138 = vunpack.c.l.b16 %v570
      %v1139 = vunpack.c.l.b16 %v571
      %v1140 = vunpack.c.l.b16 %v572
      %v1141 = vunpack.c.l.b16 %v573
      %v1142 = vunpack.c.l.b16 %v574
      %v1143 = vunpack.c.l.b16 %v575
      %v1144 = vunpack.c.l.b16 %v576
      %v1145 = vpack.c.b16 %v890, %v889
      %v1146 = vpack.c.b16 %v892, %v891
      %v1147 = vpack.c.b16 %v894, %v893
      %v1148 = vpack.c.b16 %v896, %v895
      %v1149 = vpack.c.b16 %v898, %v897
      %v1150 = vpack.c.b16 %v900, %v899
      %v1151 = vpack.c.b16 %v902, %v901
      %v1152 = vpack.c.b16 %v904, %v903
      %v1153 = vpack.c.b16 %v906, %v905
      %v1154 = vpack.c.b16 %v908, %v907
      %v1155 = vpack.c.b16 %v910, %v909
      %v1156 = vpack.c.b16 %v912, %v911
      %v1157 = vpack.c.b16 %v914, %v913
      %v1158 = vpack.c.b16 %v916, %v915
      %v1159 = vpack.c.b16 %v918, %v917
      %v1160 = vpack.c.b16 %v920, %v919
      %v1161 = vpack.c.b16 %v922, %v921
      %v1162 = vpack.c.b16 %v924, %v923
      %v1163 = vpack.c.b16 %v926, %v925
      %v1164 = vpack.c.b16 %v928, %v927
      %v1165 = vpack.c.b16 %v930, %v929
      %v1166 = vpack.c.b16 %v932, %v931
      %v1167 = vpack.c.b16 %v934, %v933
      %v1168 = vpack.c.b16 %v936, %v935
      %v1169 = vpack.c.b16 %v938, %v937
      %v1170 = vpack.c.b16 %v940, %v939
      %v1171 = vpack.c.b16 %v942, %v941
      %v1172 = vpack.c.b16 %v944, %v943
      %v1173 = vpack.c.b16 %v946, %v945
      %v1174 = vpack.c.b16 %v948, %v947
      %v1175 = vpack.c.b16 %v950, %v949
      %v1176 = vpack.c.b16 %v952, %v951
      %v1177 = vpack.c.b16 %v954, %v953
      %v1178 = vpack.c.b16 %v956, %v955
      %v1179 = vpack.c.b16 %v958, %v957
      %v1180 = vpack.c.b16 %v960, %v959
      %v1181 = vpack.c.b16 %v962, %v961
      %v1182 = vpack.c.b16 %v964, %v963
      %v1183 = vpack.c.b16 %v966, %v965
      %v1184 = vpack.c.b16 %v968, %v967
      %v1185 = vpack.c.b16 %v970, %v969
      %v1186 = vpack.c.b16 %v972, %v971
      %v1187 = vpack.c.b16 %v974, %v973
      %v1188 = vpack.c.b16 %v976, %v975
      %v1189 = vpack.c.b16 %v978, %v977
      %v1190 = vpack.c.b16 %v980, %v979
      %v1191 = vpack.c.b16 %v982, %v981
      %v1192 = vpack.c.b16 %v984, %v983
      %v1193 = vpack.c.b16 %v986, %v985
      %v1194 = vpack.c.b16 %v988, %v987
      %v1195 = vpack.c.b16 %v990, %v989
      %v1196 = vpack.c.b16 %v992, %v991
      %v1197 = vpack.c.b16 %v994, %v993
      %v1198 = vpack.c.b16 %v996, %v995
      %v1199 = vpack.c.b16 %v998, %v997
      %v1200 = vpack.c.b16 %v1000, %v999
      %v1201 = vpack.c.b16 %v1002, %v1001
      %v1202 = vpack.c.b16 %v1004, %v1003
      %v1203 = vpack.c.b16 %v1006, %v1005
      %v1204 = vpack.c.b16 %v1008, %v1007
      %v1205 = vpack.c.b16 %v1010, %v1009
      %v1206 = vpack.c.b16 %v1012, %v1011
      %v1207 = vpack.c.b16 %v1014, %v1013
      %v1208 = vpack.c.b16 %v1016, %v1015
      %v1209 = vpack.c.b16 %v1018, %v1017
      %v1210 = vpack.c.b16 %v1020, %v1019
      %v1211 = vpack.c.b16 %v1022, %v1021
      %v1212 = vpack.c.b16 %v1024, %v1023
      %v1213 = vpack.c.b16 %v1026, %v1025
      %v1214 = vpack.c.b16 %v1028, %v1027
      %v1215 = vpack.c.b16 %v1030, %v1029
      %v1216 = vpack.c.b16 %v1032, %v1031
      %v1217 = vpack.c.b16 %v1034, %v1033
      %v1218 = vpack.c.b16 %v1036, %v1035
      %v1219 = vpack.c.b16 %v1038, %v1037
      %v1220 = vpack.c.b16 %v1040, %v1039
      %v1221 = vpack.c.b16 %v1042, %v1041
      %v1222 = vpack.c.b16 %v1044, %v1043
      %v1223 = vpack.c.b16 %v1046, %v1045
      %v1224 = vpack.c.b16 %v1048, %v1047
      %v1225 = vpack.c.b16 %v1050, %v1049
      %v1226 = vpack.c.b16 %v1052, %v1051
      %v1227 = vpack.c.b16 %v1054, %v1053
      %v1228 = vpack.c.b16 %v1056, %v1055
      %v1229 = vpack.c.b16 %v1058, %v1057
      %v1230 = vpack.c.b16 %v1060, %v1059
      %v1231 = vpack.c.b16 %v1062, %v1061
      %v1232 = vpack.c.b16 %v1064, %v1063
      %v1233 = vpack.c.b16 %v1066, %v1065
      %v1234 = vpack.c.b16 %v1068, %v1067
      %v1235 = vpack.c.b16 %v1070, %v1069
      %v1236 = vpack.c.b16 %v1072, %v1071
      %v1237 = vpack.c.b16 %v1074, %v1073
      %v1238 = vpack.c.b16 %v1076, %v1075
      %v1239 = vpack.c.b16 %v1078, %v1077
      %v1240 = vpack.c.b16 %v1080, %v1079
      %v1241 = vpack.c.b16 %v1082, %v1081
      %v1242 = vpack.c.b16 %v1084, %v1083
      %v1243 = vpack.c.b16 %v1086, %v1085
      %v1244 = vpack.c.b16 %v1088, %v1087
      %v1245 = vpack.c.b16 %v1090, %v1089
      %v1246 = vpack.c.b16 %v1092, %v1091
      %v1247 = vpack.c.b16 %v1094, %v1093
      %v1248 = vpack.c.b16 %v1096, %v1095
      %v1249 = vpack.c.b16 %v1098, %v1097
      %v1250 = vpack.c.b16 %v1100, %v1099
      %v1251 = vpack.c.b16 %v1102, %v1101
      %v1252 = vpack.c.b16 %v1104, %v1103
      %v1253 = vpack.c.b16 %v1106, %v1105
      %v1254 = vpack.c.b16 %v1108, %v1107
      %v1255 = vpack.c.b16 %v1110, %v1109
      %v1256 = vpack.c.b16 %v1112, %v1111
      %v1257 = vpack.c.b16 %v1114, %v1113
      %v1258 = vpack.c.b16 %v1116, %v1115
      %v1259 = vpack.c.b16 %v1118, %v1117
      %v1260 = vpack.c.b16 %v1120, %v1119
      %v1261 = vpack.c.b16 %v1122, %v1121
      %v1262 = vpack.c.b16 %v1124, %v1123
      %v1263 = vpack.c.b16 %v1126, %v1125
      %v1264 = vpack.c.b16 %v1128, %v1127
      %v1265 = vpack.c.b16 %v1130, %v1129
      %v1266 = vpack.c.b16 %v1132, %v1131
      %v1267 = vpack.c.b16 %v1134, %v1133
      %v1268 = vpack.c.b16 %v1136, %v1135
      %v1269 = vpack.c.b16 %v1138, %v1137
      %v1270 = vpack.c.b16 %v1140, %v1139
      %v1271 = vpack.c.b16 %v1142, %v1141
      %v1272 = vpack.c.b16 %v1144, %v1143
      %1401 = vmatprep.subr.bf16.mxu0 0
      %1402 = vmatpush1.bf16.msra.mxu0 %v1152
      %1403 = vmatprep.subr.bf16.mxu0 0
      %1404 = vmatpush1.bf16.msra.mxu0 %v1151
      %1405 = vmatprep.subr.bf16.mxu0 0
      %1406 = vmatpush1.bf16.msra.mxu0 %v1150
      %1407 = vmatprep.subr.bf16.mxu0 0
      %1408 = vmatpush1.bf16.msra.mxu0 %v1149
      %1409 = vmatprep.subr.bf16.mxu0 0
      %1410 = vmatpush1.bf16.msra.mxu0 %v1148
      %1411 = vmatprep.subr.bf16.mxu0 0
      %1412 = vmatpush1.bf16.msra.mxu0 %v1147
      %1413 = vmatprep.subr.bf16.mxu0 0
      %1414 = vmatpush1.bf16.msra.mxu0 %v1146
      %1415 = vmatprep.subr.bf16.mxu0 0
      %1416 = vmatpush1.bf16.msra.mxu0 %v1145
      %1417 = vmatprep.subr.bf16.mxu0 0
      %1418 = vmatpush2.bf16.msra.mxu0 %v1160
      %1419 = vmatprep.subr.bf16.mxu0 0
      %1420 = vmatpush2.bf16.msra.mxu0 %v1159
      %1421 = vmatprep.subr.bf16.mxu0 0
      %1422 = vmatpush2.bf16.msra.mxu0 %v1158
      %1423 = vmatprep.subr.bf16.mxu0 0
      %1424 = vmatpush2.bf16.msra.mxu0 %v1157
      %1425 = vmatprep.subr.bf16.mxu0 0
      %1426 = vmatpush2.bf16.msra.mxu0 %v1156
      %1427 = vmatprep.subr.bf16.mxu0 0
      %1428 = vmatpush2.bf16.msra.mxu0 %v1155
      %1429 = vmatprep.subr.bf16.mxu0 0
      %1430 = vmatpush2.bf16.msra.mxu0 %v1154
      %1431 = vmatprep.subr.bf16.mxu0 0
      %1432 = vmatpush2.bf16.msra.mxu0 %v1153
      %1433 = vmatprep.mubr.bf16.mxu0 %v602
      %1434 = vmatmul.mubr.bf16.gmra.mxu0 %v601
      %v1435 = vpop.f32.mrf.mxu0
      %v1436 = vadd.f32 0.0, %v1435
      %v1437 = vpop.f32.mrf.mxu0
      %v1438 = vpop.f32.mrf.mxu0
      %v1439 = vpop.f32.mrf.mxu0
      %1440 = vdwg.mxu0
      %1441 = vmatprep.subr.bf16.mxu0 0
      %1442 = vmatpush1.bf16.msra.mxu0 %v1168
      %1443 = vmatprep.subr.bf16.mxu0 0
      %1444 = vmatpush1.bf16.msra.mxu0 %v1167
      %1445 = vmatprep.subr.bf16.mxu0 0
      %1446 = vmatpush1.bf16.msra.mxu0 %v1166
      %1447 = vmatprep.subr.bf16.mxu0 0
      %1448 = vmatpush1.bf16.msra.mxu0 %v1165
      %1449 = vmatprep.subr.bf16.mxu0 0
      %1450 = vmatpush1.bf16.msra.mxu0 %v1164
      %1451 = vmatprep.subr.bf16.mxu0 0
      %1452 = vmatpush1.bf16.msra.mxu0 %v1163
      %1453 = vmatprep.subr.bf16.mxu0 0
      %1454 = vmatpush1.bf16.msra.mxu0 %v1162
      %1455 = vmatprep.subr.bf16.mxu0 0
      %1456 = vmatpush1.bf16.msra.mxu0 %v1161
      %1457 = vmatprep.subr.bf16.mxu0 0
      %1458 = vmatpush2.bf16.msra.mxu0 %v1176
      %1459 = vmatprep.subr.bf16.mxu0 0
      %1460 = vmatpush2.bf16.msra.mxu0 %v1175
      %1461 = vmatprep.subr.bf16.mxu0 0
      %1462 = vmatpush2.bf16.msra.mxu0 %v1174
      %1463 = vmatprep.subr.bf16.mxu0 0
      %1464 = vmatpush2.bf16.msra.mxu0 %v1173
      %1465 = vmatprep.subr.bf16.mxu0 0
      %1466 = vmatpush2.bf16.msra.mxu0 %v1172
      %1467 = vmatprep.subr.bf16.mxu0 0
      %1468 = vmatpush2.bf16.msra.mxu0 %v1171
      %1469 = vmatprep.subr.bf16.mxu0 0
      %1470 = vmatpush2.bf16.msra.mxu0 %v1170
      %1471 = vmatprep.subr.bf16.mxu0 0
      %1472 = vmatpush2.bf16.msra.mxu0 %v1169
      %1473 = vmatprep.mubr.bf16.mxu0 %v604
      %1474 = vmatmul.mubr.bf16.gmra.mxu0 %v603
      %v1475 = vpop.f32.mrf.mxu0
      %v1476 = vadd.f32 %v1436, %v1475
      %v1477 = vpop.f32.mrf.mxu0
      %v1478 = vpop.f32.mrf.mxu0
      %v1479 = vpop.f32.mrf.mxu0
      %1480 = vdwg.mxu0
      %1481 = vmatprep.subr.bf16.mxu0 0
      %1482 = vmatpush1.bf16.msra.mxu0 %v1184
      %1483 = vmatprep.subr.bf16.mxu0 0
      %1484 = vmatpush1.bf16.msra.mxu0 %v1183
      %1485 = vmatprep.subr.bf16.mxu0 0
      %1486 = vmatpush1.bf16.msra.mxu0 %v1182
      %1487 = vmatprep.subr.bf16.mxu0 0
      %1488 = vmatpush1.bf16.msra.mxu0 %v1181
      %1489 = vmatprep.subr.bf16.mxu0 0
      %1490 = vmatpush1.bf16.msra.mxu0 %v1180
      %1491 = vmatprep.subr.bf16.mxu0 0
      %1492 = vmatpush1.bf16.msra.mxu0 %v1179
      %1493 = vmatprep.subr.bf16.mxu0 0
      %1494 = vmatpush1.bf16.msra.mxu0 %v1178
      %1495 = vmatprep.subr.bf16.mxu0 0
      %1496 = vmatpush1.bf16.msra.mxu0 %v1177
      %1497 = vmatprep.subr.bf16.mxu0 0
      %1498 = vmatpush2.bf16.msra.mxu0 %v1192
      %1499 = vmatprep.subr.bf16.mxu0 0
      %1500 = vmatpush2.bf16.msra.mxu0 %v1191
      %1501 = vmatprep.subr.bf16.mxu0 0
      %1502 = vmatpush2.bf16.msra.mxu0 %v1190
      %1503 = vmatprep.subr.bf16.mxu0 0
      %1504 = vmatpush2.bf16.msra.mxu0 %v1189
      %1505 = vmatprep.subr.bf16.mxu0 0
      %1506 = vmatpush2.bf16.msra.mxu0 %v1188
      %1507 = vmatprep.subr.bf16.mxu0 0
      %1508 = vmatpush2.bf16.msra.mxu0 %v1187
      %1509 = vmatprep.subr.bf16.mxu0 0
      %1510 = vmatpush2.bf16.msra.mxu0 %v1186
      %1511 = vmatprep.subr.bf16.mxu0 0
      %1512 = vmatpush2.bf16.msra.mxu0 %v1185
      %1513 = vmatprep.mubr.bf16.mxu0 %v606
      %1514 = vmatmul.mubr.bf16.gmra.mxu0 %v605
      %v1515 = vpop.f32.mrf.mxu0
      %v1516 = vadd.f32 %v1476, %v1515
      %v1517 = vpop.f32.mrf.mxu0
      %v1518 = vpop.f32.mrf.mxu0
      %v1519 = vpop.f32.mrf.mxu0
      %1520 = vdwg.mxu0
      %1521 = vmatprep.subr.bf16.mxu0 0
      %1522 = vmatpush1.bf16.msra.mxu0 %v1200
      %1523 = vmatprep.subr.bf16.mxu0 0
      %1524 = vmatpush1.bf16.msra.mxu0 %v1199
      %1525 = vmatprep.subr.bf16.mxu0 0
      %1526 = vmatpush1.bf16.msra.mxu0 %v1198
      %1527 = vmatprep.subr.bf16.mxu0 0
      %1528 = vmatpush1.bf16.msra.mxu0 %v1197
      %1529 = vmatprep.subr.bf16.mxu0 0
      %1530 = vmatpush1.bf16.msra.mxu0 %v1196
      %1531 = vmatprep.subr.bf16.mxu0 0
      %1532 = vmatpush1.bf16.msra.mxu0 %v1195
      %1533 = vmatprep.subr.bf16.mxu0 0
      %1534 = vmatpush1.bf16.msra.mxu0 %v1194
      %1535 = vmatprep.subr.bf16.mxu0 0
      %1536 = vmatpush1.bf16.msra.mxu0 %v1193
      %1537 = vmatprep.subr.bf16.mxu0 0
      %1538 = vmatpush2.bf16.msra.mxu0 %v1208
      %1539 = vmatprep.subr.bf16.mxu0 0
      %1540 = vmatpush2.bf16.msra.mxu0 %v1207
      %1541 = vmatprep.subr.bf16.mxu0 0
      %1542 = vmatpush2.bf16.msra.mxu0 %v1206
      %1543 = vmatprep.subr.bf16.mxu0 0
      %1544 = vmatpush2.bf16.msra.mxu0 %v1205
      %1545 = vmatprep.subr.bf16.mxu0 0
      %1546 = vmatpush2.bf16.msra.mxu0 %v1204
      %1547 = vmatprep.subr.bf16.mxu0 0
      %1548 = vmatpush2.bf16.msra.mxu0 %v1203
      %1549 = vmatprep.subr.bf16.mxu0 0
      %1550 = vmatpush2.bf16.msra.mxu0 %v1202
      %1551 = vmatprep.subr.bf16.mxu0 0
      %1552 = vmatpush2.bf16.msra.mxu0 %v1201
      %1553 = vmatprep.mubr.bf16.mxu0 %v608
      %1554 = vmatmul.mubr.bf16.gmra.mxu0 %v607
      %v1555 = vpop.f32.mrf.mxu0
      %v1556 = vadd.f32 %v1516, %v1555
      %v1557 = vpop.f32.mrf.mxu0
      %v1558 = vpop.f32.mrf.mxu0
      %v1559 = vpop.f32.mrf.mxu0
      %1560 = vdwg.mxu0
      %1561 = vmatprep.subr.bf16.mxu0 0
      %1562 = vmatpush1.bf16.msra.mxu0 %v1216
      %1563 = vmatprep.subr.bf16.mxu0 0
      %1564 = vmatpush1.bf16.msra.mxu0 %v1215
      %1565 = vmatprep.subr.bf16.mxu0 0
      %1566 = vmatpush1.bf16.msra.mxu0 %v1214
      %1567 = vmatprep.subr.bf16.mxu0 0
      %1568 = vmatpush1.bf16.msra.mxu0 %v1213
      %1569 = vmatprep.subr.bf16.mxu0 0
      %1570 = vmatpush1.bf16.msra.mxu0 %v1212
      %1571 = vmatprep.subr.bf16.mxu0 0
      %1572 = vmatpush1.bf16.msra.mxu0 %v1211
      %1573 = vmatprep.subr.bf16.mxu0 0
      %1574 = vmatpush1.bf16.msra.mxu0 %v1210
      %1575 = vmatprep.subr.bf16.mxu0 0
      %1576 = vmatpush1.bf16.msra.mxu0 %v1209
      %1577 = vmatprep.subr.bf16.mxu0 0
      %1578 = vmatpush2.bf16.msra.mxu0 %v1224
      %1579 = vmatprep.subr.bf16.mxu0 0
      %1580 = vmatpush2.bf16.msra.mxu0 %v1223
      %1581 = vmatprep.subr.bf16.mxu0 0
      %1582 = vmatpush2.bf16.msra.mxu0 %v1222
      %1583 = vmatprep.subr.bf16.mxu0 0
      %1584 = vmatpush2.bf16.msra.mxu0 %v1221
      %1585 = vmatprep.subr.bf16.mxu0 0
      %1586 = vmatpush2.bf16.msra.mxu0 %v1220
      %1587 = vmatprep.subr.bf16.mxu0 0
      %1588 = vmatpush2.bf16.msra.mxu0 %v1219
      %1589 = vmatprep.subr.bf16.mxu0 0
      %1590 = vmatpush2.bf16.msra.mxu0 %v1218
      %1591 = vmatprep.subr.bf16.mxu0 0
      %1592 = vmatpush2.bf16.msra.mxu0 %v1217
      %1593 = vmatprep.mubr.bf16.mxu0 %v610
      %1594 = vmatmul.mubr.bf16.gmra.mxu0 %v609
      %v1595 = vpop.f32.mrf.mxu0
      %v1596 = vadd.f32 %v1556, %v1595
      %v1597 = vpop.f32.mrf.mxu0
      %v1598 = vpop.f32.mrf.mxu0
      %v1599 = vpop.f32.mrf.mxu0
      %1600 = vdwg.mxu0
      %1601 = vmatprep.subr.bf16.mxu0 0
      %1602 = vmatpush1.bf16.msra.mxu0 %v1232
      %1603 = vmatprep.subr.bf16.mxu0 0
      %1604 = vmatpush1.bf16.msra.mxu0 %v1231
      %1605 = vmatprep.subr.bf16.mxu0 0
      %1606 = vmatpush1.bf16.msra.mxu0 %v1230
      %1607 = vmatprep.subr.bf16.mxu0 0
      %1608 = vmatpush1.bf16.msra.mxu0 %v1229
      %1609 = vmatprep.subr.bf16.mxu0 0
      %1610 = vmatpush1.bf16.msra.mxu0 %v1228
      %1611 = vmatprep.subr.bf16.mxu0 0
      %1612 = vmatpush1.bf16.msra.mxu0 %v1227
      %1613 = vmatprep.subr.bf16.mxu0 0
      %1614 = vmatpush1.bf16.msra.mxu0 %v1226
      %1615 = vmatprep.subr.bf16.mxu0 0
      %1616 = vmatpush1.bf16.msra.mxu0 %v1225
      %1617 = vmatprep.subr.bf16.mxu0 0
      %1618 = vmatpush2.bf16.msra.mxu0 %v1240
      %1619 = vmatprep.subr.bf16.mxu0 0
      %1620 = vmatpush2.bf16.msra.mxu0 %v1239
      %1621 = vmatprep.subr.bf16.mxu0 0
      %1622 = vmatpush2.bf16.msra.mxu0 %v1238
      %1623 = vmatprep.subr.bf16.mxu0 0
      %1624 = vmatpush2.bf16.msra.mxu0 %v1237
      %1625 = vmatprep.subr.bf16.mxu0 0
      %1626 = vmatpush2.bf16.msra.mxu0 %v1236
      %1627 = vmatprep.subr.bf16.mxu0 0
      %1628 = vmatpush2.bf16.msra.mxu0 %v1235
      %1629 = vmatprep.subr.bf16.mxu0 0
      %1630 = vmatpush2.bf16.msra.mxu0 %v1234
      %1631 = vmatprep.subr.bf16.mxu0 0
      %1632 = vmatpush2.bf16.msra.mxu0 %v1233
      %1633 = vmatprep.mubr.bf16.mxu0 %v612
      %1634 = vmatmul.mubr.bf16.gmra.mxu0 %v611
      %v1635 = vpop.f32.mrf.mxu0
      %v1636 = vadd.f32 %v1596, %v1635
      %v1637 = vpop.f32.mrf.mxu0
      %v1638 = vpop.f32.mrf.mxu0
      %v1639 = vpop.f32.mrf.mxu0
      %1640 = vdwg.mxu0
      %1641 = vmatprep.subr.bf16.mxu0 0
      %1642 = vmatpush1.bf16.msra.mxu0 %v1248
      %1643 = vmatprep.subr.bf16.mxu0 0
      %1644 = vmatpush1.bf16.msra.mxu0 %v1247
      %1645 = vmatprep.subr.bf16.mxu0 0
      %1646 = vmatpush1.bf16.msra.mxu0 %v1246
      %1647 = vmatprep.subr.bf16.mxu0 0
      %1648 = vmatpush1.bf16.msra.mxu0 %v1245
      %1649 = vmatprep.subr.bf16.mxu0 0
      %1650 = vmatpush1.bf16.msra.mxu0 %v1244
      %1651 = vmatprep.subr.bf16.mxu0 0
      %1652 = vmatpush1.bf16.msra.mxu0 %v1243
      %1653 = vmatprep.subr.bf16.mxu0 0
      %1654 = vmatpush1.bf16.msra.mxu0 %v1242
      %1655 = vmatprep.subr.bf16.mxu0 0
      %1656 = vmatpush1.bf16.msra.mxu0 %v1241
      %1657 = vmatprep.subr.bf16.mxu0 0
      %1658 = vmatpush2.bf16.msra.mxu0 %v1256
      %1659 = vmatprep.subr.bf16.mxu0 0
      %1660 = vmatpush2.bf16.msra.mxu0 %v1255
      %1661 = vmatprep.subr.bf16.mxu0 0
      %1662 = vmatpush2.bf16.msra.mxu0 %v1254
      %1663 = vmatprep.subr.bf16.mxu0 0
      %1664 = vmatpush2.bf16.msra.mxu0 %v1253
      %1665 = vmatprep.subr.bf16.mxu0 0
      %1666 = vmatpush2.bf16.msra.mxu0 %v1252
      %1667 = vmatprep.subr.bf16.mxu0 0
      %1668 = vmatpush2.bf16.msra.mxu0 %v1251
      %1669 = vmatprep.subr.bf16.mxu0 0
      %1670 = vmatpush2.bf16.msra.mxu0 %v1250
      %1671 = vmatprep.subr.bf16.mxu0 0
      %1672 = vmatpush2.bf16.msra.mxu0 %v1249
      %1673 = vmatprep.mubr.bf16.mxu0 %v614
      %1674 = vmatmul.mubr.bf16.gmra.mxu0 %v613
      %v1675 = vpop.f32.mrf.mxu0
      %v1676 = vadd.f32 %v1636, %v1675
      %v1677 = vpop.f32.mrf.mxu0
      %v1678 = vpop.f32.mrf.mxu0
      %v1679 = vpop.f32.mrf.mxu0
      %1680 = vdwg.mxu0
      %1681 = vmatprep.subr.bf16.mxu0 0
      %1682 = vmatpush1.bf16.msra.mxu0 %v1264
      %1683 = vmatprep.subr.bf16.mxu0 0
      %1684 = vmatpush1.bf16.msra.mxu0 %v1263
      %1685 = vmatprep.subr.bf16.mxu0 0
      %1686 = vmatpush1.bf16.msra.mxu0 %v1262
      %1687 = vmatprep.subr.bf16.mxu0 0
      %1688 = vmatpush1.bf16.msra.mxu0 %v1261
      %1689 = vmatprep.subr.bf16.mxu0 0
      %1690 = vmatpush1.bf16.msra.mxu0 %v1260
      %1691 = vmatprep.subr.bf16.mxu0 0
      %1692 = vmatpush1.bf16.msra.mxu0 %v1259
      %1693 = vmatprep.subr.bf16.mxu0 0
      %1694 = vmatpush1.bf16.msra.mxu0 %v1258
      %1695 = vmatprep.subr.bf16.mxu0 0
      %1696 = vmatpush1.bf16.msra.mxu0 %v1257
      %1697 = vmatprep.subr.bf16.mxu0 0
      %1698 = vmatpush2.bf16.msra.mxu0 %v1272
      %1699 = vmatprep.subr.bf16.mxu0 0
      %1700 = vmatpush2.bf16.msra.mxu0 %v1271
      %1701 = vmatprep.subr.bf16.mxu0 0
      %1702 = vmatpush2.bf16.msra.mxu0 %v1270
      %1703 = vmatprep.subr.bf16.mxu0 0
      %1704 = vmatpush2.bf16.msra.mxu0 %v1269
      %1705 = vmatprep.subr.bf16.mxu0 0
      %1706 = vmatpush2.bf16.msra.mxu0 %v1268
      %1707 = vmatprep.subr.bf16.mxu0 0
      %1708 = vmatpush2.bf16.msra.mxu0 %v1267
      %1709 = vmatprep.subr.bf16.mxu0 0
      %1710 = vmatpush2.bf16.msra.mxu0 %v1266
      %1711 = vmatprep.subr.bf16.mxu0 0
      %1712 = vmatpush2.bf16.msra.mxu0 %v1265
      %1713 = vmatprep.mubr.bf16.mxu0 %v616
      %1714 = vmatmul.mubr.bf16.gmra.mxu0 %v615
      %v1715 = vpop.f32.mrf.mxu0
      %v1716 = vadd.f32 %v1676, %v1715
      %v1717 = vpop.f32.mrf.mxu0
      %v1718 = vpop.f32.mrf.mxu0
      %v1719 = vpop.f32.mrf.mxu0
      %1720 = vdwg.mxu0
      %v1721 = vadd.f32 %v312, %v1716
      %1722 = vst [vmem:[#allocation2] sm:$0xff] %v1721
      %p1723 = scmp.eq.s32.totalorder %s24, 5
      // Predicated region
      $region45: #{lc_rnn_forward.2} parent=35 // pred_check
        %p1724 = pneg %p1723
      $region46: #{lc_rnn_forward.2} parent=35 // pred_check_branch
        %1726 = sbr.rel (%p1724) target = $region48
      $region47: #{lc_rnn_forward.2} parent=35 // pred_region
        %v1727 = vld [vmem:[#allocation3] sm:$0xff]
        %v1728 = vld [vmem:[#allocation2] sm:$0xff]
        %v1729 = vmax.f32 %v1728, 0.0
        %v1730 = vadd.f32 %v1727, %v1729
        %1731 = vst [vmem:[#allocation3] sm:$0xff] %v1730
        %p1732 = scmp.eq.s32.totalorder %s23, 1
        // Predicated region
        $region49: #{lc_rnn_forward.2} parent=47 // pred_check
          %p1733 = pneg %p1732
        $region50: #{lc_rnn_forward.2} parent=47 // pred_check_branch
          %1735 = sbr.rel (%p1733) target = $region52
        $region51: #{lc_rnn_forward.2} parent=47 // pred_region
          %v1736 = vld [vmem:[#allocation3] sm:$0xff]
          %v1737 = vmul.f32 %v1736, 0.5
          %v1738 = vpack.c.bf16 %v1737, %v1737
          %v1739 = vld [vmem:[%s2] sm:$0xff]
          %v1740 = vld [vmem:[%s2 + $0x8] sm:$0xf]
          %v1741 = vld [vmem:[%s2 + $0xc] sm:$0xff]
          %v1742 = vld [vmem:[%s2 + $0x14] sm:$0xf]
          %v1743 = vld [vmem:[%s2 + $0x18] sm:$0xff]
          %v1744 = vld [vmem:[%s2 + $0x20] sm:$0xf]
          %v1745 = vld [vmem:[%s2 + $0x24] sm:$0xff]
          %v1746 = vld [vmem:[%s2 + $0x2c] sm:$0xf]
          %v1747 = vld [vmem:[%s2 + $0x30] sm:$0xff]
          %v1748 = vld [vmem:[%s2 + $0x38] sm:$0xf]
          %v1749 = vld [vmem:[%s2 + $0x3c] sm:$0xff]
          %v1750 = vld [vmem:[%s2 + $0x44] sm:$0xf]
          %v1751 = vld [vmem:[%s2 + $0x48] sm:$0xff]
          %v1752 = vld [vmem:[%s2 + $0x50] sm:$0xf]
          %v1753 = vld [vmem:[%s2 + $0x54] sm:$0xff]
          %v1754 = vld [vmem:[%s2 + $0x5c] sm:$0xf]
          %v1755 = vld [vmem:[%s2 + $0x60] sm:$0xff]
          %v1756 = vld [vmem:[%s2 + $0x68] sm:$0xf]
          %v1757 = vld [vmem:[%s2 + $0x6c] sm:$0xff]
          %v1758 = vld [vmem:[%s2 + $0x74] sm:$0xf]
          %v1759 = vld [vmem:[%s2 + $0x78] sm:$0xff]
          %v1760 = vld [vmem:[%s2 + $0x80] sm:$0xf]
          %v1761 = vld [vmem:[%s2 + $0x84] sm:$0xff]
          %v1762 = vld [vmem:[%s2 + $0x8c] sm:$0xf]
          %v1763 = vld [vmem:[%s2 + $0x90] sm:$0xff]
          %v1764 = vld [vmem:[%s2 + $0x98] sm:$0xf]
          %v1765 = vld [vmem:[%s2 + $0x9c] sm:$0xff]
          %v1766 = vld [vmem:[%s2 + $0xa4] sm:$0xf]
          %v1767 = vld [vmem:[%s2 + $0xa8] sm:$0xff]
          %v1768 = vld [vmem:[%s2 + $0xb0] sm:$0xf]
          %v1769 = vld [vmem:[%s2 + $0xb4] sm:$0xff]
          %v1770 = vld [vmem:[%s2 + $0xbc] sm:$0xf]
          %v1771 = vld [vmem:[%s3] sm:$0x7]
          %v1773 = vlaneseq
          %v1774 = vshrl.u32 %v1773, 7
          %v1775 = vsub.s32 0, %v1774
          %v1776 = vrot.slane %v1771, %v1775
          %v1777 = vlaneseq
          %v1778 = vshrl.u32 %v1777, 7
          %v1779 = vsub.s32 1, %v1778
          %v1780 = vrot.slane %v1771, %v1779
          %v1781 = vlaneseq
          %v1782 = vshrl.u32 %v1781, 7
          %v1783 = vsub.s32 2, %v1782
          %v1784 = vrot.slane %v1771, %v1783
          %v1820 = vunpack.c.l.b16 %v1739
          %v1821 = vunpack.c.h.b16 %v1739
          %v1822 = vunpack.c.l.b16 %v1740
          %v1823 = vunpack.c.l.b16 %v1741
          %v1824 = vunpack.c.h.b16 %v1741
          %v1825 = vunpack.c.l.b16 %v1742
          %v1826 = vunpack.c.l.b16 %v1743
          %v1827 = vunpack.c.h.b16 %v1743
          %v1828 = vunpack.c.l.b16 %v1744
          %v1829 = vunpack.c.l.b16 %v1745
          %v1830 = vunpack.c.h.b16 %v1745
          %v1831 = vunpack.c.l.b16 %v1746
          %v1832 = vunpack.c.l.b16 %v1747
          %v1833 = vunpack.c.h.b16 %v1747
          %v1834 = vunpack.c.l.b16 %v1748
          %v1835 = vunpack.c.l.b16 %v1749
          %v1836 = vunpack.c.h.b16 %v1749
          %v1837 = vunpack.c.l.b16 %v1750
          %v1838 = vunpack.c.l.b16 %v1751
          %v1839 = vunpack.c.h.b16 %v1751
          %v1840 = vunpack.c.l.b16 %v1752
          %v1841 = vunpack.c.l.b16 %v1753
          %v1842 = vunpack.c.h.b16 %v1753
          %v1843 = vunpack.c.l.b16 %v1754
          %v1844 = vunpack.c.l.b16 %v1755
          %v1845 = vunpack.c.h.b16 %v1755
          %v1846 = vunpack.c.l.b16 %v1756
          %v1847 = vunpack.c.l.b16 %v1757
          %v1848 = vunpack.c.h.b16 %v1757
          %v1849 = vunpack.c.l.b16 %v1758
          %v1850 = vunpack.c.l.b16 %v1759
          %v1851 = vunpack.c.h.b16 %v1759
          %v1852 = vunpack.c.l.b16 %v1760
          %v1853 = vunpack.c.l.b16 %v1761
          %v1854 = vunpack.c.h.b16 %v1761
          %v1855 = vunpack.c.l.b16 %v1762
          %v1856 = vunpack.c.l.b16 %v1763
          %v1857 = vunpack.c.h.b16 %v1763
          %v1858 = vunpack.c.l.b16 %v1764
          %v1859 = vunpack.c.l.b16 %v1765
          %v1860 = vunpack.c.h.b16 %v1765
          %v1861 = vunpack.c.l.b16 %v1766
          %v1862 = vunpack.c.l.b16 %v1767
          %v1863 = vunpack.c.h.b16 %v1767
          %v1864 = vunpack.c.l.b16 %v1768
          %v1865 = vunpack.c.l.b16 %v1769
          %v1866 = vunpack.c.h.b16 %v1769
          %v1867 = vunpack.c.l.b16 %v1770
          %v1868 = vpack.c.b16 %v1823, %v1820
          %v1869 = vpack.c.b16 %v1824, %v1821
          %v1870 = vpack.c.b16 %v1825, %v1822
          %v1871 = vpack.c.b16 %v1829, %v1826
          %v1872 = vpack.c.b16 %v1830, %v1827
          %v1873 = vpack.c.b16 %v1831, %v1828
          %v1874 = vpack.c.b16 %v1835, %v1832
          %v1875 = vpack.c.b16 %v1836, %v1833
          %v1876 = vpack.c.b16 %v1837, %v1834
          %v1877 = vpack.c.b16 %v1841, %v1838
          %v1878 = vpack.c.b16 %v1842, %v1839
          %v1879 = vpack.c.b16 %v1843, %v1840
          %v1880 = vpack.c.b16 %v1847, %v1844
          %v1881 = vpack.c.b16 %v1848, %v1845
          %v1882 = vpack.c.b16 %v1849, %v1846
          %v1883 = vpack.c.b16 %v1853, %v1850
          %v1884 = vpack.c.b16 %v1854, %v1851
          %v1885 = vpack.c.b16 %v1855, %v1852
          %v1886 = vpack.c.b16 %v1859, %v1856
          %v1887 = vpack.c.b16 %v1860, %v1857
          %v1888 = vpack.c.b16 %v1861, %v1858
          %v1889 = vpack.c.b16 %v1865, %v1862
          %v1890 = vpack.c.b16 %v1866, %v1863
          %v1891 = vpack.c.b16 %v1867, %v1864
          %1916 = vmatprep.subr.bf16.mxu0 %v1890
          %1917 = vmatpush1.bf16.msra.mxu0 %v1889
          %1918 = vmatprep.subr.bf16.mxu0 %v1887
          %1919 = vmatpush1.bf16.msra.mxu0 %v1886
          %1920 = vmatprep.subr.bf16.mxu0 %v1884
          %1921 = vmatpush1.bf16.msra.mxu0 %v1883
          %1922 = vmatprep.subr.bf16.mxu0 %v1881
          %1923 = vmatpush1.bf16.msra.mxu0 %v1880
          %1924 = vmatprep.subr.bf16.mxu0 %v1878
          %1925 = vmatpush1.bf16.msra.mxu0 %v1877
          %1926 = vmatprep.subr.bf16.mxu0 %v1875
          %1927 = vmatpush1.bf16.msra.mxu0 %v1874
          %1928 = vmatprep.subr.bf16.mxu0 %v1872
          %1929 = vmatpush1.bf16.msra.mxu0 %v1871
          %1930 = vmatprep.subr.bf16.mxu0 %v1869
          %1931 = vmatpush1.bf16.msra.mxu0 %v1868
          %1932 = vmatprep.subr.bf16.mxu0 0
          %1933 = vmatpush2.bf16.msra.mxu0 0
          %1934 = vmatprep.subr.bf16.mxu0 0
          %1935 = vmatpush2.bf16.msra.mxu0 0
          %1936 = vmatprep.subr.bf16.mxu0 0
          %1937 = vmatpush2.bf16.msra.mxu0 0
          %1938 = vmatprep.subr.bf16.mxu0 0
          %1939 = vmatpush2.bf16.msra.mxu0 0
          %1940 = vmatprep.subr.bf16.mxu0 0
          %1941 = vmatpush2.bf16.msra.mxu0 0
          %1942 = vmatprep.subr.bf16.mxu0 0
          %1943 = vmatpush2.bf16.msra.mxu0 0
          %1944 = vmatprep.subr.bf16.mxu0 0
          %1945 = vmatpush2.bf16.msra.mxu0 0
          %1946 = vmatprep.subr.bf16.mxu0 0
          %1947 = vmatpush2.bf16.msra.mxu0 0
          %1948 = vmatprep.mubr.bf16.mxu0 0
          %1949 = vmatmul.mubr.bf16.gmra.mxu0 %v1738
          %v1950 = vpop.f32.mrf.mxu0
          %v1951 = vadd.f32 %v1776, %v1950
          %v1952 = vpop.f32.mrf.mxu0
          %v1953 = vadd.f32 %v1780, %v1952
          %v1954 = vpop.f32.mrf.mxu0
          %v1955 = vpop.f32.mrf.mxu0
          %1956 = vdwg.mxu0
          %1957 = vmatprep.subr.bf16.mxu0 0
          %1958 = vmatpush1.bf16.msra.mxu0 %v1891
          %1959 = vmatprep.subr.bf16.mxu0 0
          %1960 = vmatpush1.bf16.msra.mxu0 %v1888
          %1961 = vmatprep.subr.bf16.mxu0 0
          %1962 = vmatpush1.bf16.msra.mxu0 %v1885
          %1963 = vmatprep.subr.bf16.mxu0 0
          %1964 = vmatpush1.bf16.msra.mxu0 %v1882
          %1965 = vmatprep.subr.bf16.mxu0 0
          %1966 = vmatpush1.bf16.msra.mxu0 %v1879
          %1967 = vmatprep.subr.bf16.mxu0 0
          %1968 = vmatpush1.bf16.msra.mxu0 %v1876
          %1969 = vmatprep.subr.bf16.mxu0 0
          %1970 = vmatpush1.bf16.msra.mxu0 %v1873
          %1971 = vmatprep.subr.bf16.mxu0 0
          %1972 = vmatpush1.bf16.msra.mxu0 %v1870
          %1973 = vmatprep.subr.bf16.mxu0 0
          %1974 = vmatpush2.bf16.msra.mxu0 0
          %1975 = vmatprep.subr.bf16.mxu0 0
          %1976 = vmatpush2.bf16.msra.mxu0 0
          %1977 = vmatprep.subr.bf16.mxu0 0
          %1978 = vmatpush2.bf16.msra.mxu0 0
          %1979 = vmatprep.subr.bf16.mxu0 0
          %1980 = vmatpush2.bf16.msra.mxu0 0
          %1981 = vmatprep.subr.bf16.mxu0 0
          %1982 = vmatpush2.bf16.msra.mxu0 0
          %1983 = vmatprep.subr.bf16.mxu0 0
          %1984 = vmatpush2.bf16.msra.mxu0 0
          %1985 = vmatprep.subr.bf16.mxu0 0
          %1986 = vmatpush2.bf16.msra.mxu0 0
          %1987 = vmatprep.subr.bf16.mxu0 0
          %1988 = vmatpush2.bf16.msra.mxu0 0
          %1989 = vmatprep.mubr.bf16.mxu0 0
          %1990 = vmatmul.mubr.bf16.gmra.mxu0 %v1738
          %v1991 = vpop.f32.mrf.mxu0
          %v1992 = vadd.f32 %v1784, %v1991
          %v1993 = vpop.f32.mrf.mxu0
          %v1994 = vpop.f32.mrf.mxu0
          %v1995 = vpop.f32.mrf.mxu0
          %1996 = vdwg.mxu0
          %1997 = vst [vmem:[%s299] sm:$0xff] %v1951
          %1998 = vst [vmem:[%s299 + $0x8] sm:$0xff] %v1953
          %1999 = vst [vmem:[%s299 + $0x10] sm:$0xff] %v1992
        $region52: #{lc_rnn_forward.2} parent=47 // pred_fallthru
          _
      $region48: #{lc_rnn_forward.2} parent=35 // pred_fallthru
        _
      %p2000 = scmp.lt.s32.totalorder %s21, 3
      %s2001 = scalar_select %p2000, %s21, 3
      %p2002 = scmp.lt.s32.totalorder %s22, 0
      %s2003 = scalar_select %p2002, %s22, 0
      %s2004 = smul.addr %s2003, 3
      %s2005 = smul.addr %s2001, 3
      %s2006 = sadd.s32 %s2004, %s2005
      %s2007 = smul.addr %s2006, 8
      %s2008 = scalar_lea.vmem %s4, %s2007
      // Predicated region
      $region53: #{lc_rnn_forward.2} parent=35 // pred_check
        %p2009 = pneg %p161
      $region54: #{lc_rnn_forward.2} parent=35 // pred_check_branch
        %2011 = sbr.rel (%p2009) target = $region56
      $region55: #{lc_rnn_forward.2} parent=35 // pred_region
        _
      $region56: #{lc_rnn_forward.2} parent=35 // pred_fallthru
        _
    $region36: #{lc_rnn_forward.2} parent=5 // pred_fallthru
      _
    %p2012 = scmp.le.s32.totalorder 2, %s10
    // Predicated region
    $region57: #{lc_rnn_forward.2} parent=5 // pred_check
      %p2013 = pneg %p2012
    $region58: #{lc_rnn_forward.2} parent=5 // pred_check_branch
      %2015 = sbr.rel (%p2013) target = $region60
    $region59: #{lc_rnn_forward.2} parent=5 // pred_region
      %s2016 = ssub.s32 %s10, 2
      // Predicated region
      $region61: #{lc_rnn_forward.2} parent=59 // pred_check
        %p2017 = pneg %p167
      $region62: #{lc_rnn_forward.2} parent=59 // pred_check_branch
        %2019 = sbr.rel (%p2017) target = $region64
      $region63: #{lc_rnn_forward.2} parent=59 // pred_region
        %p2020 = scmp.lt.s32.totalorder %s25, 3
        %s2021 = scalar_select %p2020, %s25, 3
        %p2022 = scmp.lt.s32.totalorder %s26, 0
        %s2023 = scalar_select %p2022, %s26, 0
        %s2024 = smul.addr %s2023, 3
        %s2025 = smul.addr %s2021, 3
        %s2026 = sadd.s32 %s2024, %s2025
        %s2027 = smul.addr %s2026, 8
        %s2028 = scalar_lea.vmem %s4, %s2027
      $region64: #{lc_rnn_forward.2} parent=59 // pred_fallthru
        _
    $region60: #{lc_rnn_forward.2} parent=5 // pred_fallthru
      _
  $region6: #{lc_rnn_forward.2} parent=0 // loop_footer
    %s14 = sadd.s32 1, %s10
  $region7: #{lc_rnn_forward.2} parent=0 // loop_footer_branch
    %9 = sbr.rel target = $region3
  $region8: #{lc_rnn_forward.2} parent=0 // loop_exit
    _

// kernel: lc_rnn_forward.3
$region0: #{lc_rnn_forward.3}
  #allocation0 [shape = 'u32[]', space=smem, size = 0x4, offset = 0x4, fixed_abs, tag = 'smem constant byte address 0x4 - core index']
  #allocation1 [shape = 'u32[144,128]{1,0:T(1,128)}', space=vmem, size = 0x12000, scoped, tag = 'internal scratch']
  #allocation2 [shape = 'f32[8,128]{1,0:T(8,128)}', space=vmem, size = 0x1000, scoped, tag = 'scratch operand']
  %s0 = inlined_call_operand.vmem [shape: f32[4,8,384], index: 0, kind: input, shape index: {}]
  %s1 = inlined_call_operand.vmem [shape: bf16[128,256], index: 1, kind: input, shape index: {}]
  %s2 = inlined_call_operand.vmem [shape: bf16[128,128], index: 2, kind: input, shape index: {}]
  %s3 = inlined_call_operand.vmem [shape: f32[1,128], index: 3, kind: input, shape index: {}]
  %s4 = inlined_call_operand.vmem [shape: f32[1,128], index: 4, kind: input, shape index: {}]
  %s5 = inlined_call_operand.vmem [shape: f32[1,128], index: 5, kind: input, shape index: {}]
  %s6 = inlined_call_operand.vmem [shape: f32[1,128], index: 6, kind: input, shape index: {}]
  %s7 = inlined_call_operand.vmem [shape: bf16[128,128], index: 7, kind: input, shape index: {}]
  %s8 = inlined_call_operand.vmem [shape: f32[1,128], index: 8, kind: input, shape index: {}]
  %s9 = inlined_call_operand.hbm [shape: f32[2,128], index: 9, kind: output, shape index: {0}]
  %s10 = inlined_call_operand.hbm [shape: f32[2,128], index: 10, kind: output, shape index: {1}]
  %11 = xla_tuple %s9, %s10
  %s12 = sld [smem:[#allocation0]]
  $region62: #{lc_rnn_forward.3} parent=0
    _
  %s14 = ssub.s32 1, %s12
  %s15 = scalar_select 0, %s14, %s12
  $region1: #{lc_rnn_forward.3} parent=0
    #allocation3 [shape = 'u8[1024]{0}', space=vmem, size = 0x400, scoped, tag = 'output window, operand 0, single buffered']
    #allocation4 [shape = 's32[1]{0}', space=sflag, size = 0x4, scoped, tag = 'scoped memory for lc_rnn_forward.3']
    #allocation5 [shape = 'u8[1024]{0}', space=vmem, size = 0x400, scoped, tag = 'output window, operand 1, single buffered']
    #allocation6 [shape = 's32[1]{0}', space=sflag, size = 0x4, scoped, tag = 'scoped memory for lc_rnn_forward.3']
    %16 = vsyncpa [#allocation4], 0
    %17 = vsyncpa [#allocation6], 0
    // Predicated region
    $region2: #{lc_rnn_forward.3} parent=1 // pred_check
      _
    $region3: #{lc_rnn_forward.3} parent=1 // pred_check_branch
      %19 = sbr.rel (0) target = $region5
    $region4: #{lc_rnn_forward.3} parent=1 // pred_region
      _
    $region5: #{lc_rnn_forward.3} parent=1 // pred_fallthru
      _
    // Predicated region
    $region6: #{lc_rnn_forward.3} parent=1 // pred_check
      _
    $region7: #{lc_rnn_forward.3} parent=1 // pred_check_branch
      %21 = sbr.rel (0) target = $region9
    $region8: #{lc_rnn_forward.3} parent=1 // pred_region
      _
    $region9: #{lc_rnn_forward.3} parent=1 // pred_fallthru
      _
    // Predicated region
    $region10: #{lc_rnn_forward.3} parent=1 // pred_check
      _
    $region11: #{lc_rnn_forward.3} parent=1 // pred_check_branch
      %23 = sbr.rel (0) target = $region13
    $region12: #{lc_rnn_forward.3} parent=1 // pred_region
      _
    $region13: #{lc_rnn_forward.3} parent=1 // pred_fallthru
      _
    // Predicated region
    $region14: #{lc_rnn_forward.3} parent=1 // pred_check
      _
    $region15: #{lc_rnn_forward.3} parent=1 // pred_check_branch
      %25 = sbr.rel (0) target = $region17
    $region16: #{lc_rnn_forward.3} parent=1 // pred_region
      _
    $region17: #{lc_rnn_forward.3} parent=1 // pred_fallthru
      _
    // Predicated region
    $region18: #{lc_rnn_forward.3} parent=1 // pred_check
      _
    $region19: #{lc_rnn_forward.3} parent=1 // pred_check_branch
      %27 = sbr.rel (0) target = $region21
    $region20: #{lc_rnn_forward.3} parent=1 // pred_region
      _
    $region21: #{lc_rnn_forward.3} parent=1 // pred_fallthru
      _
    // Predicated region
    $region22: #{lc_rnn_forward.3} parent=1 // pred_check
      _
    $region23: #{lc_rnn_forward.3} parent=1 // pred_check_branch
      %29 = sbr.rel (0) target = $region25
    $region24: #{lc_rnn_forward.3} parent=1 // pred_region
      _
    $region25: #{lc_rnn_forward.3} parent=1 // pred_fallthru
      _
    // Predicated region
    $region26: #{lc_rnn_forward.3} parent=1 // pred_check
      _
    $region27: #{lc_rnn_forward.3} parent=1 // pred_check_branch
      %31 = sbr.rel (0) target = $region29
    $region28: #{lc_rnn_forward.3} parent=1 // pred_region
      _
    $region29: #{lc_rnn_forward.3} parent=1 // pred_fallthru
      _
    // Predicated region
    $region30: #{lc_rnn_forward.3} parent=1 // pred_check
      _
    $region31: #{lc_rnn_forward.3} parent=1 // pred_check_branch
      %33 = sbr.rel (0) target = $region33
    $region32: #{lc_rnn_forward.3} parent=1 // pred_region
      _
    $region33: #{lc_rnn_forward.3} parent=1 // pred_fallthru
      _
    // Predicated region
    $region34: #{lc_rnn_forward.3} parent=1 // pred_check
      _
    $region35: #{lc_rnn_forward.3} parent=1 // pred_check_branch
      %35 = sbr.rel (0) target = $region37
    $region36: #{lc_rnn_forward.3} parent=1 // pred_region
      _
    $region37: #{lc_rnn_forward.3} parent=1 // pred_fallthru
      _
    %p37 = scmp.eq.s32.totalorder 0, 0
    // Predicated region
    $region38: #{lc_rnn_forward.3} parent=1 // pred_check
      %p38 = pneg %p37
    $region39: #{lc_rnn_forward.3} parent=1 // pred_check_branch
      %40 = sbr.rel (%p38) target = $region41
    $region40: #{lc_rnn_forward.3} parent=1 // pred_region
      %41 = vst [vmem:[#allocation2] sm:$0xff] 0.0
    $region41: #{lc_rnn_forward.3} parent=1 // pred_fallthru
      _
    %v42 = vld [vmem:[%s1] sm:$0xff]
    %v43 = vld [vmem:[%s1 + $0x8] sm:$0xff]
    %v44 = vld [vmem:[%s1 + $0x10] sm:$0xff]
    %v45 = vld [vmem:[%s1 + $0x18] sm:$0xff]
    %v46 = vld [vmem:[%s1 + $0x20] sm:$0xff]
    %v47 = vld [vmem:[%s1 + $0x28] sm:$0xff]
    %v48 = vld [vmem:[%s1 + $0x30] sm:$0xff]
    %v49 = vld [vmem:[%s1 + $0x38] sm:$0xff]
    %v50 = vld [vmem:[%s1 + $0x40] sm:$0xff]
    %v51 = vld [vmem:[%s1 + $0x48] sm:$0xff]
    %v52 = vld [vmem:[%s1 + $0x50] sm:$0xff]
    %v53 = vld [vmem:[%s1 + $0x58] sm:$0xff]
    %v54 = vld [vmem:[%s1 + $0x60] sm:$0xff]
    %v55 = vld [vmem:[%s1 + $0x68] sm:$0xff]
    %v56 = vld [vmem:[%s1 + $0x70] sm:$0xff]
    %v57 = vld [vmem:[%s1 + $0x78] sm:$0xff]
    %v58 = vld [vmem:[%s2] sm:$0xf]
    %v59 = vld [vmem:[%s2 + $0x4] sm:$0xf]
    %v60 = vld [vmem:[%s2 + $0x8] sm:$0xf]
    %v61 = vld [vmem:[%s2 + $0xc] sm:$0xf]
    %v62 = vld [vmem:[%s2 + $0x10] sm:$0xf]
    %v63 = vld [vmem:[%s2 + $0x14] sm:$0xf]
    %v64 = vld [vmem:[%s2 + $0x18] sm:$0xf]
    %v65 = vld [vmem:[%s2 + $0x1c] sm:$0xf]
    %v66 = vld [vmem:[%s2 + $0x20] sm:$0xf]
    %v67 = vld [vmem:[%s2 + $0x24] sm:$0xf]
    %v68 = vld [vmem:[%s2 + $0x28] sm:$0xf]
    %v69 = vld [vmem:[%s2 + $0x2c] sm:$0xf]
    %v70 = vld [vmem:[%s2 + $0x30] sm:$0xf]
    %v71 = vld [vmem:[%s2 + $0x34] sm:$0xf]
    %v72 = vld [vmem:[%s2 + $0x38] sm:$0xf]
    %v73 = vld [vmem:[%s2 + $0x3c] sm:$0xf]
    %v74 = vld [vmem:[#allocation2] sm:$0xff]
    %v75 = vld [vmem:[%s0] sm:$0xff]
    %v76 = vld [vmem:[%s0 + $0x8] sm:$0xff]
    %v77 = vld [vmem:[%s0 + $0x10] sm:$0xff]
    %v78 = vpack.c.bf16 %v74, %v74
    %v95 = vunpack.c.l.b16 %v42
    %v96 = vunpack.c.h.b16 %v42
    %v97 = vunpack.c.l.b16 %v43
    %v98 = vunpack.c.h.b16 %v43
    %v99 = vunpack.c.l.b16 %v44
    %v100 = vunpack.c.h.b16 %v44
    %v101 = vunpack.c.l.b16 %v45
    %v102 = vunpack.c.h.b16 %v45
    %v103 = vunpack.c.l.b16 %v46
    %v104 = vunpack.c.h.b16 %v46
    %v105 = vunpack.c.l.b16 %v47
    %v106 = vunpack.c.h.b16 %v47
    %v107 = vunpack.c.l.b16 %v48
    %v108 = vunpack.c.h.b16 %v48
    %v109 = vunpack.c.l.b16 %v49
    %v110 = vunpack.c.h.b16 %v49
    %v111 = vunpack.c.l.b16 %v50
    %v112 = vunpack.c.h.b16 %v50
    %v113 = vunpack.c.l.b16 %v51
    %v114 = vunpack.c.h.b16 %v51
    %v115 = vunpack.c.l.b16 %v52
    %v116 = vunpack.c.h.b16 %v52
    %v117 = vunpack.c.l.b16 %v53
    %v118 = vunpack.c.h.b16 %v53
    %v119 = vunpack.c.l.b16 %v54
    %v120 = vunpack.c.h.b16 %v54
    %v121 = vunpack.c.l.b16 %v55
    %v122 = vunpack.c.h.b16 %v55
    %v123 = vunpack.c.l.b16 %v56
    %v124 = vunpack.c.h.b16 %v56
    %v125 = vunpack.c.l.b16 %v57
    %v126 = vunpack.c.h.b16 %v57
    %v127 = vpack.c.b16 %v97, %v95
    %v128 = vpack.c.b16 %v98, %v96
    %v129 = vpack.c.b16 %v101, %v99
    %v130 = vpack.c.b16 %v102, %v100
    %v131 = vpack.c.b16 %v105, %v103
    %v132 = vpack.c.b16 %v106, %v104
    %v133 = vpack.c.b16 %v109, %v107
    %v134 = vpack.c.b16 %v110, %v108
    %v135 = vpack.c.b16 %v113, %v111
    %v136 = vpack.c.b16 %v114, %v112
    %v137 = vpack.c.b16 %v117, %v115
    %v138 = vpack.c.b16 %v118, %v116
    %v139 = vpack.c.b16 %v121, %v119
    %v140 = vpack.c.b16 %v122, %v120
    %v141 = vpack.c.b16 %v125, %v123
    %v142 = vpack.c.b16 %v126, %v124
    %159 = vmatprep.subr.bf16.mxu0 %v142
    %160 = vmatpush1.bf16.msra.mxu0 %v141
    %161 = vmatprep.subr.bf16.mxu0 %v140
    %162 = vmatpush1.bf16.msra.mxu0 %v139
    %163 = vmatprep.subr.bf16.mxu0 %v138
    %164 = vmatpush1.bf16.msra.mxu0 %v137
    %165 = vmatprep.subr.bf16.mxu0 %v136
    %166 = vmatpush1.bf16.msra.mxu0 %v135
    %167 = vmatprep.subr.bf16.mxu0 %v134
    %168 = vmatpush1.bf16.msra.mxu0 %v133
    %169 = vmatprep.subr.bf16.mxu0 %v132
    %170 = vmatpush1.bf16.msra.mxu0 %v131
    %171 = vmatprep.subr.bf16.mxu0 %v130
    %172 = vmatpush1.bf16.msra.mxu0 %v129
    %173 = vmatprep.subr.bf16.mxu0 %v128
    %174 = vmatpush1.bf16.msra.mxu0 %v127
    %175 = vmatprep.subr.bf16.mxu0 0
    %176 = vmatpush2.bf16.msra.mxu0 0
    %177 = vmatprep.subr.bf16.mxu0 0
    %178 = vmatpush2.bf16.msra.mxu0 0
    %179 = vmatprep.subr.bf16.mxu0 0
    %180 = vmatpush2.bf16.msra.mxu0 0
    %181 = vmatprep.subr.bf16.mxu0 0
    %182 = vmatpush2.bf16.msra.mxu0 0
    %183 = vmatprep.subr.bf16.mxu0 0
    %184 = vmatpush2.bf16.msra.mxu0 0
    %185 = vmatprep.subr.bf16.mxu0 0
    %186 = vmatpush2.bf16.msra.mxu0 0
    %187 = vmatprep.subr.bf16.mxu0 0
    %188 = vmatpush2.bf16.msra.mxu0 0
    %189 = vmatprep.subr.bf16.mxu0 0
    %190 = vmatpush2.bf16.msra.mxu0 0
    %191 = vmatprep.mubr.bf16.mxu0 0
    %192 = vmatmul.mubr.bf16.gmra.mxu0 %v78
    %v193 = vpop.f32.mrf.mxu0
    %v194 = vadd.f32 0.0, %v193
    %v195 = vpop.f32.mrf.mxu0
    %v196 = vadd.f32 0.0, %v195
    %v197 = vpop.f32.mrf.mxu0
    %v198 = vpop.f32.mrf.mxu0
    %199 = vdwg.mxu0
    %v200 = vadd.f32 %v75, %v194
    %v201 = vxor.u32 %v200, 2147483648
    %v202 = vmul.f32 %v201, 1.442695
    %v203 = vpow.pop %v202
    %v204 = vadd.f32 %v203, 1.0
    %v205 = vrcp.pop %v204
    %v206 = vmul.f32 1.0, %v205
    %v207 = vadd.f32 %v76, %v196
    %v208 = vxor.u32 %v207, 2147483648
    %v209 = vmul.f32 %v208, 1.442695
    %v210 = vpow.pop %v209
    %v211 = vadd.f32 %v210, 1.0
    %v212 = vrcp.pop %v211
    %v213 = vmul.f32 1.0, %v212
    %v214 = vmul.f32 %v74, %v206
    %v215 = vpack.c.bf16 %v214, %v214
    %v232 = vunpack.c.l.b16 %v58
    %v233 = vunpack.c.l.b16 %v59
    %v234 = vunpack.c.l.b16 %v60
    %v235 = vunpack.c.l.b16 %v61
    %v236 = vunpack.c.l.b16 %v62
    %v237 = vunpack.c.l.b16 %v63
    %v238 = vunpack.c.l.b16 %v64
    %v239 = vunpack.c.l.b16 %v65
    %v240 = vunpack.c.l.b16 %v66
    %v241 = vunpack.c.l.b16 %v67
    %v242 = vunpack.c.l.b16 %v68
    %v243 = vunpack.c.l.b16 %v69
    %v244 = vunpack.c.l.b16 %v70
    %v245 = vunpack.c.l.b16 %v71
    %v246 = vunpack.c.l.b16 %v72
    %v247 = vunpack.c.l.b16 %v73
    %v248 = vpack.c.b16 %v233, %v232
    %v249 = vpack.c.b16 %v235, %v234
    %v250 = vpack.c.b16 %v237, %v236
    %v251 = vpack.c.b16 %v239, %v238
    %v252 = vpack.c.b16 %v241, %v240
    %v253 = vpack.c.b16 %v243, %v242
    %v254 = vpack.c.b16 %v245, %v244
    %v255 = vpack.c.b16 %v247, %v246
    %264 = vmatprep.subr.bf16.mxu0 0
    %265 = vmatpush1.bf16.msra.mxu0 %v255
    %266 = vmatprep.subr.bf16.mxu0 0
    %267 = vmatpush1.bf16.msra.mxu0 %v254
    %268 = vmatprep.subr.bf16.mxu0 0
    %269 = vmatpush1.bf16.msra.mxu0 %v253
    %270 = vmatprep.subr.bf16.mxu0 0
    %271 = vmatpush1.bf16.msra.mxu0 %v252
    %272 = vmatprep.subr.bf16.mxu0 0
    %273 = vmatpush1.bf16.msra.mxu0 %v251
    %274 = vmatprep.subr.bf16.mxu0 0
    %275 = vmatpush1.bf16.msra.mxu0 %v250
    %276 = vmatprep.subr.bf16.mxu0 0
    %277 = vmatpush1.bf16.msra.mxu0 %v249
    %278 = vmatprep.subr.bf16.mxu0 0
    %279 = vmatpush1.bf16.msra.mxu0 %v248
    %280 = vmatprep.subr.bf16.mxu0 0
    %281 = vmatpush2.bf16.msra.mxu0 0
    %282 = vmatprep.subr.bf16.mxu0 0
    %283 = vmatpush2.bf16.msra.mxu0 0
    %284 = vmatprep.subr.bf16.mxu0 0
    %285 = vmatpush2.bf16.msra.mxu0 0
    %286 = vmatprep.subr.bf16.mxu0 0
    %287 = vmatpush2.bf16.msra.mxu0 0
    %288 = vmatprep.subr.bf16.mxu0 0
    %289 = vmatpush2.bf16.msra.mxu0 0
    %290 = vmatprep.subr.bf16.mxu0 0
    %291 = vmatpush2.bf16.msra.mxu0 0
    %292 = vmatprep.subr.bf16.mxu0 0
    %293 = vmatpush2.bf16.msra.mxu0 0
    %294 = vmatprep.subr.bf16.mxu0 0
    %295 = vmatpush2.bf16.msra.mxu0 0
    %296 = vmatprep.mubr.bf16.mxu0 0
    %297 = vmatmul.mubr.bf16.gmra.mxu0 %v215
    %v298 = vpop.f32.mrf.mxu0
    %v299 = vadd.f32 0.0, %v298
    %v300 = vpop.f32.mrf.mxu0
    %v301 = vpop.f32.mrf.mxu0
    %v302 = vpop.f32.mrf.mxu0
    %303 = vdwg.mxu0
    %v304 = vadd.f32 %v77, %v299
    %v305 = vtanh.pop %v304
    %v306 = vsub.f32 1.0, %v213
    %v307 = vmul.f32 %v74, %v306
    %v308 = vmul.f32 %v305, %v213
    %v309 = vadd.f32 %v307, %v308
    %s310 = scalar_lea.vmem %s0, 24
    %v311 = vld [vmem:[%s310] sm:$0xff]
    %v312 = vld [vmem:[%s310 + $0x8] sm:$0xff]
    %v313 = vld [vmem:[%s310 + $0x10] sm:$0xff]
    %v314 = vpack.c.bf16 %v309, %v309
    %315 = vmatprep.subr.bf16.mxu0 %v142
    %316 = vmatpush1.bf16.msra.mxu0 %v141
    %317 = vmatprep.subr.bf16.mxu0 %v140
    %318 = vmatpush1.bf16.msra.mxu0 %v139
    %319 = vmatprep.subr.bf16.mxu0 %v138
    %320 = vmatpush1.bf16.msra.mxu0 %v137
    %321 = vmatprep.subr.bf16.mxu0 %v136
    %322 = vmatpush1.bf16.msra.mxu0 %v135
    %323 = vmatprep.subr.bf16.mxu0 %v134
    %324 = vmatpush1.bf16.msra.mxu0 %v133
    %325 = vmatprep.subr.bf16.mxu0 %v132
    %326 = vmatpush1.bf16.msra.mxu0 %v131
    %327 = vmatprep.subr.bf16.mxu0 %v130
    %328 = vmatpush1.bf16.msra.mxu0 %v129
    %329 = vmatprep.subr.bf16.mxu0 %v128
    %330 = vmatpush1.bf16.msra.mxu0 %v127
    %331 = vmatprep.subr.bf16.mxu0 0
    %332 = vmatpush2.bf16.msra.mxu0 0
    %333 = vmatprep.subr.bf16.mxu0 0
    %334 = vmatpush2.bf16.msra.mxu0 0
    %335 = vmatprep.subr.bf16.mxu0 0
    %336 = vmatpush2.bf16.msra.mxu0 0
    %337 = vmatprep.subr.bf16.mxu0 0
    %338 = vmatpush2.bf16.msra.mxu0 0
    %339 = vmatprep.subr.bf16.mxu0 0
    %340 = vmatpush2.bf16.msra.mxu0 0
    %341 = vmatprep.subr.bf16.mxu0 0
    %342 = vmatpush2.bf16.msra.mxu0 0
    %343 = vmatprep.subr.bf16.mxu0 0
    %344 = vmatpush2.bf16.msra.mxu0 0
    %345 = vmatprep.subr.bf16.mxu0 0
    %346 = vmatpush2.bf16.msra.mxu0 0
    %347 = vmatprep.mubr.bf16.mxu0 0
    %348 = vmatmul.mubr.bf16.gmra.mxu0 %v314
    %v349 = vpop.f32.mrf.mxu0
    %v350 = vadd.f32 0.0, %v349
    %v351 = vpop.f32.mrf.mxu0
    %v352 = vadd.f32 0.0, %v351
    %v353 = vpop.f32.mrf.mxu0
    %v354 = vpop.f32.mrf.mxu0
    %355 = vdwg.mxu0
    %v356 = vadd.f32 %v311, %v350
    %v357 = vxor.u32 %v356, 2147483648
    %v358 = vmul.f32 %v357, 1.442695
    %v359 = vpow.pop %v358
    %v360 = vadd.f32 %v359, 1.0
    %v361 = vrcp.pop %v360
    %v362 = vmul.f32 1.0, %v361
    %v363 = vadd.f32 %v312, %v352
    %v364 = vxor.u32 %v363, 2147483648
    %v365 = vmul.f32 %v364, 1.442695
    %v366 = vpow.pop %v365
    %v367 = vadd.f32 %v366, 1.0
    %v368 = vrcp.pop %v367
    %v369 = vmul.f32 1.0, %v368
    %v370 = vmul.f32 %v309, %v362
    %v371 = vpack.c.bf16 %v370, %v370
    %372 = vmatprep.subr.bf16.mxu0 0
    %373 = vmatpush1.bf16.msra.mxu0 %v255
    %374 = vmatprep.subr.bf16.mxu0 0
    %375 = vmatpush1.bf16.msra.mxu0 %v254
    %376 = vmatprep.subr.bf16.mxu0 0
    %377 = vmatpush1.bf16.msra.mxu0 %v253
    %378 = vmatprep.subr.bf16.mxu0 0
    %379 = vmatpush1.bf16.msra.mxu0 %v252
    %380 = vmatprep.subr.bf16.mxu0 0
    %381 = vmatpush1.bf16.msra.mxu0 %v251
    %382 = vmatprep.subr.bf16.mxu0 0
    %383 = vmatpush1.bf16.msra.mxu0 %v250
    %384 = vmatprep.subr.bf16.mxu0 0
    %385 = vmatpush1.bf16.msra.mxu0 %v249
    %386 = vmatprep.subr.bf16.mxu0 0
    %387 = vmatpush1.bf16.msra.mxu0 %v248
    %388 = vmatprep.subr.bf16.mxu0 0
    %389 = vmatpush2.bf16.msra.mxu0 0
    %390 = vmatprep.subr.bf16.mxu0 0
    %391 = vmatpush2.bf16.msra.mxu0 0
    %392 = vmatprep.subr.bf16.mxu0 0
    %393 = vmatpush2.bf16.msra.mxu0 0
    %394 = vmatprep.subr.bf16.mxu0 0
    %395 = vmatpush2.bf16.msra.mxu0 0
    %396 = vmatprep.subr.bf16.mxu0 0
    %397 = vmatpush2.bf16.msra.mxu0 0
    %398 = vmatprep.subr.bf16.mxu0 0
    %399 = vmatpush2.bf16.msra.mxu0 0
    %400 = vmatprep.subr.bf16.mxu0 0
    %401 = vmatpush2.bf16.msra.mxu0 0
    %402 = vmatprep.subr.bf16.mxu0 0
    %403 = vmatpush2.bf16.msra.mxu0 0
    %404 = vmatprep.mubr.bf16.mxu0 0
    %405 = vmatmul.mubr.bf16.gmra.mxu0 %v371
    %v406 = vpop.f32.mrf.mxu0
    %v407 = vadd.f32 0.0, %v406
    %v408 = vpop.f32.mrf.mxu0
    %v409 = vpop.f32.mrf.mxu0
    %v410 = vpop.f32.mrf.mxu0
    %411 = vdwg.mxu0
    %v412 = vadd.f32 %v313, %v407
    %v413 = vtanh.pop %v412
    %v414 = vsub.f32 1.0, %v369
    %v415 = vmul.f32 %v309, %v414
    %v416 = vmul.f32 %v413, %v369
    %v417 = vadd.f32 %v415, %v416
    %s418 = scalar_lea.vmem %s0, 48
    %v419 = vld [vmem:[%s418] sm:$0xff]
    %v420 = vld [vmem:[%s418 + $0x8] sm:$0xff]
    %v421 = vld [vmem:[%s418 + $0x10] sm:$0xff]
    %v422 = vpack.c.bf16 %v417, %v417
    %423 = vmatprep.subr.bf16.mxu0 %v142
    %424 = vmatpush1.bf16.msra.mxu0 %v141
    %425 = vmatprep.subr.bf16.mxu0 %v140
    %426 = vmatpush1.bf16.msra.mxu0 %v139
    %427 = vmatprep.subr.bf16.mxu0 %v138
    %428 = vmatpush1.bf16.msra.mxu0 %v137
    %429 = vmatprep.subr.bf16.mxu0 %v136
    %430 = vmatpush1.bf16.msra.mxu0 %v135
    %431 = vmatprep.subr.bf16.mxu0 %v134
    %432 = vmatpush1.bf16.msra.mxu0 %v133
    %433 = vmatprep.subr.bf16.mxu0 %v132
    %434 = vmatpush1.bf16.msra.mxu0 %v131
    %435 = vmatprep.subr.bf16.mxu0 %v130
    %436 = vmatpush1.bf16.msra.mxu0 %v129
    %437 = vmatprep.subr.bf16.mxu0 %v128
    %438 = vmatpush1.bf16.msra.mxu0 %v127
    %439 = vmatprep.subr.bf16.mxu0 0
    %440 = vmatpush2.bf16.msra.mxu0 0
    %441 = vmatprep.subr.bf16.mxu0 0
    %442 = vmatpush2.bf16.msra.mxu0 0
    %443 = vmatprep.subr.bf16.mxu0 0
    %444 = vmatpush2.bf16.msra.mxu0 0
    %445 = vmatprep.subr.bf16.mxu0 0
    %446 = vmatpush2.bf16.msra.mxu0 0
    %447 = vmatprep.subr.bf16.mxu0 0
    %448 = vmatpush2.bf16.msra.mxu0 0
    %449 = vmatprep.subr.bf16.mxu0 0
    %450 = vmatpush2.bf16.msra.mxu0 0
    %451 = vmatprep.subr.bf16.mxu0 0
    %452 = vmatpush2.bf16.msra.mxu0 0
    %453 = vmatprep.subr.bf16.mxu0 0
    %454 = vmatpush2.bf16.msra.mxu0 0
    %455 = vmatprep.mubr.bf16.mxu0 0
    %456 = vmatmul.mubr.bf16.gmra.mxu0 %v422
    %v457 = vpop.f32.mrf.mxu0
    %v458 = vadd.f32 0.0, %v457
    %v459 = vpop.f32.mrf.mxu0
    %v460 = vadd.f32 0.0, %v459
    %v461 = vpop.f32.mrf.mxu0
    %v462 = vpop.f32.mrf.mxu0
    %463 = vdwg.mxu0
    %v464 = vadd.f32 %v419, %v458
    %v465 = vxor.u32 %v464, 2147483648
    %v466 = vmul.f32 %v465, 1.442695
    %v467 = vpow.pop %v466
    %v468 = vadd.f32 %v467, 1.0
    %v469 = vrcp.pop %v468
    %v470 = vmul.f32 1.0, %v469
    %v471 = vadd.f32 %v420, %v460
    %v472 = vxor.u32 %v471, 2147483648
    %v473 = vmul.f32 %v472, 1.442695
    %v474 = vpow.pop %v473
    %v475 = vadd.f32 %v474, 1.0
    %v476 = vrcp.pop %v475
    %v477 = vmul.f32 1.0, %v476
    %v478 = vmul.f32 %v417, %v470
    %v479 = vpack.c.bf16 %v478, %v478
    %480 = vmatprep.subr.bf16.mxu0 0
    %481 = vmatpush1.bf16.msra.mxu0 %v255
    %482 = vmatprep.subr.bf16.mxu0 0
    %483 = vmatpush1.bf16.msra.mxu0 %v254
    %484 = vmatprep.subr.bf16.mxu0 0
    %485 = vmatpush1.bf16.msra.mxu0 %v253
    %486 = vmatprep.subr.bf16.mxu0 0
    %487 = vmatpush1.bf16.msra.mxu0 %v252
    %488 = vmatprep.subr.bf16.mxu0 0
    %489 = vmatpush1.bf16.msra.mxu0 %v251
    %490 = vmatprep.subr.bf16.mxu0 0
    %491 = vmatpush1.bf16.msra.mxu0 %v250
    %492 = vmatprep.subr.bf16.mxu0 0
    %493 = vmatpush1.bf16.msra.mxu0 %v249
    %494 = vmatprep.subr.bf16.mxu0 0
    %495 = vmatpush1.bf16.msra.mxu0 %v248
    %496 = vmatprep.subr.bf16.mxu0 0
    %497 = vmatpush2.bf16.msra.mxu0 0
    %498 = vmatprep.subr.bf16.mxu0 0
    %499 = vmatpush2.bf16.msra.mxu0 0
    %500 = vmatprep.subr.bf16.mxu0 0
    %501 = vmatpush2.bf16.msra.mxu0 0
    %502 = vmatprep.subr.bf16.mxu0 0
    %503 = vmatpush2.bf16.msra.mxu0 0
    %504 = vmatprep.subr.bf16.mxu0 0
    %505 = vmatpush2.bf16.msra.mxu0 0
    %506 = vmatprep.subr.bf16.mxu0 0
    %507 = vmatpush2.bf16.msra.mxu0 0
    %508 = vmatprep.subr.bf16.mxu0 0
    %509 = vmatpush2.bf16.msra.mxu0 0
    %510 = vmatprep.subr.bf16.mxu0 0
    %511 = vmatpush2.bf16.msra.mxu0 0
    %512 = vmatprep.mubr.bf16.mxu0 0
    %513 = vmatmul.mubr.bf16.gmra.mxu0 %v479
    %v514 = vpop.f32.mrf.mxu0
    %v515 = vadd.f32 0.0, %v514
    %v516 = vpop.f32.mrf.mxu0
    %v517 = vpop.f32.mrf.mxu0
    %v518 = vpop.f32.mrf.mxu0
    %519 = vdwg.mxu0
    %v520 = vadd.f32 %v421, %v515
    %v521 = vtanh.pop %v520
    %v522 = vsub.f32 1.0, %v477
    %v523 = vmul.f32 %v417, %v522
    %v524 = vmul.f32 %v521, %v477
    %v525 = vadd.f32 %v523, %v524
    %s526 = scalar_lea.vmem %s0, 72
    %v527 = vld [vmem:[%s526] sm:$0xff]
    %v528 = vld [vmem:[%s526 + $0x8] sm:$0xff]
    %v529 = vld [vmem:[%s526 + $0x10] sm:$0xff]
    %v530 = vpack.c.bf16 %v525, %v525
    %531 = vmatprep.subr.bf16.mxu0 %v142
    %532 = vmatpush1.bf16.msra.mxu0 %v141
    %533 = vmatprep.subr.bf16.mxu0 %v140
    %534 = vmatpush1.bf16.msra.mxu0 %v139
    %535 = vmatprep.subr.bf16.mxu0 %v138
    %536 = vmatpush1.bf16.msra.mxu0 %v137
    %537 = vmatprep.subr.bf16.mxu0 %v136
    %538 = vmatpush1.bf16.msra.mxu0 %v135
    %539 = vmatprep.subr.bf16.mxu0 %v134
    %540 = vmatpush1.bf16.msra.mxu0 %v133
    %541 = vmatprep.subr.bf16.mxu0 %v132
    %542 = vmatpush1.bf16.msra.mxu0 %v131
    %543 = vmatprep.subr.bf16.mxu0 %v130
    %544 = vmatpush1.bf16.msra.mxu0 %v129
    %545 = vmatprep.subr.bf16.mxu0 %v128
    %546 = vmatpush1.bf16.msra.mxu0 %v127
    %547 = vmatprep.subr.bf16.mxu0 0
    %548 = vmatpush2.bf16.msra.mxu0 0
    %549 = vmatprep.subr.bf16.mxu0 0
    %550 = vmatpush2.bf16.msra.mxu0 0
    %551 = vmatprep.subr.bf16.mxu0 0
    %552 = vmatpush2.bf16.msra.mxu0 0
    %553 = vmatprep.subr.bf16.mxu0 0
    %554 = vmatpush2.bf16.msra.mxu0 0
    %555 = vmatprep.subr.bf16.mxu0 0
    %556 = vmatpush2.bf16.msra.mxu0 0
    %557 = vmatprep.subr.bf16.mxu0 0
    %558 = vmatpush2.bf16.msra.mxu0 0
    %559 = vmatprep.subr.bf16.mxu0 0
    %560 = vmatpush2.bf16.msra.mxu0 0
    %561 = vmatprep.subr.bf16.mxu0 0
    %562 = vmatpush2.bf16.msra.mxu0 0
    %563 = vmatprep.mubr.bf16.mxu0 0
    %564 = vmatmul.mubr.bf16.gmra.mxu0 %v530
    %v565 = vpop.f32.mrf.mxu0
    %v566 = vadd.f32 0.0, %v565
    %v567 = vpop.f32.mrf.mxu0
    %v568 = vadd.f32 0.0, %v567
    %v569 = vpop.f32.mrf.mxu0
    %v570 = vpop.f32.mrf.mxu0
    %571 = vdwg.mxu0
    %v572 = vadd.f32 %v527, %v566
    %v573 = vxor.u32 %v572, 2147483648
    %v574 = vmul.f32 %v573, 1.442695
    %v575 = vpow.pop %v574
    %v576 = vadd.f32 %v575, 1.0
    %v577 = vrcp.pop %v576
    %v578 = vmul.f32 1.0, %v577
    %v579 = vadd.f32 %v528, %v568
    %v580 = vxor.u32 %v579, 2147483648
    %v581 = vmul.f32 %v580, 1.442695
    %v582 = vpow.pop %v581
    %v583 = vadd.f32 %v582, 1.0
    %v584 = vrcp.pop %v583
    %v585 = vmul.f32 1.0, %v584
    %v586 = vmul.f32 %v525, %v578
    %v587 = vpack.c.bf16 %v586, %v586
    %588 = vmatprep.subr.bf16.mxu0 0
    %589 = vmatpush1.bf16.msra.mxu0 %v255
    %590 = vmatprep.subr.bf16.mxu0 0
    %591 = vmatpush1.bf16.msra.mxu0 %v254
    %592 = vmatprep.subr.bf16.mxu0 0
    %593 = vmatpush1.bf16.msra.mxu0 %v253
    %594 = vmatprep.subr.bf16.mxu0 0
    %595 = vmatpush1.bf16.msra.mxu0 %v252
    %596 = vmatprep.subr.bf16.mxu0 0
    %597 = vmatpush1.bf16.msra.mxu0 %v251
    %598 = vmatprep.subr.bf16.mxu0 0
    %599 = vmatpush1.bf16.msra.mxu0 %v250
    %600 = vmatprep.subr.bf16.mxu0 0
    %601 = vmatpush1.bf16.msra.mxu0 %v249
    %602 = vmatprep.subr.bf16.mxu0 0
    %603 = vmatpush1.bf16.msra.mxu0 %v248
    %604 = vmatprep.subr.bf16.mxu0 0
    %605 = vmatpush2.bf16.msra.mxu0 0
    %606 = vmatprep.subr.bf16.mxu0 0
    %607 = vmatpush2.bf16.msra.mxu0 0
    %608 = vmatprep.subr.bf16.mxu0 0
    %609 = vmatpush2.bf16.msra.mxu0 0
    %610 = vmatprep.subr.bf16.mxu0 0
    %611 = vmatpush2.bf16.msra.mxu0 0
    %612 = vmatprep.subr.bf16.mxu0 0
    %613 = vmatpush2.bf16.msra.mxu0 0
    %614 = vmatprep.subr.bf16.mxu0 0
    %615 = vmatpush2.bf16.msra.mxu0 0
    %616 = vmatprep.subr.bf16.mxu0 0
    %617 = vmatpush2.bf16.msra.mxu0 0
    %618 = vmatprep.subr.bf16.mxu0 0
    %619 = vmatpush2.bf16.msra.mxu0 0
    %620 = vmatprep.mubr.bf16.mxu0 0
    %621 = vmatmul.mubr.bf16.gmra.mxu0 %v587
    %v622 = vpop.f32.mrf.mxu0
    %v623 = vadd.f32 0.0, %v622
    %v624 = vpop.f32.mrf.mxu0
    %v625 = vpop.f32.mrf.mxu0
    %v626 = vpop.f32.mrf.mxu0
    %627 = vdwg.mxu0
    %v628 = vadd.f32 %v529, %v623
    %v629 = vtanh.pop %v628
    %v630 = vsub.f32 1.0, %v585
    %v631 = vmul.f32 %v525, %v630
    %v632 = vmul.f32 %v629, %v585
    %v633 = vadd.f32 %v631, %v632
    %634 = vst [vmem:[#allocation2] sm:$0xff] %v633
    // Predicated region
    $region42: #{lc_rnn_forward.3} parent=1 // pred_check
      %p635 = pneg %p37
    $region43: #{lc_rnn_forward.3} parent=1 // pred_check_branch
      %637 = sbr.rel (%p635) target = $region45
    $region44: #{lc_rnn_forward.3} parent=1 // pred_region
      %v639 = vcombine.high %v633, %v633
      %vm641 = vcmask 1043456
      %v642 = vsel %vm641, %v633, 0.0
      %v643 = vrot.slane %v642, 4
      %v644 = vadd.f32 %v642, %v643
      %v645 = vrot.slane %v644, 2
      %v646 = vadd.f32 %v644, %v645
      %v647 = vrot.slane %v646, 1
      %v648 = vadd.f32 %v646, %v647
      %v649 = vsel %vm641, %v639, 0.0
      %v650 = vrot.slane %v649, 4
      %v651 = vadd.f32 %v649, %v650
      %v652 = vrot.slane %v651, 2
      %v653 = vadd.f32 %v651, %v652
      %v654 = vrot.slane %v653, 1
      %v655 = vadd.f32 %v653, %v654
      %v656 = vmul.f32 %v648, 0.25
      %v657 = vmul.f32 %v655, 0.25
      %v658 = vld [vmem:[%s6] sm:$0x1]
      %v659 = vadd.f32 %v658, 1e-05
      %v660 = vrsqrt.pop %v659
      %v661 = vld [vmem:[%s5] sm:$0x1]
      %v663 = vlaneseq
      %v664 = vshrl.u32 %v663, 7
      %v665 = vsub.s32 0, %v664
      %v666 = vrot.slane %v661, %v665
      %v668 = vsub.f32 %v656, %v666
      %v669 = vsub.f32 %v657, %v666
      %v671 = vlaneseq
      %v672 = vshrl.u32 %v671, 7
      %v673 = vsub.s32 0, %v672
      %v674 = vrot.slane %v660, %v673
      %v676 = vmul.f32 %v668, %v674
      %v677 = vmul.f32 %v669, %v674
      %v678 = vld [vmem:[%s3] sm:$0x1]
      %v680 = vlaneseq
      %v681 = vshrl.u32 %v680, 7
      %v682 = vsub.s32 0, %v681
      %v683 = vrot.slane %v678, %v682
      %v685 = vmul.f32 %v676, %v683
      %v686 = vmul.f32 %v677, %v683
      %v687 = vld [vmem:[%s4] sm:$0x1]
      %v689 = vlaneseq
      %v690 = vshrl.u32 %v689, 7
      %v691 = vsub.s32 0, %v690
      %v692 = vrot.slane %v687, %v691
      %v694 = vadd.f32 %v685, %v692
      %v695 = vadd.f32 %v686, %v692
      %v698 = vrot.slane %v695, 7
      %vm699 = vcmask 1041409
      %v700 = vsel %vm699, %v698, %v694
      %702 = vst [vmem:[#allocation5] sm:$0x3] %v700
      %v703 = vpack.c.bf16 %v694, %v694
      %v704 = vpack.c.bf16 %v695, %v695
      %v705 = vld [vmem:[%s7] sm:$0xf]
      %v706 = vld [vmem:[%s7 + $0x4] sm:$0xf]
      %v707 = vld [vmem:[%s7 + $0x8] sm:$0xf]
      %v708 = vld [vmem:[%s7 + $0xc] sm:$0xf]
      %v709 = vld [vmem:[%s7 + $0x10] sm:$0xf]
      %v710 = vld [vmem:[%s7 + $0x14] sm:$0xf]
      %v711 = vld [vmem:[%s7 + $0x18] sm:$0xf]
      %v712 = vld [vmem:[%s7 + $0x1c] sm:$0xf]
      %v713 = vld [vmem:[%s7 + $0x20] sm:$0xf]
      %v714 = vld [vmem:[%s7 + $0x24] sm:$0xf]
      %v715 = vld [vmem:[%s7 + $0x28] sm:$0xf]
      %v716 = vld [vmem:[%s7 + $0x2c] sm:$0xf]
      %v717 = vld [vmem:[%s7 + $0x30] sm:$0xf]
      %v718 = vld [vmem:[%s7 + $0x34] sm:$0xf]
      %v719 = vld [vmem:[%s7 + $0x38] sm:$0xf]
      %v720 = vld [vmem:[%s7 + $0x3c] sm:$0xf]
      %v721 = vld [vmem:[%s8] sm:$0x1]
      %v723 = vlaneseq
      %v724 = vshrl.u32 %v723, 7
      %v725 = vsub.s32 0, %v724
      %v726 = vrot.slane %v721, %v725
      %v730 = vunpack.c.l.b16 %v703
      %v731 = vunpack.c.l.b16 %v704
      %v732 = vrot.slane %v731, 7
      %v733 = vsel %vm699, %v732, %v730
      %v734 = vpack.c.b16 %v733, %v733
      %v752 = vunpack.c.l.b16 %v705
      %v753 = vunpack.c.l.b16 %v706
      %v754 = vunpack.c.l.b16 %v707
      %v755 = vunpack.c.l.b16 %v708
      %v756 = vunpack.c.l.b16 %v709
      %v757 = vunpack.c.l.b16 %v710
      %v758 = vunpack.c.l.b16 %v711
      %v759 = vunpack.c.l.b16 %v712
      %v760 = vunpack.c.l.b16 %v713
      %v761 = vunpack.c.l.b16 %v714
      %v762 = vunpack.c.l.b16 %v715
      %v763 = vunpack.c.l.b16 %v716
      %v764 = vunpack.c.l.b16 %v717
      %v765 = vunpack.c.l.b16 %v718
      %v766 = vunpack.c.l.b16 %v719
      %v767 = vunpack.c.l.b16 %v720
      %v768 = vpack.c.b16 %v753, %v752
      %v769 = vpack.c.b16 %v755, %v754
      %v770 = vpack.c.b16 %v757, %v756
      %v771 = vpack.c.b16 %v759, %v758
      %v772 = vpack.c.b16 %v761, %v760
      %v773 = vpack.c.b16 %v763, %v762
      %v774 = vpack.c.b16 %v765, %v764
      %v775 = vpack.c.b16 %v767, %v766
      %784 = vmatprep.subr.bf16.mxu0 0
      %785 = vmatpush1.bf16.msra.mxu0 %v775
      %786 = vmatprep.subr.bf16.mxu0 0
      %787 = vmatpush1.bf16.msra.mxu0 %v774
      %788 = vmatprep.subr.bf16.mxu0 0
      %789 = vmatpush1.bf16.msra.mxu0 %v773
      %790 = vmatprep.subr.bf16.mxu0 0
      %791 = vmatpush1.bf16.msra.mxu0 %v772
      %792 = vmatprep.subr.bf16.mxu0 0
      %793 = vmatpush1.bf16.msra.mxu0 %v771
      %794 = vmatprep.subr.bf16.mxu0 0
      %795 = vmatpush1.bf16.msra.mxu0 %v770
      %796 = vmatprep.subr.bf16.mxu0 0
      %797 = vmatpush1.bf16.msra.mxu0 %v769
      %798 = vmatprep.subr.bf16.mxu0 0
      %799 = vmatpush1.bf16.msra.mxu0 %v768
      %800 = vmatprep.subr.bf16.mxu0 0
      %801 = vmatpush2.bf16.msra.mxu0 0
      %802 = vmatprep.subr.bf16.mxu0 0
      %803 = vmatpush2.bf16.msra.mxu0 0
      %804 = vmatprep.subr.bf16.mxu0 0
      %805 = vmatpush2.bf16.msra.mxu0 0
      %806 = vmatprep.subr.bf16.mxu0 0
      %807 = vmatpush2.bf16.msra.mxu0 0
      %808 = vmatprep.subr.bf16.mxu0 0
      %809 = vmatpush2.bf16.msra.mxu0 0
      %810 = vmatprep.subr.bf16.mxu0 0
      %811 = vmatpush2.bf16.msra.mxu0 0
      %812 = vmatprep.subr.bf16.mxu0 0
      %813 = vmatpush2.bf16.msra.mxu0 0
      %814 = vmatprep.subr.bf16.mxu0 0
      %815 = vmatpush2.bf16.msra.mxu0 0
      %816 = vmatprep.mubr.bf16.mxu0 0
      %817 = vmatmul.mubr.bf16.gmra.mxu0 %v734
      %v818 = vpop.f32.mrf.mxu0
      %v819 = vadd.f32 %v726, %v818
      %v820 = vpop.f32.mrf.mxu0
      %v821 = vpop.f32.mrf.mxu0
      %v822 = vpop.f32.mrf.mxu0
      %823 = vdwg.mxu0
      %824 = vst [vmem:[#allocation3] sm:$0x3] %v819
    $region45: #{lc_rnn_forward.3} parent=1 // pred_fallthru
      _
    // Predicated region
    $region46: #{lc_rnn_forward.3} parent=1 // pred_check
      _
    $region47: #{lc_rnn_forward.3} parent=1 // pred_check_branch
      %826 = sbr.rel (0) target = $region49
    $region48: #{lc_rnn_forward.3} parent=1 // pred_region
      %s828 = ssub.s32 32, 32
      %829 = vsyncadd [#allocation4], %s828
      %s831 = sshll.u32 [#allocation3], 4
      %s832 = int_to_ptr.vmem [resolvable:$true] %s831
      %834 = dma.vmem_to_hbm [thread:$0]  %s832, 32, %s9, [#allocation4]
    $region49: #{lc_rnn_forward.3} parent=1 // pred_fallthru
      _
    // Predicated region
    $region50: #{lc_rnn_forward.3} parent=1 // pred_check
      _
    $region51: #{lc_rnn_forward.3} parent=1 // pred_check_branch
      %836 = sbr.rel (0) target = $region53
    $region52: #{lc_rnn_forward.3} parent=1 // pred_region
      %s838 = ssub.s32 32, 32
      %839 = vsyncadd [#allocation6], %s838
      %s841 = sshll.u32 [#allocation5], 4
      %s842 = int_to_ptr.vmem [resolvable:$true] %s841
      %844 = dma.vmem_to_hbm [thread:$0]  %s842, 32, %s10, [#allocation6]
    $region53: #{lc_rnn_forward.3} parent=1 // pred_fallthru
      _
    // Predicated region
    $region54: #{lc_rnn_forward.3} parent=1 // pred_check
      _
    $region55: #{lc_rnn_forward.3} parent=1 // pred_check_branch
      %846 = sbr.rel (0) target = $region57
    $region56: #{lc_rnn_forward.3} parent=1 // pred_region
      %847 = dma.done [#allocation4], 32
    $region57: #{lc_rnn_forward.3} parent=1 // pred_fallthru
      _
    // Predicated region
    $region58: #{lc_rnn_forward.3} parent=1 // pred_check
      _
    $region59: #{lc_rnn_forward.3} parent=1 // pred_check_branch
      %849 = sbr.rel (0) target = $region61
    $region60: #{lc_rnn_forward.3} parent=1 // pred_region
      %850 = dma.done [#allocation6], 32
    $region61: #{lc_rnn_forward.3} parent=1 // pred_fallthru
      _
    %851 = vsyncpa [#allocation4], 1
    %852 = vsyncpa [#allocation6], 1

</llo_original>
